<compile_context>
chip_gen: v7x
topology: tpu7x:2x2x1
jax: 0.10.0
libtpu: 0.0.40
codegen_flags: <defaults>
</compile_context>

<pallas_src>
import functools

import numpy as np
import jax
import jax.numpy as jnp
from jax.experimental import pallas as pl
from jax.experimental.pallas import tpu as pltpu

BN_EPS = 1e-5
LANE = 128


def _round_up(x, m):
    return (x + m - 1) // m * m


# ----------------------------- Pallas kernels ------------------------------

def _conv_bn_relu_kernel(x_ref, w_ref, b_ref, o_ref, *, W, Ho):
    """Fused 3x3 valid conv (9 shifted MXU dots) + folded-BN bias + ReLU.

    x_ref: (1, (H+1)*W, Cpad)  one image, NHWC flattened over (H, W), with one
                               extra zero row so every shifted tap stays in-bounds.
    w_ref: (9, Cpad, Coutp)    bf16 weights, BN scale pre-folded, zero-padded.
    b_ref: (1, Coutp)          f32 folded bias: (conv_b - mean) * scale + beta.
    o_ref: (1, Ho*W, Coutp)    f32; columns w >= W-2 of each output row are wrap
                               garbage and are trimmed by the caller.
    """
    M = Ho * W
    acc = None
    for dy in range(3):
        for dx in range(3):
            # Static in-VMEM shifted slice (start = dy*W + dx is a Python int).
            xs = x_ref[0, pl.ds(dy * W + dx, M), :].astype(jnp.bfloat16)
            part = jnp.dot(xs, w_ref[dy * 3 + dx],
                           preferred_element_type=jnp.float32)
            acc = part if acc is None else acc + part
    y = jnp.maximum(acc + b_ref[...], 0.0)          # f32 epilogue
    o_ref[0] = y.astype(o_ref.dtype)


def _maxpool2_kernel(xe_ref, xo_ref, o_ref):
    """2x2 / stride-2 max pool of one output row: three full-vreg maxima."""
    o_ref[0, 0] = jnp.maximum(
        jnp.maximum(xe_ref[0, 0], xe_ref[0, 1]),
        jnp.maximum(xo_ref[0, 0], xo_ref[0, 1]))


# ----------------------------- Pallas wrappers ------------------------------

def conv_bn_relu_pallas(x_flat, w9, bias, *, W, Ho):
    """x_flat: (N, (H+1)*W, Cpad) f32; w9: (9, Cpad, Coutp) bf16; bias: (1, Coutp) f32."""
    N, Lpad, Cpad = x_flat.shape
    Coutp = w9.shape[-1]
    M = Ho * W
    kernel = functools.partial(_conv_bn_relu_kernel, W=W, Ho=Ho)
    return pl.pallas_call(
        kernel,
        grid=(N,),
        in_specs=[
            pl.BlockSpec((1, Lpad, Cpad), lambda n: (n, 0, 0)),
            pl.BlockSpec((9, Cpad, Coutp), lambda n: (0, 0, 0)),   # VMEM-resident
            pl.BlockSpec((1, Coutp), lambda n: (0, 0)),            # VMEM-resident
        ],
        out_specs=pl.BlockSpec((1, M, Coutp), lambda n: (n, 0, 0)),
        out_shape=jax.ShapeDtypeStruct((N, M, Coutp), jnp.float32),
        compiler_params=pltpu.CompilerParams(
            dimension_semantics=("parallel",)),
    )(x_flat, w9, bias)


def maxpool2_pallas(x_nhwc):
    """2x2 / stride-2 max pool (floor on odd dims, like torch.max_pool2d(x, 2))."""
    N, H, W, C = x_nhwc.shape
    Hp, Wp = H // 2, W // 2
    # Glue: stage even/odd column planes (XLA strided slice) so the kernel only
    # does full-vreg maxima with lane-dense (C=128) loads/stores.
    x_even = x_nhwc[:, :2 * Hp, 0:2 * Wp:2, :]   # (N, 2*Hp, Wp, C)
    x_odd = x_nhwc[:, :2 * Hp, 1:2 * Wp:2, :]    # (N, 2*Hp, Wp, C)
    return pl.pallas_call(
        _maxpool2_kernel,
        grid=(N, Hp),
        in_specs=[
            pl.BlockSpec((1, 2, Wp, C), lambda n, i: (n, i, 0, 0)),
            pl.BlockSpec((1, 2, Wp, C), lambda n, i: (n, i, 0, 0)),
        ],
        out_specs=pl.BlockSpec((1, 1, Wp, C), lambda n, i: (n, i, 0, 0)),
        out_shape=jax.ShapeDtypeStruct((N, Hp, Wp, C), jnp.float32),
        compiler_params=pltpu.CompilerParams(
            dimension_semantics=("parallel", "parallel")),
    )(x_even, x_odd)


# ----------------------------- Model (forward) ------------------------------

def init_params(key, image_channels, channels):
    """Deterministic synthetic parameters (conv weight+bias, BN gamma/beta/mean/var)."""
    params = []
    last_c = image_channels
    for c in channels:
        key, k1, k2, k3, k4, k5, k6 = jax.random.split(key, 7)
        w = 0.1 * jax.random.normal(k1, (3, 3, last_c, c), jnp.float32)      # HWIO
        b = 0.1 * jax.random.normal(k2, (c,), jnp.float32)                   # conv bias
        gamma = 1.0 + 0.1 * jax.random.normal(k3, (c,), jnp.float32)
        beta = 0.1 * jax.random.normal(k4, (c,), jnp.float32)
        run_mean = 0.1 * jax.random.normal(k5, (c,), jnp.float32)
        run_var = 0.5 + jnp.abs(jax.random.normal(k6, (c,), jnp.float32))
        params.append((w, b, gamma, beta, run_mean, run_var))
        last_c = c
    return params


def encoder_forward(x_nchw, params):
    """Equivalent of GenericEncoder.forward (inference-mode BatchNorm)."""
    x = jnp.transpose(x_nchw, (0, 2, 3, 1))              # NCHW -> NHWC
    N = x.shape[0]

    # Pad image channels to the lane width once, up front.
    cin0 = x.shape[-1]
    x = jnp.pad(x, ((0, 0), (0, 0), (0, 0), (0, _round_up(cin0, LANE) - cin0)))

    for (w, b, gamma, beta, mean, var) in params:
        _, H, W, Cp = x.shape
        cin_real, cout = w.shape[2], w.shape[3]
        cout_p = _round_up(cout, LANE)
        Ho, Wo = H - 2, W - 2

        # --- glue: fold BN (eval) into weights/bias, zero-pad channels ---
        scale = gamma / jnp.sqrt(var + BN_EPS)                        # (Cout,)
        w_f = w * scale[None, None, None, :]                          # (3,3,Cin,Cout)
        w_f = jnp.pad(w_f, ((0, 0), (0, 0),
                            (0, Cp - cin_real), (0, cout_p - cout)))
        w9 = w_f.reshape(9, Cp, cout_p).astype(jnp.bfloat16)
        bias = (b - mean) * scale + beta
        bias = jnp.pad(bias, (0, cout_p - cout)).reshape(1, cout_p).astype(jnp.float32)

        # --- glue: flatten spatial dims with one extra zero row (keeps taps in-bounds) ---
        x_pad = jnp.pad(x, ((0, 0), (0, 1), (0, 0), (0, 0)))          # (N, H+1, W, Cp)
        x_flat = x_pad.reshape(N, (H + 1) * W, Cp)

        # --- Pallas hot path: 9 shifted bf16 dots + folded bias + ReLU ---
        y_flat = conv_bn_relu_pallas(x_flat, w9, bias, W=W, Ho=Ho)    # (N, Ho*W, Coutp)

        # --- glue: drop the wrap-around columns ---
        x = y_flat.reshape(N, Ho, W, cout_p)[:, :, :Wo, :]            # (N, Ho, Wo, Coutp)

    # --- Pallas hot path: 2x2 / stride-2 max pool ---
    pooled = maxpool2_pallas(x)                                       # (N, Hp, Wp, Coutp)

    # --- glue: strip channel padding, match torch.flatten(x, 1) on NCHW ordering ---
    cout_last = params[-1][0].shape[3]
    pooled = pooled[:, :, :, :cout_last]
    pooled_nchw = jnp.transpose(pooled, (0, 3, 1, 2))
    return pooled_nchw.reshape(N, -1)


# ----------------------------- Pure-JAX reference ---------------------------

def reference_forward(x_nchw, params):
    x = x_nchw
    for (w, b, gamma, beta, mean, var) in params:
        w_oihw = jnp.transpose(w, (3, 2, 0, 1))
        y = jax.lax.conv_general_dilated(
            x, w_oihw, window_strides=(1, 1), padding="VALID",
            dimension_numbers=("NCHW", "OIHW", "NCHW"),
            precision=jax.lax.Precision.HIGHEST)
        y = y + b[None, :, None, None]
        y = (y - mean[None, :, None, None]) / jnp.sqrt(var[None, :, None, None] + BN_EPS)
        y = y * gamma[None, :, None, None] + beta[None, :, None, None]
        x = jnp.maximum(y, 0.0)
    x = jax.lax.reduce_window(x, -jnp.inf, jax.lax.max,
                              (1, 1, 2, 2), (1, 1, 2, 2), "VALID")
    return x.reshape(x.shape[0], -1)


# ----------------------------------- main ------------------------------------

if __name__ == "__main__":
    N, Cin, H, W = 2, 4, 16, 16
    channels = (8, 16)

    key = jax.random.PRNGKey(0)
    key, kx = jax.random.split(key)
    x = jax.random.normal(kx, (N, Cin, H, W), jnp.float32)
    params = init_params(key, Cin, channels)

    fwd = jax.jit(lambda xx: encoder_forward(xx, params))
    out = jax.block_until_ready(fwd(x))

    # shape check mirrors GenericEncoder.getOutputSize()
    expected_feats = channels[-1] * ((H - 2 * len(channels)) // 2) * ((W - 2 * len(channels)) // 2)
    assert out.shape == (N, expected_feats), (out.shape, expected_feats)

    ref = np.asarray(reference_forward(x, params))
    assert np.allclose(np.asarray(out), ref, atol=5e-2, rtol=5e-2), \
        float(np.max(np.abs(np.asarray(out) - ref)))

    print("KERNEL_OK")
</pallas_src>

<mosaic_0001>
module attributes {stable_mosaic.version = 11 : i64} {
  func.func @_conv_bn_relu_kernel(%arg0: i32, %arg1: memref<1x272x128xf32, #tpu.memory_space<vmem>>, %arg2: memref<9x128x128xbf16, #tpu.memory_space<vmem>>, %arg3: memref<1x128xf32, #tpu.memory_space<vmem>>, %arg4: memref<1x224x128xf32, #tpu.memory_space<vmem>>) attributes {dimension_semantics = [#tpu.dimension_semantics<parallel>], iteration_bounds = array<i64: 2>, scalar_prefetch = 0 : i64, scratch_operands = 0 : i64, tpu.core_type = #tpu.core_type<tc>, window_params = [{transform_indices = @transform_0, window_bounds = array<i64: 1, 272, 128>}, {pipeline_mode = #tpu.pipeline_mode<synchronous>, transform_indices = @transform_1, window_bounds = array<i64: 9, 128, 128>}, {pipeline_mode = #tpu.pipeline_mode<synchronous>, transform_indices = @transform_2, window_bounds = array<i64: 1, 128>}, {transform_indices = @transform_3, window_bounds = array<i64: 1, 224, 128>}]} {
    %c0 = arith.constant 0 : index
    %c0_0 = arith.constant 0 : index
    %c0_1 = arith.constant 0 : index
    %0 = vector.load %arg1[%c0, %c0_0, %c0_1] : memref<1x272x128xf32, #tpu.memory_space<vmem>>, vector<1x224x128xf32>
    %1 = vector.shape_cast %0 : vector<1x224x128xf32> to vector<224x128xf32>
    %2 = arith.truncf %1 : vector<224x128xf32> to vector<224x128xbf16>
    %c0_2 = arith.constant 0 : index
    %c0_3 = arith.constant 0 : index
    %c0_4 = arith.constant 0 : index
    %3 = vector.load %arg2[%c0_2, %c0_3, %c0_4] : memref<9x128x128xbf16, #tpu.memory_space<vmem>>, vector<1x128x128xbf16>
    %4 = vector.shape_cast %3 : vector<1x128x128xbf16> to vector<128x128xbf16>
    %cst = arith.constant dense<0.000000e+00> : vector<224x128xf32>
    %5 = tpu.matmul %2, %4, %cst {dimension_numbers = #tpu.dot_dimension_numbers<[1], [0], [0], [1], [0, 0, 1, 1], [], []>} : vector<224x128xbf16>, vector<128x128xbf16>, vector<224x128xf32> -> vector<224x128xf32>
    %c0_5 = arith.constant 0 : index
    %c1 = arith.constant 1 : index
    %c0_6 = arith.constant 0 : index
    %6 = vector.load %arg1[%c0_5, %c1, %c0_6] : memref<1x272x128xf32, #tpu.memory_space<vmem>>, vector<1x224x128xf32>
    %7 = vector.shape_cast %6 : vector<1x224x128xf32> to vector<224x128xf32>
    %8 = arith.truncf %7 : vector<224x128xf32> to vector<224x128xbf16>
    %c1_7 = arith.constant 1 : index
    %c0_8 = arith.constant 0 : index
    %c0_9 = arith.constant 0 : index
    %9 = vector.load %arg2[%c1_7, %c0_8, %c0_9] : memref<9x128x128xbf16, #tpu.memory_space<vmem>>, vector<1x128x128xbf16>
    %10 = vector.shape_cast %9 : vector<1x128x128xbf16> to vector<128x128xbf16>
    %cst_10 = arith.constant dense<0.000000e+00> : vector<224x128xf32>
    %11 = tpu.matmul %8, %10, %cst_10 {dimension_numbers = #tpu.dot_dimension_numbers<[1], [0], [0], [1], [0, 0, 1, 1], [], []>} : vector<224x128xbf16>, vector<128x128xbf16>, vector<224x128xf32> -> vector<224x128xf32>
    %12 = arith.addf %5, %11 : vector<224x128xf32>
    %c0_11 = arith.constant 0 : index
    %c2 = arith.constant 2 : index
    %c0_12 = arith.constant 0 : index
    %13 = vector.load %arg1[%c0_11, %c2, %c0_12] : memref<1x272x128xf32, #tpu.memory_space<vmem>>, vector<1x224x128xf32>
    %14 = vector.shape_cast %13 : vector<1x224x128xf32> to vector<224x128xf32>
    %15 = arith.truncf %14 : vector<224x128xf32> to vector<224x128xbf16>
    %c2_13 = arith.constant 2 : index
    %c0_14 = arith.constant 0 : index
    %c0_15 = arith.constant 0 : index
    %16 = vector.load %arg2[%c2_13, %c0_14, %c0_15] : memref<9x128x128xbf16, #tpu.memory_space<vmem>>, vector<1x128x128xbf16>
    %17 = vector.shape_cast %16 : vector<1x128x128xbf16> to vector<128x128xbf16>
    %cst_16 = arith.constant dense<0.000000e+00> : vector<224x128xf32>
    %18 = tpu.matmul %15, %17, %cst_16 {dimension_numbers = #tpu.dot_dimension_numbers<[1], [0], [0], [1], [0, 0, 1, 1], [], []>} : vector<224x128xbf16>, vector<128x128xbf16>, vector<224x128xf32> -> vector<224x128xf32>
    %19 = arith.addf %12, %18 : vector<224x128xf32>
    %c0_17 = arith.constant 0 : index
    %c16 = arith.constant 16 : index
    %c0_18 = arith.constant 0 : index
    %20 = vector.load %arg1[%c0_17, %c16, %c0_18] : memref<1x272x128xf32, #tpu.memory_space<vmem>>, vector<1x224x128xf32>
    %21 = vector.shape_cast %20 : vector<1x224x128xf32> to vector<224x128xf32>
    %22 = arith.truncf %21 : vector<224x128xf32> to vector<224x128xbf16>
    %c3 = arith.constant 3 : index
    %c0_19 = arith.constant 0 : index
    %c0_20 = arith.constant 0 : index
    %23 = vector.load %arg2[%c3, %c0_19, %c0_20] : memref<9x128x128xbf16, #tpu.memory_space<vmem>>, vector<1x128x128xbf16>
    %24 = vector.shape_cast %23 : vector<1x128x128xbf16> to vector<128x128xbf16>
    %cst_21 = arith.constant dense<0.000000e+00> : vector<224x128xf32>
    %25 = tpu.matmul %22, %24, %cst_21 {dimension_numbers = #tpu.dot_dimension_numbers<[1], [0], [0], [1], [0, 0, 1, 1], [], []>} : vector<224x128xbf16>, vector<128x128xbf16>, vector<224x128xf32> -> vector<224x128xf32>
    %26 = arith.addf %19, %25 : vector<224x128xf32>
    %c0_22 = arith.constant 0 : index
    %c17 = arith.constant 17 : index
    %c0_23 = arith.constant 0 : index
    %27 = vector.load %arg1[%c0_22, %c17, %c0_23] : memref<1x272x128xf32, #tpu.memory_space<vmem>>, vector<1x224x128xf32>
    %28 = vector.shape_cast %27 : vector<1x224x128xf32> to vector<224x128xf32>
    %29 = arith.truncf %28 : vector<224x128xf32> to vector<224x128xbf16>
    %c4 = arith.constant 4 : index
    %c0_24 = arith.constant 0 : index
    %c0_25 = arith.constant 0 : index
    %30 = vector.load %arg2[%c4, %c0_24, %c0_25] : memref<9x128x128xbf16, #tpu.memory_space<vmem>>, vector<1x128x128xbf16>
    %31 = vector.shape_cast %30 : vector<1x128x128xbf16> to vector<128x128xbf16>
    %cst_26 = arith.constant dense<0.000000e+00> : vector<224x128xf32>
    %32 = tpu.matmul %29, %31, %cst_26 {dimension_numbers = #tpu.dot_dimension_numbers<[1], [0], [0], [1], [0, 0, 1, 1], [], []>} : vector<224x128xbf16>, vector<128x128xbf16>, vector<224x128xf32> -> vector<224x128xf32>
    %33 = arith.addf %26, %32 : vector<224x128xf32>
    %c0_27 = arith.constant 0 : index
    %c18 = arith.constant 18 : index
    %c0_28 = arith.constant 0 : index
    %34 = vector.load %arg1[%c0_27, %c18, %c0_28] : memref<1x272x128xf32, #tpu.memory_space<vmem>>, vector<1x224x128xf32>
    %35 = vector.shape_cast %34 : vector<1x224x128xf32> to vector<224x128xf32>
    %36 = arith.truncf %35 : vector<224x128xf32> to vector<224x128xbf16>
    %c5 = arith.constant 5 : index
    %c0_29 = arith.constant 0 : index
    %c0_30 = arith.constant 0 : index
    %37 = vector.load %arg2[%c5, %c0_29, %c0_30] : memref<9x128x128xbf16, #tpu.memory_space<vmem>>, vector<1x128x128xbf16>
    %38 = vector.shape_cast %37 : vector<1x128x128xbf16> to vector<128x128xbf16>
    %cst_31 = arith.constant dense<0.000000e+00> : vector<224x128xf32>
    %39 = tpu.matmul %36, %38, %cst_31 {dimension_numbers = #tpu.dot_dimension_numbers<[1], [0], [0], [1], [0, 0, 1, 1], [], []>} : vector<224x128xbf16>, vector<128x128xbf16>, vector<224x128xf32> -> vector<224x128xf32>
    %40 = arith.addf %33, %39 : vector<224x128xf32>
    %c0_32 = arith.constant 0 : index
    %c32 = arith.constant 32 : index
    %c0_33 = arith.constant 0 : index
    %41 = vector.load %arg1[%c0_32, %c32, %c0_33] : memref<1x272x128xf32, #tpu.memory_space<vmem>>, vector<1x224x128xf32>
    %42 = vector.shape_cast %41 : vector<1x224x128xf32> to vector<224x128xf32>
    %43 = arith.truncf %42 : vector<224x128xf32> to vector<224x128xbf16>
    %c6 = arith.constant 6 : index
    %c0_34 = arith.constant 0 : index
    %c0_35 = arith.constant 0 : index
    %44 = vector.load %arg2[%c6, %c0_34, %c0_35] : memref<9x128x128xbf16, #tpu.memory_space<vmem>>, vector<1x128x128xbf16>
    %45 = vector.shape_cast %44 : vector<1x128x128xbf16> to vector<128x128xbf16>
    %cst_36 = arith.constant dense<0.000000e+00> : vector<224x128xf32>
    %46 = tpu.matmul %43, %45, %cst_36 {dimension_numbers = #tpu.dot_dimension_numbers<[1], [0], [0], [1], [0, 0, 1, 1], [], []>} : vector<224x128xbf16>, vector<128x128xbf16>, vector<224x128xf32> -> vector<224x128xf32>
    %47 = arith.addf %40, %46 : vector<224x128xf32>
    %c0_37 = arith.constant 0 : index
    %c33 = arith.constant 33 : index
    %c0_38 = arith.constant 0 : index
    %48 = vector.load %arg1[%c0_37, %c33, %c0_38] : memref<1x272x128xf32, #tpu.memory_space<vmem>>, vector<1x224x128xf32>
    %49 = vector.shape_cast %48 : vector<1x224x128xf32> to vector<224x128xf32>
    %50 = arith.truncf %49 : vector<224x128xf32> to vector<224x128xbf16>
    %c7 = arith.constant 7 : index
    %c0_39 = arith.constant 0 : index
    %c0_40 = arith.constant 0 : index
    %51 = vector.load %arg2[%c7, %c0_39, %c0_40] : memref<9x128x128xbf16, #tpu.memory_space<vmem>>, vector<1x128x128xbf16>
    %52 = vector.shape_cast %51 : vector<1x128x128xbf16> to vector<128x128xbf16>
    %cst_41 = arith.constant dense<0.000000e+00> : vector<224x128xf32>
    %53 = tpu.matmul %50, %52, %cst_41 {dimension_numbers = #tpu.dot_dimension_numbers<[1], [0], [0], [1], [0, 0, 1, 1], [], []>} : vector<224x128xbf16>, vector<128x128xbf16>, vector<224x128xf32> -> vector<224x128xf32>
    %54 = arith.addf %47, %53 : vector<224x128xf32>
    %c0_42 = arith.constant 0 : index
    %c34 = arith.constant 34 : index
    %c0_43 = arith.constant 0 : index
    %55 = vector.load %arg1[%c0_42, %c34, %c0_43] : memref<1x272x128xf32, #tpu.memory_space<vmem>>, vector<1x224x128xf32>
    %56 = vector.shape_cast %55 : vector<1x224x128xf32> to vector<224x128xf32>
    %57 = arith.truncf %56 : vector<224x128xf32> to vector<224x128xbf16>
    %c8 = arith.constant 8 : index
    %c0_44 = arith.constant 0 : index
    %c0_45 = arith.constant 0 : index
    %58 = vector.load %arg2[%c8, %c0_44, %c0_45] : memref<9x128x128xbf16, #tpu.memory_space<vmem>>, vector<1x128x128xbf16>
    %59 = vector.shape_cast %58 : vector<1x128x128xbf16> to vector<128x128xbf16>
    %cst_46 = arith.constant dense<0.000000e+00> : vector<224x128xf32>
    %60 = tpu.matmul %57, %59, %cst_46 {dimension_numbers = #tpu.dot_dimension_numbers<[1], [0], [0], [1], [0, 0, 1, 1], [], []>} : vector<224x128xbf16>, vector<128x128xbf16>, vector<224x128xf32> -> vector<224x128xf32>
    %61 = arith.addf %54, %60 : vector<224x128xf32>
    %c0_47 = arith.constant 0 : index
    %c0_48 = arith.constant 0 : index
    %62 = vector.load %arg3[%c0_47, %c0_48] : memref<1x128xf32, #tpu.memory_space<vmem>>, vector<1x128xf32>
    %63 = vector.broadcast %62 : vector<1x128xf32> to vector<224x128xf32>
    %64 = arith.addf %61, %63 : vector<224x128xf32>
    %cst_49 = arith.constant 0.000000e+00 : f32
    %65 = vector.broadcast %cst_49 : f32 to vector<224x128xf32>
    %66 = arith.maximumf %64, %65 : vector<224x128xf32>
    %c0_50 = arith.constant 0 : index
    %c0_51 = arith.constant 0 : index
    %c0_52 = arith.constant 0 : index
    %67 = vector.load %arg4[%c0_50, %c0_51, %c0_52] : memref<1x224x128xf32, #tpu.memory_space<vmem>>, vector<1x224x128xf32>
    %68 = vector.shape_cast %67 : vector<1x224x128xf32> to vector<224x128xf32>
    %69 = vector.shape_cast %66 : vector<224x128xf32> to vector<1x224x128xf32>
    tpu.vector_store %arg4[%c0_50, %c0_51, %c0_52], %69 {strides = array<i32>} : memref<1x224x128xf32, #tpu.memory_space<vmem>>, vector<1x224x128xf32>,
    return
  }
  func.func @transform_0(%arg0: i32) -> (i32, i32, i32) {
    %c0_i32 = arith.constant 0 : i32
    %c0_i32_0 = arith.constant 0 : i32
    %c0_i32_1 = arith.constant 0 : i32
    return %arg0, %c0_i32, %c0_i32_0 : i32, i32, i32
  }
  func.func @transform_1(%arg0: i32) -> (i32, i32, i32) {
    %c0_i32 = arith.constant 0 : i32
    %c0_i32_0 = arith.constant 0 : i32
    %c0_i32_1 = arith.constant 0 : i32
    %c0_i32_2 = arith.constant 0 : i32
    return %c0_i32, %c0_i32_0, %c0_i32_1 : i32, i32, i32
  }
  func.func @transform_2(%arg0: i32) -> (i32, i32) {
    %c0_i32 = arith.constant 0 : i32
    %c0_i32_0 = arith.constant 0 : i32
    %c0_i32_1 = arith.constant 0 : i32
    return %c0_i32, %c0_i32_0 : i32, i32
  }
  func.func @transform_3(%arg0: i32) -> (i32, i32, i32) {
    %c0_i32 = arith.constant 0 : i32
    %c0_i32_0 = arith.constant 0 : i32
    %c0_i32_1 = arith.constant 0 : i32
    return %arg0, %c0_i32, %c0_i32_0 : i32, i32, i32
  }
}

module attributes {stable_mosaic.version = 11 : i64} {
  func.func @_conv_bn_relu_kernel(%arg0: i32, %arg1: memref<1x210x128xf32, #tpu.memory_space<vmem>>, %arg2: memref<9x128x128xbf16, #tpu.memory_space<vmem>>, %arg3: memref<1x128xf32, #tpu.memory_space<vmem>>, %arg4: memref<1x168x128xf32, #tpu.memory_space<vmem>>) attributes {dimension_semantics = [#tpu.dimension_semantics<parallel>], iteration_bounds = array<i64: 2>, scalar_prefetch = 0 : i64, scratch_operands = 0 : i64, tpu.core_type = #tpu.core_type<tc>, window_params = [{transform_indices = @transform_0, window_bounds = array<i64: 1, 210, 128>}, {pipeline_mode = #tpu.pipeline_mode<synchronous>, transform_indices = @transform_1, window_bounds = array<i64: 9, 128, 128>}, {pipeline_mode = #tpu.pipeline_mode<synchronous>, transform_indices = @transform_2, window_bounds = array<i64: 1, 128>}, {transform_indices = @transform_3, window_bounds = array<i64: 1, 168, 128>}]} {
    %c0 = arith.constant 0 : index
    %c0_0 = arith.constant 0 : index
    %c0_1 = arith.constant 0 : index
    %0 = vector.load %arg1[%c0, %c0_0, %c0_1] : memref<1x210x128xf32, #tpu.memory_space<vmem>>, vector<1x168x128xf32>
    %1 = vector.shape_cast %0 : vector<1x168x128xf32> to vector<168x128xf32>
    %2 = arith.truncf %1 : vector<168x128xf32> to vector<168x128xbf16>
    %c0_2 = arith.constant 0 : index
    %c0_3 = arith.constant 0 : index
    %c0_4 = arith.constant 0 : index
    %3 = vector.load %arg2[%c0_2, %c0_3, %c0_4] : memref<9x128x128xbf16, #tpu.memory_space<vmem>>, vector<1x128x128xbf16>
    %4 = vector.shape_cast %3 : vector<1x128x128xbf16> to vector<128x128xbf16>
    %cst = arith.constant dense<0.000000e+00> : vector<168x128xf32>
    %5 = tpu.matmul %2, %4, %cst {dimension_numbers = #tpu.dot_dimension_numbers<[1], [0], [0], [1], [0, 0, 1, 1], [], []>} : vector<168x128xbf16>, vector<128x128xbf16>, vector<168x128xf32> -> vector<168x128xf32>
    %c0_5 = arith.constant 0 : index
    %c1 = arith.constant 1 : index
    %c0_6 = arith.constant 0 : index
    %6 = vector.load %arg1[%c0_5, %c1, %c0_6] : memref<1x210x128xf32, #tpu.memory_space<vmem>>, vector<1x168x128xf32>
    %7 = vector.shape_cast %6 : vector<1x168x128xf32> to vector<168x128xf32>
    %8 = arith.truncf %7 : vector<168x128xf32> to vector<168x128xbf16>
    %c1_7 = arith.constant 1 : index
    %c0_8 = arith.constant 0 : index
    %c0_9 = arith.constant 0 : index
    %9 = vector.load %arg2[%c1_7, %c0_8, %c0_9] : memref<9x128x128xbf16, #tpu.memory_space<vmem>>, vector<1x128x128xbf16>
    %10 = vector.shape_cast %9 : vector<1x128x128xbf16> to vector<128x128xbf16>
    %cst_10 = arith.constant dense<0.000000e+00> : vector<168x128xf32>
    %11 = tpu.matmul %8, %10, %cst_10 {dimension_numbers = #tpu.dot_dimension_numbers<[1], [0], [0], [1], [0, 0, 1, 1], [], []>} : vector<168x128xbf16>, vector<128x128xbf16>, vector<168x128xf32> -> vector<168x128xf32>
    %12 = arith.addf %5, %11 : vector<168x128xf32>
    %c0_11 = arith.constant 0 : index
    %c2 = arith.constant 2 : index
    %c0_12 = arith.constant 0 : index
    %13 = vector.load %arg1[%c0_11, %c2, %c0_12] : memref<1x210x128xf32, #tpu.memory_space<vmem>>, vector<1x168x128xf32>
    %14 = vector.shape_cast %13 : vector<1x168x128xf32> to vector<168x128xf32>
    %15 = arith.truncf %14 : vector<168x128xf32> to vector<168x128xbf16>
    %c2_13 = arith.constant 2 : index
    %c0_14 = arith.constant 0 : index
    %c0_15 = arith.constant 0 : index
    %16 = vector.load %arg2[%c2_13, %c0_14, %c0_15] : memref<9x128x128xbf16, #tpu.memory_space<vmem>>, vector<1x128x128xbf16>
    %17 = vector.shape_cast %16 : vector<1x128x128xbf16> to vector<128x128xbf16>
    %cst_16 = arith.constant dense<0.000000e+00> : vector<168x128xf32>
    %18 = tpu.matmul %15, %17, %cst_16 {dimension_numbers = #tpu.dot_dimension_numbers<[1], [0], [0], [1], [0, 0, 1, 1], [], []>} : vector<168x128xbf16>, vector<128x128xbf16>, vector<168x128xf32> -> vector<168x128xf32>
    %19 = arith.addf %12, %18 : vector<168x128xf32>
    %c0_17 = arith.constant 0 : index
    %c14 = arith.constant 14 : index
    %c0_18 = arith.constant 0 : index
    %20 = vector.load %arg1[%c0_17, %c14, %c0_18] : memref<1x210x128xf32, #tpu.memory_space<vmem>>, vector<1x168x128xf32>
    %21 = vector.shape_cast %20 : vector<1x168x128xf32> to vector<168x128xf32>
    %22 = arith.truncf %21 : vector<168x128xf32> to vector<168x128xbf16>
    %c3 = arith.constant 3 : index
    %c0_19 = arith.constant 0 : index
    %c0_20 = arith.constant 0 : index
    %23 = vector.load %arg2[%c3, %c0_19, %c0_20] : memref<9x128x128xbf16, #tpu.memory_space<vmem>>, vector<1x128x128xbf16>
    %24 = vector.shape_cast %23 : vector<1x128x128xbf16> to vector<128x128xbf16>
    %cst_21 = arith.constant dense<0.000000e+00> : vector<168x128xf32>
    %25 = tpu.matmul %22, %24, %cst_21 {dimension_numbers = #tpu.dot_dimension_numbers<[1], [0], [0], [1], [0, 0, 1, 1], [], []>} : vector<168x128xbf16>, vector<128x128xbf16>, vector<168x128xf32> -> vector<168x128xf32>
    %26 = arith.addf %19, %25 : vector<168x128xf32>
    %c0_22 = arith.constant 0 : index
    %c15 = arith.constant 15 : index
    %c0_23 = arith.constant 0 : index
    %27 = vector.load %arg1[%c0_22, %c15, %c0_23] : memref<1x210x128xf32, #tpu.memory_space<vmem>>, vector<1x168x128xf32>
    %28 = vector.shape_cast %27 : vector<1x168x128xf32> to vector<168x128xf32>
    %29 = arith.truncf %28 : vector<168x128xf32> to vector<168x128xbf16>
    %c4 = arith.constant 4 : index
    %c0_24 = arith.constant 0 : index
    %c0_25 = arith.constant 0 : index
    %30 = vector.load %arg2[%c4, %c0_24, %c0_25] : memref<9x128x128xbf16, #tpu.memory_space<vmem>>, vector<1x128x128xbf16>
    %31 = vector.shape_cast %30 : vector<1x128x128xbf16> to vector<128x128xbf16>
    %cst_26 = arith.constant dense<0.000000e+00> : vector<168x128xf32>
    %32 = tpu.matmul %29, %31, %cst_26 {dimension_numbers = #tpu.dot_dimension_numbers<[1], [0], [0], [1], [0, 0, 1, 1], [], []>} : vector<168x128xbf16>, vector<128x128xbf16>, vector<168x128xf32> -> vector<168x128xf32>
    %33 = arith.addf %26, %32 : vector<168x128xf32>
    %c0_27 = arith.constant 0 : index
    %c16 = arith.constant 16 : index
    %c0_28 = arith.constant 0 : index
    %34 = vector.load %arg1[%c0_27, %c16, %c0_28] : memref<1x210x128xf32, #tpu.memory_space<vmem>>, vector<1x168x128xf32>
    %35 = vector.shape_cast %34 : vector<1x168x128xf32> to vector<168x128xf32>
    %36 = arith.truncf %35 : vector<168x128xf32> to vector<168x128xbf16>
    %c5 = arith.constant 5 : index
    %c0_29 = arith.constant 0 : index
    %c0_30 = arith.constant 0 : index
    %37 = vector.load %arg2[%c5, %c0_29, %c0_30] : memref<9x128x128xbf16, #tpu.memory_space<vmem>>, vector<1x128x128xbf16>
    %38 = vector.shape_cast %37 : vector<1x128x128xbf16> to vector<128x128xbf16>
    %cst_31 = arith.constant dense<0.000000e+00> : vector<168x128xf32>
    %39 = tpu.matmul %36, %38, %cst_31 {dimension_numbers = #tpu.dot_dimension_numbers<[1], [0], [0], [1], [0, 0, 1, 1], [], []>} : vector<168x128xbf16>, vector<128x128xbf16>, vector<168x128xf32> -> vector<168x128xf32>
    %40 = arith.addf %33, %39 : vector<168x128xf32>
    %c0_32 = arith.constant 0 : index
    %c28 = arith.constant 28 : index
    %c0_33 = arith.constant 0 : index
    %41 = vector.load %arg1[%c0_32, %c28, %c0_33] : memref<1x210x128xf32, #tpu.memory_space<vmem>>, vector<1x168x128xf32>
    %42 = vector.shape_cast %41 : vector<1x168x128xf32> to vector<168x128xf32>
    %43 = arith.truncf %42 : vector<168x128xf32> to vector<168x128xbf16>
    %c6 = arith.constant 6 : index
    %c0_34 = arith.constant 0 : index
    %c0_35 = arith.constant 0 : index
    %44 = vector.load %arg2[%c6, %c0_34, %c0_35] : memref<9x128x128xbf16, #tpu.memory_space<vmem>>, vector<1x128x128xbf16>
    %45 = vector.shape_cast %44 : vector<1x128x128xbf16> to vector<128x128xbf16>
    %cst_36 = arith.constant dense<0.000000e+00> : vector<168x128xf32>
    %46 = tpu.matmul %43, %45, %cst_36 {dimension_numbers = #tpu.dot_dimension_numbers<[1], [0], [0], [1], [0, 0, 1, 1], [], []>} : vector<168x128xbf16>, vector<128x128xbf16>, vector<168x128xf32> -> vector<168x128xf32>
    %47 = arith.addf %40, %46 : vector<168x128xf32>
    %c0_37 = arith.constant 0 : index
    %c29 = arith.constant 29 : index
    %c0_38 = arith.constant 0 : index
    %48 = vector.load %arg1[%c0_37, %c29, %c0_38] : memref<1x210x128xf32, #tpu.memory_space<vmem>>, vector<1x168x128xf32>
    %49 = vector.shape_cast %48 : vector<1x168x128xf32> to vector<168x128xf32>
    %50 = arith.truncf %49 : vector<168x128xf32> to vector<168x128xbf16>
    %c7 = arith.constant 7 : index
    %c0_39 = arith.constant 0 : index
    %c0_40 = arith.constant 0 : index
    %51 = vector.load %arg2[%c7, %c0_39, %c0_40] : memref<9x128x128xbf16, #tpu.memory_space<vmem>>, vector<1x128x128xbf16>
    %52 = vector.shape_cast %51 : vector<1x128x128xbf16> to vector<128x128xbf16>
    %cst_41 = arith.constant dense<0.000000e+00> : vector<168x128xf32>
    %53 = tpu.matmul %50, %52, %cst_41 {dimension_numbers = #tpu.dot_dimension_numbers<[1], [0], [0], [1], [0, 0, 1, 1], [], []>} : vector<168x128xbf16>, vector<128x128xbf16>, vector<168x128xf32> -> vector<168x128xf32>
    %54 = arith.addf %47, %53 : vector<168x128xf32>
    %c0_42 = arith.constant 0 : index
    %c30 = arith.constant 30 : index
    %c0_43 = arith.constant 0 : index
    %55 = vector.load %arg1[%c0_42, %c30, %c0_43] : memref<1x210x128xf32, #tpu.memory_space<vmem>>, vector<1x168x128xf32>
    %56 = vector.shape_cast %55 : vector<1x168x128xf32> to vector<168x128xf32>
    %57 = arith.truncf %56 : vector<168x128xf32> to vector<168x128xbf16>
    %c8 = arith.constant 8 : index
    %c0_44 = arith.constant 0 : index
    %c0_45 = arith.constant 0 : index
    %58 = vector.load %arg2[%c8, %c0_44, %c0_45] : memref<9x128x128xbf16, #tpu.memory_space<vmem>>, vector<1x128x128xbf16>
    %59 = vector.shape_cast %58 : vector<1x128x128xbf16> to vector<128x128xbf16>
    %cst_46 = arith.constant dense<0.000000e+00> : vector<168x128xf32>
    %60 = tpu.matmul %57, %59, %cst_46 {dimension_numbers = #tpu.dot_dimension_numbers<[1], [0], [0], [1], [0, 0, 1, 1], [], []>} : vector<168x128xbf16>, vector<128x128xbf16>, vector<168x128xf32> -> vector<168x128xf32>
    %61 = arith.addf %54, %60 : vector<168x128xf32>
    %c0_47 = arith.constant 0 : index
    %c0_48 = arith.constant 0 : index
    %62 = vector.load %arg3[%c0_47, %c0_48] : memref<1x128xf32, #tpu.memory_space<vmem>>, vector<1x128xf32>
    %63 = vector.broadcast %62 : vector<1x128xf32> to vector<168x128xf32>
    %64 = arith.addf %61, %63 : vector<168x128xf32>
    %cst_49 = arith.constant 0.000000e+00 : f32
    %65 = vector.broadcast %cst_49 : f32 to vector<168x128xf32>
    %66 = arith.maximumf %64, %65 : vector<168x128xf32>
    %c0_50 = arith.constant 0 : index
    %c0_51 = arith.constant 0 : index
    %c0_52 = arith.constant 0 : index
    %67 = vector.load %arg4[%c0_50, %c0_51, %c0_52] : memref<1x168x128xf32, #tpu.memory_space<vmem>>, vector<1x168x128xf32>
    %68 = vector.shape_cast %67 : vector<1x168x128xf32> to vector<168x128xf32>
    %69 = vector.shape_cast %66 : vector<168x128xf32> to vector<1x168x128xf32>
    tpu.vector_store %arg4[%c0_50, %c0_51, %c0_52], %69 {strides = array<i32>} : memref<1x168x128xf32, #tpu.memory_space<vmem>>, vector<1x168x128xf32>,
    return
  }
  func.func @transform_0(%arg0: i32) -> (i32, i32, i32) {
    %c0_i32 = arith.constant 0 : i32
    %c0_i32_0 = arith.constant 0 : i32
    %c0_i32_1 = arith.constant 0 : i32
    return %arg0, %c0_i32, %c0_i32_0 : i32, i32, i32
  }
  func.func @transform_1(%arg0: i32) -> (i32, i32, i32) {
    %c0_i32 = arith.constant 0 : i32
    %c0_i32_0 = arith.constant 0 : i32
    %c0_i32_1 = arith.constant 0 : i32
    %c0_i32_2 = arith.constant 0 : i32
    return %c0_i32, %c0_i32_0, %c0_i32_1 : i32, i32, i32
  }
  func.func @transform_2(%arg0: i32) -> (i32, i32) {
    %c0_i32 = arith.constant 0 : i32
    %c0_i32_0 = arith.constant 0 : i32
    %c0_i32_1 = arith.constant 0 : i32
    return %c0_i32, %c0_i32_0 : i32, i32
  }
  func.func @transform_3(%arg0: i32) -> (i32, i32, i32) {
    %c0_i32 = arith.constant 0 : i32
    %c0_i32_0 = arith.constant 0 : i32
    %c0_i32_1 = arith.constant 0 : i32
    return %arg0, %c0_i32, %c0_i32_0 : i32, i32, i32
  }
}

module attributes {stable_mosaic.version = 11 : i64} {
  func.func @_maxpool2_kernel(%arg0: i32, %arg1: i32, %arg2: memref<1x2x6x128xf32, #tpu.memory_space<vmem>>, %arg3: memref<1x2x6x128xf32, #tpu.memory_space<vmem>>, %arg4: memref<1x1x6x128xf32, #tpu.memory_space<vmem>>) attributes {dimension_semantics = [#tpu.dimension_semantics<parallel>, #tpu.dimension_semantics<parallel>], iteration_bounds = array<i64: 2, 6>, scalar_prefetch = 0 : i64, scratch_operands = 0 : i64, tpu.core_type = #tpu.core_type<tc>, window_params = [{transform_indices = @transform_0, window_bounds = array<i64: 1, 2, 6, 128>}, {transform_indices = @transform_1, window_bounds = array<i64: 1, 2, 6, 128>}, {transform_indices = @transform_2, window_bounds = array<i64: 1, 1, 6, 128>}]} {
    %c0 = arith.constant 0 : index
    %c0_0 = arith.constant 0 : index
    %c0_1 = arith.constant 0 : index
    %c0_2 = arith.constant 0 : index
    %0 = vector.load %arg2[%c0, %c0_0, %c0_1, %c0_2] : memref<1x2x6x128xf32, #tpu.memory_space<vmem>>, vector<1x1x6x128xf32>
    %1 = vector.shape_cast %0 : vector<1x1x6x128xf32> to vector<6x128xf32>
    %c0_3 = arith.constant 0 : index
    %c1 = arith.constant 1 : index
    %c0_4 = arith.constant 0 : index
    %c0_5 = arith.constant 0 : index
    %2 = vector.load %arg2[%c0_3, %c1, %c0_4, %c0_5] : memref<1x2x6x128xf32, #tpu.memory_space<vmem>>, vector<1x1x6x128xf32>
    %3 = vector.shape_cast %2 : vector<1x1x6x128xf32> to vector<6x128xf32>
    %4 = arith.maximumf %1, %3 : vector<6x128xf32>
    %c0_6 = arith.constant 0 : index
    %c0_7 = arith.constant 0 : index
    %c0_8 = arith.constant 0 : index
    %c0_9 = arith.constant 0 : index
    %5 = vector.load %arg3[%c0_6, %c0_7, %c0_8, %c0_9] : memref<1x2x6x128xf32, #tpu.memory_space<vmem>>, vector<1x1x6x128xf32>
    %6 = vector.shape_cast %5 : vector<1x1x6x128xf32> to vector<6x128xf32>
    %c0_10 = arith.constant 0 : index
    %c1_11 = arith.constant 1 : index
    %c0_12 = arith.constant 0 : index
    %c0_13 = arith.constant 0 : index
    %7 = vector.load %arg3[%c0_10, %c1_11, %c0_12, %c0_13] : memref<1x2x6x128xf32, #tpu.memory_space<vmem>>, vector<1x1x6x128xf32>
    %8 = vector.shape_cast %7 : vector<1x1x6x128xf32> to vector<6x128xf32>
    %9 = arith.maximumf %6, %8 : vector<6x128xf32>
    %10 = arith.maximumf %4, %9 : vector<6x128xf32>
    %c0_14 = arith.constant 0 : index
    %c0_15 = arith.constant 0 : index
    %c0_16 = arith.constant 0 : index
    %c0_17 = arith.constant 0 : index
    %11 = vector.load %arg4[%c0_14, %c0_15, %c0_16, %c0_17] : memref<1x1x6x128xf32, #tpu.memory_space<vmem>>, vector<1x1x6x128xf32>
    %12 = vector.shape_cast %11 : vector<1x1x6x128xf32> to vector<6x128xf32>
    %13 = vector.shape_cast %10 : vector<6x128xf32> to vector<1x1x6x128xf32>
    tpu.vector_store %arg4[%c0_14, %c0_15, %c0_16, %c0_17], %13 {strides = array<i32>} : memref<1x1x6x128xf32, #tpu.memory_space<vmem>>, vector<1x1x6x128xf32>,
    return
  }
  func.func @transform_0(%arg0: i32, %arg1: i32) -> (i32, i32, i32, i32) {
    %c0_i32 = arith.constant 0 : i32
    %c0_i32_0 = arith.constant 0 : i32
    %c0_i32_1 = arith.constant 0 : i32
    return %arg0, %arg1, %c0_i32, %c0_i32_0 : i32, i32, i32, i32
  }
  func.func @transform_1(%arg0: i32, %arg1: i32) -> (i32, i32, i32, i32) {
    %c0_i32 = arith.constant 0 : i32
    %c0_i32_0 = arith.constant 0 : i32
    %c0_i32_1 = arith.constant 0 : i32
    return %arg0, %arg1, %c0_i32, %c0_i32_0 : i32, i32, i32, i32
  }
  func.func @transform_2(%arg0: i32, %arg1: i32) -> (i32, i32, i32, i32) {
    %c0_i32 = arith.constant 0 : i32
    %c0_i32_0 = arith.constant 0 : i32
    %c0_i32_1 = arith.constant 0 : i32
    return %arg0, %arg1, %c0_i32, %c0_i32_0 : i32, i32, i32, i32
  }
}

</mosaic_0001>

<llo_original>
// kernel: _lambda_.5
$region0: #{_lambda_.5}
  #allocation0 [shape = 'u32[]', space=smem, size = 0x4, offset = 0x4, fixed_abs, tag = 'smem constant byte address 0x4 - core index']
  #allocation1 [shape = 'u32[144,128]{1,0:T(1,128)}', space=vmem, size = 0x12000, scoped, tag = 'internal scratch']
  %s0 = inlined_call_operand.vmem [shape: f32[2,12,6,128], index: 0, kind: input, shape index: {}]
  %s1 = inlined_call_operand.vmem [shape: f32[2,12,6,128], index: 1, kind: input, shape index: {}]
  %s2 = inlined_call_operand.vmem [shape: f32[2,6,6,128], index: 2, kind: output, shape index: {}]
  %s3 = sld [smem:[#allocation0]]
  $region41: #{_lambda_.5} parent=0
    _
  %s5 = ssub.s32 1, %s3
  %s6 = scalar_select 0, %s5, %s3
  loop: start=0, step=1, limit=14
  $region2: #{_lambda_.5} parent=0 // loop_pre_header
    _
  $region3: #{_lambda_.5} parent=0 // loop_header
    %s8 = sphi 0, %s12
    %p9 = scmp.ge.s32.totalorder %s8, 14
    %s15 = sphi 0, %s27
    %s16 = sphi 0, %s23
    %s17 = sphi 0, %s15
    %s18 = sphi 0, %s16
    %s19 = sphi 0, %s17
    %s20 = sphi 0, %s18
    %s32 = sphi 0, %s34
    %s35 = sphi 0, %s32
    %s36 = sphi 0, %s35
    %s52 = sphi 0, %s36
    %s60 = sphi 0, %s62
    %s63 = sphi 0, %s60
    %s64 = sphi 0, %s63
    %s80 = sphi 0, %s64
    %s88 = sphi 0, %s90
    %s91 = sphi 0, %s88
    %s92 = sphi 0, %s91
    %s108 = sphi 0, %s92
  $region4: #{_lambda_.5} parent=0 // loop_header_branch
    %11 = sbr.rel (%p9) target = $region8
  $region5: #{_lambda_.5} parent=0 // loop_body
    %s13 = ssub.s32 %s8, 1
    %s14 = ssub.s32 %s8, 2
    %s21 = sadd.s32 1, %s16
    %p22 = scmp.ge.s32.totalorder %s21, 6
    %s23 = scalar_select %p22, 0, %s21
    %s24 = sadd.s32 1, %s15
    %s25 = scalar_select %p22, %s24, %s15
    %p26 = scmp.ge.s32.totalorder %s25, 2
    %s27 = scalar_select %p26, 0, %s25
    %s28 = ssub.s32 %s15, %s27
    %s29 = ssub.s32 %s16, %s23
    %s30 = sor.u32 %s28, %s29
    %p31 = scmp.eq.s32.totalorder %s30, 0
    %s33 = sadd.s32 %s32, 1
    %s34 = scalar_select %p31, %s32, %s33
    %p37 = pneg %p31
    %p38 = scmp.eq.s32.totalorder %s8, 11
    %p39 = por %p37, %p38
    %p40 = scmp.ne.s32.totalorder %s32, %s35
    %p41 = scmp.eq.s32.totalorder %s8, 0
    %p42 = por %p40, %p41
    %p43 = scmp.ne.s32.totalorder %s32, %s35
    %p44 = scmp.eq.s32.totalorder %s13, 11
    %p45 = por %p43, %p44
    %p46 = scmp.ne.s32.totalorder %s35, %s36
    %p47 = scmp.eq.s32.totalorder %s13, 0
    %p48 = por %p46, %p47
    %p49 = scmp.ne.s32.totalorder %s35, %s36
    %p50 = scmp.eq.s32.totalorder %s14, 11
    %p51 = por %p49, %p50
    %p53 = scmp.ne.s32.totalorder %s36, %s52
    %p54 = scmp.eq.s32.totalorder %s14, 0
    %p55 = por %p53, %p54
    %s56 = ssub.s32 %s15, %s27
    %s57 = ssub.s32 %s16, %s23
    %s58 = sor.u32 %s56, %s57
    %p59 = scmp.eq.s32.totalorder %s58, 0
    %s61 = sadd.s32 %s60, 1
    %s62 = scalar_select %p59, %s60, %s61
    %p65 = pneg %p59
    %p66 = scmp.eq.s32.totalorder %s8, 11
    %p67 = por %p65, %p66
    %p68 = scmp.ne.s32.totalorder %s60, %s63
    %p69 = scmp.eq.s32.totalorder %s8, 0
    %p70 = por %p68, %p69
    %p71 = scmp.ne.s32.totalorder %s60, %s63
    %p72 = scmp.eq.s32.totalorder %s13, 11
    %p73 = por %p71, %p72
    %p74 = scmp.ne.s32.totalorder %s63, %s64
    %p75 = scmp.eq.s32.totalorder %s13, 0
    %p76 = por %p74, %p75
    %p77 = scmp.ne.s32.totalorder %s63, %s64
    %p78 = scmp.eq.s32.totalorder %s14, 11
    %p79 = por %p77, %p78
    %p81 = scmp.ne.s32.totalorder %s64, %s80
    %p82 = scmp.eq.s32.totalorder %s14, 0
    %p83 = por %p81, %p82
    %s84 = ssub.s32 %s15, %s27
    %s85 = ssub.s32 %s16, %s23
    %s86 = sor.u32 %s84, %s85
    %p87 = scmp.eq.s32.totalorder %s86, 0
    %s89 = sadd.s32 %s88, 1
    %s90 = scalar_select %p87, %s88, %s89
    %p93 = pneg %p87
    %p94 = scmp.eq.s32.totalorder %s8, 11
    %p95 = por %p93, %p94
    %p96 = scmp.ne.s32.totalorder %s88, %s91
    %p97 = scmp.eq.s32.totalorder %s8, 0
    %p98 = por %p96, %p97
    %p99 = scmp.ne.s32.totalorder %s88, %s91
    %p100 = scmp.eq.s32.totalorder %s13, 11
    %p101 = por %p99, %p100
    %p102 = scmp.ne.s32.totalorder %s91, %s92
    %p103 = scmp.eq.s32.totalorder %s13, 0
    %p104 = por %p102, %p103
    %p105 = scmp.ne.s32.totalorder %s91, %s92
    %p106 = scmp.eq.s32.totalorder %s14, 11
    %p107 = por %p105, %p106
    %p109 = scmp.ne.s32.totalorder %s92, %s108
    %p110 = scmp.eq.s32.totalorder %s14, 0
    %p111 = por %p109, %p110
    %p112 = scmp.le.s32.totalorder 1, %s8
    %p113 = scmp.lt.s32.totalorder %s8, 13
    %p114 = pnand %p112, %p113
    %p115 = pneg %p114
    // Predicated region
    $region9: #{_lambda_.5} parent=5 // pred_check
      _
    $region10: #{_lambda_.5} parent=5 // pred_check_branch
      %117 = sbr.rel (%p114) target = $region12
    $region11: #{_lambda_.5} parent=5 // pred_region
      %s118 = ssub.s32 %s8, 1
    $region12: #{_lambda_.5} parent=5 // pred_fallthru
      _
    %p119 = scmp.lt.s32.totalorder %s8, 12
    // Predicated region
    $region13: #{_lambda_.5} parent=5 // pred_check
      %p120 = pneg %p119
    $region14: #{_lambda_.5} parent=5 // pred_check_branch
      %122 = sbr.rel (%p120) target = $region16
    $region15: #{_lambda_.5} parent=5 // pred_region
      // Predicated region
      $region17: #{_lambda_.5} parent=15 // pred_check
        %p123 = pneg %p42
      $region18: #{_lambda_.5} parent=15 // pred_check_branch
        %125 = sbr.rel (%p123) target = $region20
      $region19: #{_lambda_.5} parent=15 // pred_region
        %s126 = smul.u32 2, %s16
        %p127 = scmp.lt.s32.totalorder %s15, 1
        %s128 = scalar_select %p127, %s15, 1
        %p129 = scmp.lt.s32.totalorder %s126, 11
        %s130 = scalar_select %p129, %s126, 11
        %s131 = smul.addr %s128, 12
        %s132 = sadd.s32 %s130, %s131
        %s133 = smul.addr %s132, 8
        %s134 = scalar_lea.vmem %s0, %s133
        %s135 = smul.u32 2, %s16
      $region20: #{_lambda_.5} parent=15 // pred_fallthru
        _
      // Predicated region
      $region21: #{_lambda_.5} parent=15 // pred_check
        %p136 = pneg %p70
      $region22: #{_lambda_.5} parent=15 // pred_check_branch
        %138 = sbr.rel (%p136) target = $region24
      $region23: #{_lambda_.5} parent=15 // pred_region
        %s139 = smul.u32 2, %s16
        %p140 = scmp.lt.s32.totalorder %s15, 1
        %s141 = scalar_select %p140, %s15, 1
        %p142 = scmp.lt.s32.totalorder %s139, 11
        %s143 = scalar_select %p142, %s139, 11
        %s144 = smul.addr %s141, 12
        %s145 = sadd.s32 %s143, %s144
        %s146 = smul.addr %s145, 8
        %s147 = scalar_lea.vmem %s1, %s146
        %s148 = smul.u32 2, %s16
      $region24: #{_lambda_.5} parent=15 // pred_fallthru
        _
    $region16: #{_lambda_.5} parent=5 // pred_fallthru
      _
    %p149 = scmp.le.s32.totalorder 1, %s8
    %p150 = scmp.lt.s32.totalorder %s8, 13
    %p151 = pnand %p149, %p150
    %p152 = pneg %p151
    // Predicated region
    $region25: #{_lambda_.5} parent=5 // pred_check
      _
    $region26: #{_lambda_.5} parent=5 // pred_check_branch
      %154 = sbr.rel (%p151) target = $region28
    $region27: #{_lambda_.5} parent=5 // pred_region
      %s155 = ssub.s32 %s8, 1
      %s156 = smul.u32 2, %s18
      %p157 = scmp.lt.s32.totalorder %s17, 1
      %s158 = scalar_select %p157, %s17, 1
      %p159 = scmp.lt.s32.totalorder %s156, 11
      %s160 = scalar_select %p159, %s156, 11
      %s161 = smul.addr %s158, 12
      %s162 = sadd.s32 %s160, %s161
      %s163 = smul.addr %s162, 8
      %s164 = scalar_lea.vmem %s0, %s163
      %p165 = pneg %p48
      %p166 = pneg %p45
      %s167 = smul.u32 2, %s18
      %p168 = scmp.lt.s32.totalorder %s17, 1
      %s169 = scalar_select %p168, %s17, 1
      %p170 = scmp.lt.s32.totalorder %s167, 11
      %s171 = scalar_select %p170, %s167, 11
      %s172 = smul.addr %s169, 12
      %s173 = sadd.s32 %s171, %s172
      %s174 = smul.addr %s173, 8
      %s175 = scalar_lea.vmem %s1, %s174
      %p176 = pneg %p76
      %p177 = pneg %p73
      %p178 = pneg %p104
      %p179 = pneg %p101
      %p180 = scmp.lt.s32.totalorder %s17, 1
      %s181 = scalar_select %p180, %s17, 1
      %p182 = scmp.lt.s32.totalorder %s18, 5
      %s183 = scalar_select %p182, %s18, 5
      %s184 = smul.addr %s181, 6
      %s185 = sadd.s32 %s183, %s184
      %s186 = smul.addr %s185, 8
      %s187 = scalar_lea.vmem %s2, %s186
      %s188 = smul.u32 2, %s18
      %p189 = scmp.lt.s32.totalorder %s17, 1
      %s190 = scalar_select %p189, %s17, 1
      %p191 = scmp.lt.s32.totalorder %s188, 11
      %s192 = scalar_select %p191, %s188, 11
      %s193 = smul.addr %s190, 12
      %s194 = sadd.s32 %s192, %s193
      %s195 = smul.addr %s194, 8
      %s196 = scalar_lea.vmem %s0, %s195
      %s197 = smul.u32 2, %s18
      %s198 = smul.u32 2, %s18
      %p199 = scmp.lt.s32.totalorder %s17, 1
      %s200 = scalar_select %p199, %s17, 1
      %p201 = scmp.lt.s32.totalorder %s198, 11
      %s202 = scalar_select %p201, %s198, 11
      %s203 = smul.addr %s200, 12
      %s204 = sadd.s32 %s202, %s203
      %s205 = smul.addr %s204, 8
      %s206 = scalar_lea.vmem %s1, %s205
      %s207 = smul.u32 2, %s18
      %p208 = scmp.lt.s32.totalorder %s17, 1
      %s209 = scalar_select %p208, %s17, 1
      %p210 = scmp.lt.s32.totalorder %s18, 5
      %s211 = scalar_select %p210, %s18, 5
      %s212 = smul.addr %s209, 6
      %s213 = sadd.s32 %s211, %s212
      %s214 = smul.addr %s213, 8
      %s215 = scalar_lea.vmem %s2, %s214
      %v216 = vld [vmem:[%s196] sm:$0x3f]
      %s217 = scalar_lea.vmem %s196, 8
      %v218 = vld [vmem:[%s217] sm:$0x3f]
      %v219 = vmax.f32 %v216, %v218
      %v220 = vld [vmem:[%s206] sm:$0x3f]
      %s221 = scalar_lea.vmem %s206, 8
      %v222 = vld [vmem:[%s221] sm:$0x3f]
      %v223 = vmax.f32 %v220, %v222
      %v224 = vmax.f32 %v219, %v223
      %225 = vst [vmem:[%s215] sm:$0x3f] %v224
      %p226 = scmp.lt.s32.totalorder %s17, 1
      %s227 = scalar_select %p226, %s17, 1
      %p228 = scmp.lt.s32.totalorder %s18, 5
      %s229 = scalar_select %p228, %s18, 5
      %s230 = smul.addr %s227, 6
      %s231 = sadd.s32 %s229, %s230
      %s232 = smul.addr %s231, 8
      %s233 = scalar_lea.vmem %s2, %s232
      // Predicated region
      $region29: #{_lambda_.5} parent=27 // pred_check
        %p234 = pneg %p101
      $region30: #{_lambda_.5} parent=27 // pred_check_branch
        %236 = sbr.rel (%p234) target = $region32
      $region31: #{_lambda_.5} parent=27 // pred_region
        _
      $region32: #{_lambda_.5} parent=27 // pred_fallthru
        _
    $region28: #{_lambda_.5} parent=5 // pred_fallthru
      _
    %p237 = scmp.le.s32.totalorder 2, %s8
    // Predicated region
    $region33: #{_lambda_.5} parent=5 // pred_check
      %p238 = pneg %p237
    $region34: #{_lambda_.5} parent=5 // pred_check_branch
      %240 = sbr.rel (%p238) target = $region36
    $region35: #{_lambda_.5} parent=5 // pred_region
      %s241 = ssub.s32 %s8, 2
      // Predicated region
      $region37: #{_lambda_.5} parent=35 // pred_check
        %p242 = pneg %p107
      $region38: #{_lambda_.5} parent=35 // pred_check_branch
        %244 = sbr.rel (%p242) target = $region40
      $region39: #{_lambda_.5} parent=35 // pred_region
        %p245 = scmp.lt.s32.totalorder %s19, 1
        %s246 = scalar_select %p245, %s19, 1
        %p247 = scmp.lt.s32.totalorder %s20, 5
        %s248 = scalar_select %p247, %s20, 5
        %s249 = smul.addr %s246, 6
        %s250 = sadd.s32 %s248, %s249
        %s251 = smul.addr %s250, 8
        %s252 = scalar_lea.vmem %s2, %s251
      $region40: #{_lambda_.5} parent=35 // pred_fallthru
        _
    $region36: #{_lambda_.5} parent=5 // pred_fallthru
      _
  $region6: #{_lambda_.5} parent=0 // loop_footer
    %s12 = sadd.s32 1, %s8
  $region7: #{_lambda_.5} parent=0 // loop_footer_branch
    %7 = sbr.rel target = $region3
  $region8: #{_lambda_.5} parent=0 // loop_exit
    _

// kernel: _lambda_.3
$region0: #{_lambda_.3}
  #allocation0 [shape = 'u32[]', space=smem, size = 0x4, offset = 0x4, fixed_abs, tag = 'smem constant byte address 0x4 - core index']
  #allocation1 [shape = 'u32[144,128]{1,0:T(1,128)}', space=vmem, size = 0x12000, scoped, tag = 'internal scratch']
  %s0 = inlined_call_operand.vmem [shape: f32[2,272,128], index: 0, kind: input, shape index: {}]
  %s1 = inlined_call_operand.vmem [shape: bf16[9,128,128], index: 1, kind: input, shape index: {}]
  %s2 = inlined_call_operand.vmem [shape: f32[1,128], index: 2, kind: input, shape index: {}]
  %s3 = inlined_call_operand.vmem [shape: f32[2,224,128], index: 3, kind: output, shape index: {}]
  %s4 = sld [smem:[#allocation0]]
  $region45: #{_lambda_.3} parent=0
    _
  %s6 = ssub.s32 1, %s4
  %s7 = scalar_select 0, %s6, %s4
  loop: start=0, step=1, limit=4
  $region2: #{_lambda_.3} parent=0 // loop_pre_header
    _
  $region3: #{_lambda_.3} parent=0 // loop_header
    %s9 = sphi 0, %s13
    %p10 = scmp.ge.s32.totalorder %s9, 4
    %s19 = sphi 0, %s21
    %s22 = sphi 0, %s19
    %s23 = sphi 0, %s22
    %s39 = sphi 0, %s23
    %s43 = sphi 0, %s43
    %s45 = sphi 0, %s43
    %s46 = sphi 0, %s45
    %s60 = sphi 0, %s46
    %s64 = sphi 0, %s64
    %s66 = sphi 0, %s64
    %s67 = sphi 0, %s66
    %s81 = sphi 0, %s67
    %s87 = sphi 0, %s89
    %s90 = sphi 0, %s87
    %s91 = sphi 0, %s90
    %s107 = sphi 0, %s91
  $region4: #{_lambda_.3} parent=0 // loop_header_branch
    %12 = sbr.rel (%p10) target = $region8
  $region5: #{_lambda_.3} parent=0 // loop_body
    %s14 = ssub.s32 %s9, 1
    %s15 = ssub.s32 %s9, 2
    %s16 = sadd.s32 %s9, 1
    %s17 = ssub.s32 %s9, %s16
    %p18 = scmp.eq.s32.totalorder %s17, 0
    %s20 = sadd.s32 %s19, 1
    %s21 = scalar_select %p18, %s19, %s20
    %p24 = pneg %p18
    %p25 = scmp.eq.s32.totalorder %s9, 1
    %p26 = por %p24, %p25
    %p27 = scmp.ne.s32.totalorder %s19, %s22
    %p28 = scmp.eq.s32.totalorder %s9, 0
    %p29 = por %p27, %p28
    %p30 = scmp.ne.s32.totalorder %s19, %s22
    %p31 = scmp.eq.s32.totalorder %s14, 1
    %p32 = por %p30, %p31
    %p33 = scmp.ne.s32.totalorder %s22, %s23
    %p34 = scmp.eq.s32.totalorder %s14, 0
    %p35 = por %p33, %p34
    %p36 = scmp.ne.s32.totalorder %s22, %s23
    %p37 = scmp.eq.s32.totalorder %s15, 1
    %p38 = por %p36, %p37
    %p40 = scmp.ne.s32.totalorder %s23, %s39
    %p41 = scmp.eq.s32.totalorder %s15, 0
    %p42 = por %p40, %p41
    %s44 = sadd.s32 %s43, 1
    %p47 = scmp.eq.s32.totalorder %s9, 1
    %p48 = scmp.ne.s32.totalorder %s43, %s45
    %p49 = scmp.eq.s32.totalorder %s9, 0
    %p50 = por %p48, %p49
    %p51 = scmp.ne.s32.totalorder %s43, %s45
    %p52 = scmp.eq.s32.totalorder %s14, 1
    %p53 = por %p51, %p52
    %p54 = scmp.ne.s32.totalorder %s45, %s46
    %p55 = scmp.eq.s32.totalorder %s14, 0
    %p56 = por %p54, %p55
    %p57 = scmp.ne.s32.totalorder %s45, %s46
    %p58 = scmp.eq.s32.totalorder %s15, 1
    %p59 = por %p57, %p58
    %p61 = scmp.ne.s32.totalorder %s46, %s60
    %p62 = scmp.eq.s32.totalorder %s15, 0
    %p63 = por %p61, %p62
    %s65 = sadd.s32 %s64, 1
    %p68 = scmp.eq.s32.totalorder %s9, 1
    %p69 = scmp.ne.s32.totalorder %s64, %s66
    %p70 = scmp.eq.s32.totalorder %s9, 0
    %p71 = por %p69, %p70
    %p72 = scmp.ne.s32.totalorder %s64, %s66
    %p73 = scmp.eq.s32.totalorder %s14, 1
    %p74 = por %p72, %p73
    %p75 = scmp.ne.s32.totalorder %s66, %s67
    %p76 = scmp.eq.s32.totalorder %s14, 0
    %p77 = por %p75, %p76
    %p78 = scmp.ne.s32.totalorder %s66, %s67
    %p79 = scmp.eq.s32.totalorder %s15, 1
    %p80 = por %p78, %p79
    %p82 = scmp.ne.s32.totalorder %s67, %s81
    %p83 = scmp.eq.s32.totalorder %s15, 0
    %p84 = por %p82, %p83
    %s85 = ssub.s32 %s9, %s16
    %p86 = scmp.eq.s32.totalorder %s85, 0
    %s88 = sadd.s32 %s87, 1
    %s89 = scalar_select %p86, %s87, %s88
    %p92 = pneg %p86
    %p93 = scmp.eq.s32.totalorder %s9, 1
    %p94 = por %p92, %p93
    %p95 = scmp.ne.s32.totalorder %s87, %s90
    %p96 = scmp.eq.s32.totalorder %s9, 0
    %p97 = por %p95, %p96
    %p98 = scmp.ne.s32.totalorder %s87, %s90
    %p99 = scmp.eq.s32.totalorder %s14, 1
    %p100 = por %p98, %p99
    %p101 = scmp.ne.s32.totalorder %s90, %s91
    %p102 = scmp.eq.s32.totalorder %s14, 0
    %p103 = por %p101, %p102
    %p104 = scmp.ne.s32.totalorder %s90, %s91
    %p105 = scmp.eq.s32.totalorder %s15, 1
    %p106 = por %p104, %p105
    %p108 = scmp.ne.s32.totalorder %s91, %s107
    %p109 = scmp.eq.s32.totalorder %s15, 0
    %p110 = por %p108, %p109
    %p111 = scmp.le.s32.totalorder 1, %s9
    %p112 = scmp.lt.s32.totalorder %s9, 3
    %p113 = pnand %p111, %p112
    %p114 = pneg %p113
    // Predicated region
    $region9: #{_lambda_.3} parent=5 // pred_check
      _
    $region10: #{_lambda_.3} parent=5 // pred_check_branch
      %116 = sbr.rel (%p113) target = $region12
    $region11: #{_lambda_.3} parent=5 // pred_region
      %s117 = ssub.s32 %s9, 1
      // Predicated region
      $region13: #{_lambda_.3} parent=11 // pred_check
        %p118 = pneg %p56
      $region14: #{_lambda_.3} parent=11 // pred_check_branch
        %120 = sbr.rel (%p118) target = $region16
      $region15: #{_lambda_.3} parent=11 // pred_region
        _
      $region16: #{_lambda_.3} parent=11 // pred_fallthru
        _
      // Predicated region
      $region17: #{_lambda_.3} parent=11 // pred_check
        %p121 = pneg %p77
      $region18: #{_lambda_.3} parent=11 // pred_check_branch
        %123 = sbr.rel (%p121) target = $region20
      $region19: #{_lambda_.3} parent=11 // pred_region
        _
      $region20: #{_lambda_.3} parent=11 // pred_fallthru
        _
    $region12: #{_lambda_.3} parent=5 // pred_fallthru
      _
    %p124 = scmp.lt.s32.totalorder %s9, 2
    // Predicated region
    $region21: #{_lambda_.3} parent=5 // pred_check
      %p125 = pneg %p124
    $region22: #{_lambda_.3} parent=5 // pred_check_branch
      %127 = sbr.rel (%p125) target = $region24
    $region23: #{_lambda_.3} parent=5 // pred_region
      // Predicated region
      $region25: #{_lambda_.3} parent=23 // pred_check
        %p128 = pneg %p29
      $region26: #{_lambda_.3} parent=23 // pred_check_branch
        %130 = sbr.rel (%p128) target = $region28
      $region27: #{_lambda_.3} parent=23 // pred_region
        %p131 = scmp.lt.s32.totalorder %s9, 1
        %s132 = scalar_select %p131, %s9, 1
        %s133 = smul.addr %s132, 34
        %s134 = smul.addr %s133, 8
        %s135 = scalar_lea.vmem %s0, %s134
      $region28: #{_lambda_.3} parent=23 // pred_fallthru
        _
    $region24: #{_lambda_.3} parent=5 // pred_fallthru
      _
    %p136 = scmp.le.s32.totalorder 1, %s9
    %p137 = scmp.lt.s32.totalorder %s9, 3
    %p138 = pnand %p136, %p137
    %p139 = pneg %p138
    // Predicated region
    $region29: #{_lambda_.3} parent=5 // pred_check
      _
    $region30: #{_lambda_.3} parent=5 // pred_check_branch
      %141 = sbr.rel (%p138) target = $region32
    $region31: #{_lambda_.3} parent=5 // pred_region
      %s142 = ssub.s32 %s9, 1
      %p143 = scmp.lt.s32.totalorder %s14, 1
      %s144 = scalar_select %p143, %s14, 1
      %s145 = smul.addr %s144, 34
      %s146 = smul.addr %s145, 8
      %s147 = scalar_lea.vmem %s0, %s146
      %p148 = pneg %p35
      %p149 = pneg %p32
      %p150 = pneg %p56
      %p151 = pneg %p53
      %p152 = pneg %p77
      %p153 = pneg %p74
      %p154 = pneg %p103
      %p155 = pneg %p100
      %p156 = scmp.lt.s32.totalorder %s14, 1
      %s157 = scalar_select %p156, %s14, 1
      %s158 = smul.addr %s157, 28
      %s159 = smul.addr %s158, 8
      %s160 = scalar_lea.vmem %s3, %s159
      %p161 = scmp.lt.s32.totalorder %s14, 1
      %s162 = scalar_select %p161, %s14, 1
      %s163 = smul.addr %s162, 34
      %s164 = smul.addr %s163, 8
      %s165 = scalar_lea.vmem %s0, %s164
      %p166 = scmp.lt.s32.totalorder %s14, 1
      %s167 = scalar_select %p166, %s14, 1
      %s168 = smul.addr %s167, 28
      %s169 = smul.addr %s168, 8
      %s170 = scalar_lea.vmem %s3, %s169
      %v172 = vld [vmem:[%s165] sm:$0xff]
      %v173 = vld [vmem:[%s165 + $0x8] sm:$0xff]
      %v174 = vld [vmem:[%s165 + $0x10] sm:$0xff]
      %v175 = vld [vmem:[%s165 + $0x18] sm:$0xff]
      %v176 = vld [vmem:[%s165 + $0x20] sm:$0xff]
      %v177 = vld [vmem:[%s165 + $0x28] sm:$0xff]
      %v178 = vld [vmem:[%s165 + $0x30] sm:$0xff]
      %v179 = vld [vmem:[%s165 + $0x38] sm:$0xff]
      %v180 = vld [vmem:[%s165 + $0x40] sm:$0xff]
      %v181 = vld [vmem:[%s165 + $0x48] sm:$0xff]
      %v182 = vld [vmem:[%s165 + $0x50] sm:$0xff]
      %v183 = vld [vmem:[%s165 + $0x58] sm:$0xff]
      %v184 = vld [vmem:[%s165 + $0x60] sm:$0xff]
      %v185 = vld [vmem:[%s165 + $0x68] sm:$0xff]
      %v186 = vld [vmem:[%s165 + $0x70] sm:$0xff]
      %v187 = vld [vmem:[%s165 + $0x78] sm:$0xff]
      %v188 = vld [vmem:[%s165 + $0x80] sm:$0xff]
      %v189 = vld [vmem:[%s165 + $0x88] sm:$0xff]
      %v190 = vld [vmem:[%s165 + $0x90] sm:$0xff]
      %v191 = vld [vmem:[%s165 + $0x98] sm:$0xff]
      %v192 = vld [vmem:[%s165 + $0xa0] sm:$0xff]
      %v193 = vld [vmem:[%s165 + $0xa8] sm:$0xff]
      %v194 = vld [vmem:[%s165 + $0xb0] sm:$0xff]
      %v195 = vld [vmem:[%s165 + $0xb8] sm:$0xff]
      %v196 = vld [vmem:[%s165 + $0xc0] sm:$0xff]
      %v197 = vld [vmem:[%s165 + $0xc8] sm:$0xff]
      %v198 = vld [vmem:[%s165 + $0xd0] sm:$0xff]
      %v199 = vld [vmem:[%s165 + $0xd8] sm:$0xff]
      %v200 = vpack.c.bf16 %v173, %v172
      %v201 = vpack.c.bf16 %v175, %v174
      %v202 = vpack.c.bf16 %v177, %v176
      %v203 = vpack.c.bf16 %v179, %v178
      %v204 = vpack.c.bf16 %v181, %v180
      %v205 = vpack.c.bf16 %v183, %v182
      %v206 = vpack.c.bf16 %v185, %v184
      %v207 = vpack.c.bf16 %v187, %v186
      %v208 = vpack.c.bf16 %v189, %v188
      %v209 = vpack.c.bf16 %v191, %v190
      %v210 = vpack.c.bf16 %v193, %v192
      %v211 = vpack.c.bf16 %v195, %v194
      %v212 = vpack.c.bf16 %v197, %v196
      %v213 = vpack.c.bf16 %v199, %v198
      %v214 = vld [vmem:[%s1] sm:$0xf]
      %v215 = vld [vmem:[%s1 + $0x4] sm:$0xf]
      %v216 = vld [vmem:[%s1 + $0x8] sm:$0xf]
      %v217 = vld [vmem:[%s1 + $0xc] sm:$0xf]
      %v218 = vld [vmem:[%s1 + $0x10] sm:$0xf]
      %v219 = vld [vmem:[%s1 + $0x14] sm:$0xf]
      %v220 = vld [vmem:[%s1 + $0x18] sm:$0xf]
      %v221 = vld [vmem:[%s1 + $0x1c] sm:$0xf]
      %v222 = vld [vmem:[%s1 + $0x20] sm:$0xf]
      %v223 = vld [vmem:[%s1 + $0x24] sm:$0xf]
      %v224 = vld [vmem:[%s1 + $0x28] sm:$0xf]
      %v225 = vld [vmem:[%s1 + $0x2c] sm:$0xf]
      %v226 = vld [vmem:[%s1 + $0x30] sm:$0xf]
      %v227 = vld [vmem:[%s1 + $0x34] sm:$0xf]
      %v228 = vld [vmem:[%s1 + $0x38] sm:$0xf]
      %v229 = vld [vmem:[%s1 + $0x3c] sm:$0xf]
      %v230 = vld [vmem:[%s165 + $0x1] sm:$0xff]
      %v231 = vld [vmem:[%s165 + $0x9] sm:$0xff]
      %v232 = vld [vmem:[%s165 + $0x11] sm:$0xff]
      %v233 = vld [vmem:[%s165 + $0x19] sm:$0xff]
      %v234 = vld [vmem:[%s165 + $0x21] sm:$0xff]
      %v235 = vld [vmem:[%s165 + $0x29] sm:$0xff]
      %v236 = vld [vmem:[%s165 + $0x31] sm:$0xff]
      %v237 = vld [vmem:[%s165 + $0x39] sm:$0xff]
      %v238 = vld [vmem:[%s165 + $0x41] sm:$0xff]
      %v239 = vld [vmem:[%s165 + $0x49] sm:$0xff]
      %v240 = vld [vmem:[%s165 + $0x51] sm:$0xff]
      %v241 = vld [vmem:[%s165 + $0x59] sm:$0xff]
      %v242 = vld [vmem:[%s165 + $0x61] sm:$0xff]
      %v243 = vld [vmem:[%s165 + $0x69] sm:$0xff]
      %v244 = vld [vmem:[%s165 + $0x71] sm:$0xff]
      %v245 = vld [vmem:[%s165 + $0x79] sm:$0xff]
      %v246 = vld [vmem:[%s165 + $0x81] sm:$0xff]
      %v247 = vld [vmem:[%s165 + $0x89] sm:$0xff]
      %v248 = vld [vmem:[%s165 + $0x91] sm:$0xff]
      %v249 = vld [vmem:[%s165 + $0x99] sm:$0xff]
      %v250 = vld [vmem:[%s165 + $0xa1] sm:$0xff]
      %v251 = vld [vmem:[%s165 + $0xa9] sm:$0xff]
      %v252 = vld [vmem:[%s165 + $0xb1] sm:$0xff]
      %v253 = vld [vmem:[%s165 + $0xb9] sm:$0xff]
      %v254 = vld [vmem:[%s165 + $0xc1] sm:$0xff]
      %v255 = vld [vmem:[%s165 + $0xc9] sm:$0xff]
      %v256 = vld [vmem:[%s165 + $0xd1] sm:$0xff]
      %v257 = vld [vmem:[%s165 + $0xd9] sm:$0xff]
      %v258 = vpack.c.bf16 %v231, %v230
      %v259 = vpack.c.bf16 %v233, %v232
      %v260 = vpack.c.bf16 %v235, %v234
      %v261 = vpack.c.bf16 %v237, %v236
      %v262 = vpack.c.bf16 %v239, %v238
      %v263 = vpack.c.bf16 %v241, %v240
      %v264 = vpack.c.bf16 %v243, %v242
      %v265 = vpack.c.bf16 %v245, %v244
      %v266 = vpack.c.bf16 %v247, %v246
      %v267 = vpack.c.bf16 %v249, %v248
      %v268 = vpack.c.bf16 %v251, %v250
      %v269 = vpack.c.bf16 %v253, %v252
      %v270 = vpack.c.bf16 %v255, %v254
      %v271 = vpack.c.bf16 %v257, %v256
      %s272 = scalar_lea.vmem %s1, 64
      %v273 = vld [vmem:[%s272] sm:$0xf]
      %v274 = vld [vmem:[%s272 + $0x4] sm:$0xf]
      %v275 = vld [vmem:[%s272 + $0x8] sm:$0xf]
      %v276 = vld [vmem:[%s272 + $0xc] sm:$0xf]
      %v277 = vld [vmem:[%s272 + $0x10] sm:$0xf]
      %v278 = vld [vmem:[%s272 + $0x14] sm:$0xf]
      %v279 = vld [vmem:[%s272 + $0x18] sm:$0xf]
      %v280 = vld [vmem:[%s272 + $0x1c] sm:$0xf]
      %v281 = vld [vmem:[%s272 + $0x20] sm:$0xf]
      %v282 = vld [vmem:[%s272 + $0x24] sm:$0xf]
      %v283 = vld [vmem:[%s272 + $0x28] sm:$0xf]
      %v284 = vld [vmem:[%s272 + $0x2c] sm:$0xf]
      %v285 = vld [vmem:[%s272 + $0x30] sm:$0xf]
      %v286 = vld [vmem:[%s272 + $0x34] sm:$0xf]
      %v287 = vld [vmem:[%s272 + $0x38] sm:$0xf]
      %v288 = vld [vmem:[%s272 + $0x3c] sm:$0xf]
      %v305 = vunpack.c.l.b16 %v273
      %v306 = vunpack.c.l.b16 %v274
      %v307 = vunpack.c.l.b16 %v275
      %v308 = vunpack.c.l.b16 %v276
      %v309 = vunpack.c.l.b16 %v277
      %v310 = vunpack.c.l.b16 %v278
      %v311 = vunpack.c.l.b16 %v279
      %v312 = vunpack.c.l.b16 %v280
      %v313 = vunpack.c.l.b16 %v281
      %v314 = vunpack.c.l.b16 %v282
      %v315 = vunpack.c.l.b16 %v283
      %v316 = vunpack.c.l.b16 %v284
      %v317 = vunpack.c.l.b16 %v285
      %v318 = vunpack.c.l.b16 %v286
      %v319 = vunpack.c.l.b16 %v287
      %v320 = vunpack.c.l.b16 %v288
      %v321 = vpack.c.b16 %v306, %v305
      %v322 = vpack.c.b16 %v308, %v307
      %v323 = vpack.c.b16 %v310, %v309
      %v324 = vpack.c.b16 %v312, %v311
      %v325 = vpack.c.b16 %v314, %v313
      %v326 = vpack.c.b16 %v316, %v315
      %v327 = vpack.c.b16 %v318, %v317
      %v328 = vpack.c.b16 %v320, %v319
      %337 = vmatprep.subr.bf16.mxu0 0
      %338 = vmatpush1.bf16.msra.mxu0 %v321
      %339 = vmatprep.subr.bf16.mxu0 0
      %340 = vmatpush1.bf16.msra.mxu0 %v322
      %341 = vmatprep.subr.bf16.mxu0 0
      %342 = vmatpush1.bf16.msra.mxu0 %v323
      %343 = vmatprep.subr.bf16.mxu0 0
      %344 = vmatpush1.bf16.msra.mxu0 %v324
      %345 = vmatprep.subr.bf16.mxu0 0
      %346 = vmatpush1.bf16.msra.mxu0 %v325
      %347 = vmatprep.subr.bf16.mxu0 0
      %348 = vmatpush1.bf16.msra.mxu0 %v326
      %349 = vmatprep.subr.bf16.mxu0 0
      %350 = vmatpush1.bf16.msra.mxu0 %v327
      %351 = vmatprep.subr.bf16.mxu0 0
      %352 = vmatpush1.bf16.msra.mxu0 %v328
      %353 = vmatprep.subr.bf16.mxu0 0
      %354 = vmatpush1.bf16.msra.mxu0 0
      %355 = vmatprep.subr.bf16.mxu0 0
      %356 = vmatpush1.bf16.msra.mxu0 0
      %357 = vmatprep.subr.bf16.mxu0 0
      %358 = vmatpush1.bf16.msra.mxu0 0
      %359 = vmatprep.subr.bf16.mxu0 0
      %360 = vmatpush1.bf16.msra.mxu0 0
      %361 = vmatprep.subr.bf16.mxu0 0
      %362 = vmatpush1.bf16.msra.mxu0 0
      %363 = vmatprep.subr.bf16.mxu0 0
      %364 = vmatpush1.bf16.msra.mxu0 0
      %365 = vmatprep.subr.bf16.mxu0 0
      %366 = vmatpush1.bf16.msra.mxu0 0
      %367 = vmatprep.subr.bf16.mxu0 0
      %368 = vmatpush1.bf16.msra.mxu0 0
      %369 = vmatprep.mubr.bf16.mxu0 0
      %370 = vmatmul.mubr.bf16.gmra.mrb[0].mxu0 %v258
      %v371 = vpop.f32.mrb[0].mxu0
      %v372 = vadd.f32 0.0, %v371
      %v373 = vpop.f32.mrb[0].mxu0
      %v374 = vpop.f32.mrb[0].mxu0
      %v375 = vadd.f32 0.0, %v374
      %v376 = vpop.f32.mrb[0].mxu0
      %377 = vmatprep.mubr.bf16.mxu0 0
      %378 = vmatmul.mubr.bf16.gmra.mrb[0].mxu0 %v259
      %v379 = vpop.f32.mrb[0].mxu0
      %v380 = vadd.f32 0.0, %v379
      %v381 = vpop.f32.mrb[0].mxu0
      %v382 = vpop.f32.mrb[0].mxu0
      %v383 = vadd.f32 0.0, %v382
      %v384 = vpop.f32.mrb[0].mxu0
      %385 = vmatprep.mubr.bf16.mxu0 0
      %386 = vmatmul.mubr.bf16.gmra.mrb[0].mxu0 %v260
      %v387 = vpop.f32.mrb[0].mxu0
      %v388 = vadd.f32 0.0, %v387
      %v389 = vpop.f32.mrb[0].mxu0
      %v390 = vpop.f32.mrb[0].mxu0
      %v391 = vadd.f32 0.0, %v390
      %v392 = vpop.f32.mrb[0].mxu0
      %393 = vmatprep.mubr.bf16.mxu0 0
      %394 = vmatmul.mubr.bf16.gmra.mrb[0].mxu0 %v261
      %v395 = vpop.f32.mrb[0].mxu0
      %v396 = vadd.f32 0.0, %v395
      %v397 = vpop.f32.mrb[0].mxu0
      %v398 = vpop.f32.mrb[0].mxu0
      %v399 = vadd.f32 0.0, %v398
      %v400 = vpop.f32.mrb[0].mxu0
      %401 = vmatprep.mubr.bf16.mxu0 0
      %402 = vmatmul.mubr.bf16.gmra.mrb[0].mxu0 %v262
      %v403 = vpop.f32.mrb[0].mxu0
      %v404 = vadd.f32 0.0, %v403
      %v405 = vpop.f32.mrb[0].mxu0
      %v406 = vpop.f32.mrb[0].mxu0
      %v407 = vadd.f32 0.0, %v406
      %v408 = vpop.f32.mrb[0].mxu0
      %409 = vmatprep.mubr.bf16.mxu0 0
      %410 = vmatmul.mubr.bf16.gmra.mrb[0].mxu0 %v263
      %v411 = vpop.f32.mrb[0].mxu0
      %v412 = vadd.f32 0.0, %v411
      %v413 = vpop.f32.mrb[0].mxu0
      %v414 = vpop.f32.mrb[0].mxu0
      %v415 = vadd.f32 0.0, %v414
      %v416 = vpop.f32.mrb[0].mxu0
      %417 = vmatprep.mubr.bf16.mxu0 0
      %418 = vmatmul.mubr.bf16.gmra.mrb[0].mxu0 %v264
      %v419 = vpop.f32.mrb[0].mxu0
      %v420 = vadd.f32 0.0, %v419
      %v421 = vpop.f32.mrb[0].mxu0
      %v422 = vpop.f32.mrb[0].mxu0
      %v423 = vadd.f32 0.0, %v422
      %v424 = vpop.f32.mrb[0].mxu0
      %425 = vmatprep.mubr.bf16.mxu0 0
      %426 = vmatmul.mubr.bf16.gmra.mrb[0].mxu0 %v265
      %v427 = vpop.f32.mrb[0].mxu0
      %v428 = vadd.f32 0.0, %v427
      %v429 = vpop.f32.mrb[0].mxu0
      %v430 = vpop.f32.mrb[0].mxu0
      %v431 = vadd.f32 0.0, %v430
      %v432 = vpop.f32.mrb[0].mxu0
      %433 = vmatprep.mubr.bf16.mxu0 0
      %434 = vmatmul.mubr.bf16.gmra.mrb[0].mxu0 %v266
      %v435 = vpop.f32.mrb[0].mxu0
      %v436 = vadd.f32 0.0, %v435
      %v437 = vpop.f32.mrb[0].mxu0
      %v438 = vpop.f32.mrb[0].mxu0
      %v439 = vadd.f32 0.0, %v438
      %v440 = vpop.f32.mrb[0].mxu0
      %441 = vmatprep.mubr.bf16.mxu0 0
      %442 = vmatmul.mubr.bf16.gmra.mrb[0].mxu0 %v267
      %v443 = vpop.f32.mrb[0].mxu0
      %v444 = vadd.f32 0.0, %v443
      %v445 = vpop.f32.mrb[0].mxu0
      %v446 = vpop.f32.mrb[0].mxu0
      %v447 = vadd.f32 0.0, %v446
      %v448 = vpop.f32.mrb[0].mxu0
      %449 = vmatprep.mubr.bf16.mxu0 0
      %450 = vmatmul.mubr.bf16.gmra.mrb[0].mxu0 %v268
      %v451 = vpop.f32.mrb[0].mxu0
      %v452 = vadd.f32 0.0, %v451
      %v453 = vpop.f32.mrb[0].mxu0
      %v454 = vpop.f32.mrb[0].mxu0
      %v455 = vadd.f32 0.0, %v454
      %v456 = vpop.f32.mrb[0].mxu0
      %457 = vmatprep.mubr.bf16.mxu0 0
      %458 = vmatmul.mubr.bf16.gmra.mrb[0].mxu0 %v269
      %v459 = vpop.f32.mrb[0].mxu0
      %v460 = vadd.f32 0.0, %v459
      %v461 = vpop.f32.mrb[0].mxu0
      %v462 = vpop.f32.mrb[0].mxu0
      %v463 = vadd.f32 0.0, %v462
      %v464 = vpop.f32.mrb[0].mxu0
      %465 = vmatprep.mubr.bf16.mxu0 0
      %466 = vmatmul.mubr.bf16.gmra.mrb[0].mxu0 %v270
      %v467 = vpop.f32.mrb[0].mxu0
      %v468 = vadd.f32 0.0, %v467
      %v469 = vpop.f32.mrb[0].mxu0
      %v470 = vpop.f32.mrb[0].mxu0
      %v471 = vadd.f32 0.0, %v470
      %v472 = vpop.f32.mrb[0].mxu0
      %473 = vmatprep.mubr.bf16.mxu0 0
      %474 = vmatmul.mubr.bf16.gmra.mrb[0].mxu0 %v271
      %v475 = vpop.f32.mrb[0].mxu0
      %v476 = vadd.f32 0.0, %v475
      %v477 = vpop.f32.mrb[0].mxu0
      %v478 = vpop.f32.mrb[0].mxu0
      %v479 = vadd.f32 0.0, %v478
      %v480 = vpop.f32.mrb[0].mxu0
      %481 = vdwg.mxu0
      %v498 = vunpack.c.l.b16 %v214
      %v499 = vunpack.c.l.b16 %v215
      %v500 = vunpack.c.l.b16 %v216
      %v501 = vunpack.c.l.b16 %v217
      %v502 = vunpack.c.l.b16 %v218
      %v503 = vunpack.c.l.b16 %v219
      %v504 = vunpack.c.l.b16 %v220
      %v505 = vunpack.c.l.b16 %v221
      %v506 = vunpack.c.l.b16 %v222
      %v507 = vunpack.c.l.b16 %v223
      %v508 = vunpack.c.l.b16 %v224
      %v509 = vunpack.c.l.b16 %v225
      %v510 = vunpack.c.l.b16 %v226
      %v511 = vunpack.c.l.b16 %v227
      %v512 = vunpack.c.l.b16 %v228
      %v513 = vunpack.c.l.b16 %v229
      %v514 = vpack.c.b16 %v499, %v498
      %v515 = vpack.c.b16 %v501, %v500
      %v516 = vpack.c.b16 %v503, %v502
      %v517 = vpack.c.b16 %v505, %v504
      %v518 = vpack.c.b16 %v507, %v506
      %v519 = vpack.c.b16 %v509, %v508
      %v520 = vpack.c.b16 %v511, %v510
      %v521 = vpack.c.b16 %v513, %v512
      %530 = vmatprep.subr.bf16.mxu0 0
      %531 = vmatpush1.bf16.msra.mxu0 %v514
      %532 = vmatprep.subr.bf16.mxu0 0
      %533 = vmatpush1.bf16.msra.mxu0 %v515
      %534 = vmatprep.subr.bf16.mxu0 0
      %535 = vmatpush1.bf16.msra.mxu0 %v516
      %536 = vmatprep.subr.bf16.mxu0 0
      %537 = vmatpush1.bf16.msra.mxu0 %v517
      %538 = vmatprep.subr.bf16.mxu0 0
      %539 = vmatpush1.bf16.msra.mxu0 %v518
      %540 = vmatprep.subr.bf16.mxu0 0
      %541 = vmatpush1.bf16.msra.mxu0 %v519
      %542 = vmatprep.subr.bf16.mxu0 0
      %543 = vmatpush1.bf16.msra.mxu0 %v520
      %544 = vmatprep.subr.bf16.mxu0 0
      %545 = vmatpush1.bf16.msra.mxu0 %v521
      %546 = vmatprep.subr.bf16.mxu0 0
      %547 = vmatpush1.bf16.msra.mxu0 0
      %548 = vmatprep.subr.bf16.mxu0 0
      %549 = vmatpush1.bf16.msra.mxu0 0
      %550 = vmatprep.subr.bf16.mxu0 0
      %551 = vmatpush1.bf16.msra.mxu0 0
      %552 = vmatprep.subr.bf16.mxu0 0
      %553 = vmatpush1.bf16.msra.mxu0 0
      %554 = vmatprep.subr.bf16.mxu0 0
      %555 = vmatpush1.bf16.msra.mxu0 0
      %556 = vmatprep.subr.bf16.mxu0 0
      %557 = vmatpush1.bf16.msra.mxu0 0
      %558 = vmatprep.subr.bf16.mxu0 0
      %559 = vmatpush1.bf16.msra.mxu0 0
      %560 = vmatprep.subr.bf16.mxu0 0
      %561 = vmatpush1.bf16.msra.mxu0 0
      %562 = vmatprep.mubr.bf16.mxu0 0
      %563 = vmatmul.mubr.bf16.gmra.mrb[0].mxu0 %v200
      %v564 = vpop.f32.mrb[0].mxu0
      %v565 = vadd.f32 %v372, %v564
      %v566 = vpop.f32.mrb[0].mxu0
      %v567 = vpop.f32.mrb[0].mxu0
      %v568 = vadd.f32 %v375, %v567
      %v569 = vpop.f32.mrb[0].mxu0
      %570 = vmatprep.mubr.bf16.mxu0 0
      %571 = vmatmul.mubr.bf16.gmra.mrb[0].mxu0 %v201
      %v572 = vpop.f32.mrb[0].mxu0
      %v573 = vadd.f32 %v380, %v572
      %v574 = vpop.f32.mrb[0].mxu0
      %v575 = vpop.f32.mrb[0].mxu0
      %v576 = vadd.f32 %v383, %v575
      %v577 = vpop.f32.mrb[0].mxu0
      %578 = vmatprep.mubr.bf16.mxu0 0
      %579 = vmatmul.mubr.bf16.gmra.mrb[0].mxu0 %v202
      %v580 = vpop.f32.mrb[0].mxu0
      %v581 = vadd.f32 %v388, %v580
      %v582 = vpop.f32.mrb[0].mxu0
      %v583 = vpop.f32.mrb[0].mxu0
      %v584 = vadd.f32 %v391, %v583
      %v585 = vpop.f32.mrb[0].mxu0
      %586 = vmatprep.mubr.bf16.mxu0 0
      %587 = vmatmul.mubr.bf16.gmra.mrb[0].mxu0 %v203
      %v588 = vpop.f32.mrb[0].mxu0
      %v589 = vadd.f32 %v396, %v588
      %v590 = vpop.f32.mrb[0].mxu0
      %v591 = vpop.f32.mrb[0].mxu0
      %v592 = vadd.f32 %v399, %v591
      %v593 = vpop.f32.mrb[0].mxu0
      %594 = vmatprep.mubr.bf16.mxu0 0
      %595 = vmatmul.mubr.bf16.gmra.mrb[0].mxu0 %v204
      %v596 = vpop.f32.mrb[0].mxu0
      %v597 = vadd.f32 %v404, %v596
      %v598 = vpop.f32.mrb[0].mxu0
      %v599 = vpop.f32.mrb[0].mxu0
      %v600 = vadd.f32 %v407, %v599
      %v601 = vpop.f32.mrb[0].mxu0
      %602 = vmatprep.mubr.bf16.mxu0 0
      %603 = vmatmul.mubr.bf16.gmra.mrb[0].mxu0 %v205
      %v604 = vpop.f32.mrb[0].mxu0
      %v605 = vadd.f32 %v412, %v604
      %v606 = vpop.f32.mrb[0].mxu0
      %v607 = vpop.f32.mrb[0].mxu0
      %v608 = vadd.f32 %v415, %v607
      %v609 = vpop.f32.mrb[0].mxu0
      %610 = vmatprep.mubr.bf16.mxu0 0
      %611 = vmatmul.mubr.bf16.gmra.mrb[0].mxu0 %v206
      %v612 = vpop.f32.mrb[0].mxu0
      %v613 = vadd.f32 %v420, %v612
      %v614 = vpop.f32.mrb[0].mxu0
      %v615 = vpop.f32.mrb[0].mxu0
      %v616 = vadd.f32 %v423, %v615
      %v617 = vpop.f32.mrb[0].mxu0
      %618 = vmatprep.mubr.bf16.mxu0 0
      %619 = vmatmul.mubr.bf16.gmra.mrb[0].mxu0 %v207
      %v620 = vpop.f32.mrb[0].mxu0
      %v621 = vadd.f32 %v428, %v620
      %v622 = vpop.f32.mrb[0].mxu0
      %v623 = vpop.f32.mrb[0].mxu0
      %v624 = vadd.f32 %v431, %v623
      %v625 = vpop.f32.mrb[0].mxu0
      %626 = vmatprep.mubr.bf16.mxu0 0
      %627 = vmatmul.mubr.bf16.gmra.mrb[0].mxu0 %v208
      %v628 = vpop.f32.mrb[0].mxu0
      %v629 = vadd.f32 %v436, %v628
      %v630 = vpop.f32.mrb[0].mxu0
      %v631 = vpop.f32.mrb[0].mxu0
      %v632 = vadd.f32 %v439, %v631
      %v633 = vpop.f32.mrb[0].mxu0
      %634 = vmatprep.mubr.bf16.mxu0 0
      %635 = vmatmul.mubr.bf16.gmra.mrb[0].mxu0 %v209
      %v636 = vpop.f32.mrb[0].mxu0
      %v637 = vadd.f32 %v444, %v636
      %v638 = vpop.f32.mrb[0].mxu0
      %v639 = vpop.f32.mrb[0].mxu0
      %v640 = vadd.f32 %v447, %v639
      %v641 = vpop.f32.mrb[0].mxu0
      %642 = vmatprep.mubr.bf16.mxu0 0
      %643 = vmatmul.mubr.bf16.gmra.mrb[0].mxu0 %v210
      %v644 = vpop.f32.mrb[0].mxu0
      %v645 = vadd.f32 %v452, %v644
      %v646 = vpop.f32.mrb[0].mxu0
      %v647 = vpop.f32.mrb[0].mxu0
      %v648 = vadd.f32 %v455, %v647
      %v649 = vpop.f32.mrb[0].mxu0
      %650 = vmatprep.mubr.bf16.mxu0 0
      %651 = vmatmul.mubr.bf16.gmra.mrb[0].mxu0 %v211
      %v652 = vpop.f32.mrb[0].mxu0
      %v653 = vadd.f32 %v460, %v652
      %v654 = vpop.f32.mrb[0].mxu0
      %v655 = vpop.f32.mrb[0].mxu0
      %v656 = vadd.f32 %v463, %v655
      %v657 = vpop.f32.mrb[0].mxu0
      %658 = vmatprep.mubr.bf16.mxu0 0
      %659 = vmatmul.mubr.bf16.gmra.mrb[0].mxu0 %v212
      %v660 = vpop.f32.mrb[0].mxu0
      %v661 = vadd.f32 %v468, %v660
      %v662 = vpop.f32.mrb[0].mxu0
      %v663 = vpop.f32.mrb[0].mxu0
      %v664 = vadd.f32 %v471, %v663
      %v665 = vpop.f32.mrb[0].mxu0
      %666 = vmatprep.mubr.bf16.mxu0 0
      %667 = vmatmul.mubr.bf16.gmra.mrb[0].mxu0 %v213
      %v668 = vpop.f32.mrb[0].mxu0
      %v669 = vadd.f32 %v476, %v668
      %v670 = vpop.f32.mrb[0].mxu0
      %v671 = vpop.f32.mrb[0].mxu0
      %v672 = vadd.f32 %v479, %v671
      %v673 = vpop.f32.mrb[0].mxu0
      %674 = vdwg.mxu0
      %v675 = vld [vmem:[%s165 + $0x2] sm:$0xff]
      %v676 = vld [vmem:[%s165 + $0xa] sm:$0xff]
      %v677 = vld [vmem:[%s165 + $0x12] sm:$0xff]
      %v678 = vld [vmem:[%s165 + $0x1a] sm:$0xff]
      %v679 = vld [vmem:[%s165 + $0x22] sm:$0xff]
      %v680 = vld [vmem:[%s165 + $0x2a] sm:$0xff]
      %v681 = vld [vmem:[%s165 + $0x32] sm:$0xff]
      %v682 = vld [vmem:[%s165 + $0x3a] sm:$0xff]
      %v683 = vld [vmem:[%s165 + $0x42] sm:$0xff]
      %v684 = vld [vmem:[%s165 + $0x4a] sm:$0xff]
      %v685 = vld [vmem:[%s165 + $0x52] sm:$0xff]
      %v686 = vld [vmem:[%s165 + $0x5a] sm:$0xff]
      %v687 = vld [vmem:[%s165 + $0x62] sm:$0xff]
      %v688 = vld [vmem:[%s165 + $0x6a] sm:$0xff]
      %v689 = vld [vmem:[%s165 + $0x72] sm:$0xff]
      %v690 = vld [vmem:[%s165 + $0x7a] sm:$0xff]
      %v691 = vld [vmem:[%s165 + $0x82] sm:$0xff]
      %v692 = vld [vmem:[%s165 + $0x8a] sm:$0xff]
      %v693 = vld [vmem:[%s165 + $0x92] sm:$0xff]
      %v694 = vld [vmem:[%s165 + $0x9a] sm:$0xff]
      %v695 = vld [vmem:[%s165 + $0xa2] sm:$0xff]
      %v696 = vld [vmem:[%s165 + $0xaa] sm:$0xff]
      %v697 = vld [vmem:[%s165 + $0xb2] sm:$0xff]
      %v698 = vld [vmem:[%s165 + $0xba] sm:$0xff]
      %v699 = vld [vmem:[%s165 + $0xc2] sm:$0xff]
      %v700 = vld [vmem:[%s165 + $0xca] sm:$0xff]
      %v701 = vld [vmem:[%s165 + $0xd2] sm:$0xff]
      %v702 = vld [vmem:[%s165 + $0xda] sm:$0xff]
      %v703 = vpack.c.bf16 %v676, %v675
      %v704 = vpack.c.bf16 %v678, %v677
      %v705 = vpack.c.bf16 %v680, %v679
      %v706 = vpack.c.bf16 %v682, %v681
      %v707 = vpack.c.bf16 %v684, %v683
      %v708 = vpack.c.bf16 %v686, %v685
      %v709 = vpack.c.bf16 %v688, %v687
      %v710 = vpack.c.bf16 %v690, %v689
      %v711 = vpack.c.bf16 %v692, %v691
      %v712 = vpack.c.bf16 %v694, %v693
      %v713 = vpack.c.bf16 %v696, %v695
      %v714 = vpack.c.bf16 %v698, %v697
      %v715 = vpack.c.bf16 %v700, %v699
      %v716 = vpack.c.bf16 %v702, %v701
      %s717 = scalar_lea.vmem %s1, 128
      %v718 = vld [vmem:[%s717] sm:$0xf]
      %v719 = vld [vmem:[%s717 + $0x4] sm:$0xf]
      %v720 = vld [vmem:[%s717 + $0x8] sm:$0xf]
      %v721 = vld [vmem:[%s717 + $0xc] sm:$0xf]
      %v722 = vld [vmem:[%s717 + $0x10] sm:$0xf]
      %v723 = vld [vmem:[%s717 + $0x14] sm:$0xf]
      %v724 = vld [vmem:[%s717 + $0x18] sm:$0xf]
      %v725 = vld [vmem:[%s717 + $0x1c] sm:$0xf]
      %v726 = vld [vmem:[%s717 + $0x20] sm:$0xf]
      %v727 = vld [vmem:[%s717 + $0x24] sm:$0xf]
      %v728 = vld [vmem:[%s717 + $0x28] sm:$0xf]
      %v729 = vld [vmem:[%s717 + $0x2c] sm:$0xf]
      %v730 = vld [vmem:[%s717 + $0x30] sm:$0xf]
      %v731 = vld [vmem:[%s717 + $0x34] sm:$0xf]
      %v732 = vld [vmem:[%s717 + $0x38] sm:$0xf]
      %v733 = vld [vmem:[%s717 + $0x3c] sm:$0xf]
      %v750 = vunpack.c.l.b16 %v718
      %v751 = vunpack.c.l.b16 %v719
      %v752 = vunpack.c.l.b16 %v720
      %v753 = vunpack.c.l.b16 %v721
      %v754 = vunpack.c.l.b16 %v722
      %v755 = vunpack.c.l.b16 %v723
      %v756 = vunpack.c.l.b16 %v724
      %v757 = vunpack.c.l.b16 %v725
      %v758 = vunpack.c.l.b16 %v726
      %v759 = vunpack.c.l.b16 %v727
      %v760 = vunpack.c.l.b16 %v728
      %v761 = vunpack.c.l.b16 %v729
      %v762 = vunpack.c.l.b16 %v730
      %v763 = vunpack.c.l.b16 %v731
      %v764 = vunpack.c.l.b16 %v732
      %v765 = vunpack.c.l.b16 %v733
      %v766 = vpack.c.b16 %v751, %v750
      %v767 = vpack.c.b16 %v753, %v752
      %v768 = vpack.c.b16 %v755, %v754
      %v769 = vpack.c.b16 %v757, %v756
      %v770 = vpack.c.b16 %v759, %v758
      %v771 = vpack.c.b16 %v761, %v760
      %v772 = vpack.c.b16 %v763, %v762
      %v773 = vpack.c.b16 %v765, %v764
      %782 = vmatprep.subr.bf16.mxu0 0
      %783 = vmatpush1.bf16.msra.mxu0 %v766
      %784 = vmatprep.subr.bf16.mxu0 0
      %785 = vmatpush1.bf16.msra.mxu0 %v767
      %786 = vmatprep.subr.bf16.mxu0 0
      %787 = vmatpush1.bf16.msra.mxu0 %v768
      %788 = vmatprep.subr.bf16.mxu0 0
      %789 = vmatpush1.bf16.msra.mxu0 %v769
      %790 = vmatprep.subr.bf16.mxu0 0
      %791 = vmatpush1.bf16.msra.mxu0 %v770
      %792 = vmatprep.subr.bf16.mxu0 0
      %793 = vmatpush1.bf16.msra.mxu0 %v771
      %794 = vmatprep.subr.bf16.mxu0 0
      %795 = vmatpush1.bf16.msra.mxu0 %v772
      %796 = vmatprep.subr.bf16.mxu0 0
      %797 = vmatpush1.bf16.msra.mxu0 %v773
      %798 = vmatprep.subr.bf16.mxu0 0
      %799 = vmatpush1.bf16.msra.mxu0 0
      %800 = vmatprep.subr.bf16.mxu0 0
      %801 = vmatpush1.bf16.msra.mxu0 0
      %802 = vmatprep.subr.bf16.mxu0 0
      %803 = vmatpush1.bf16.msra.mxu0 0
      %804 = vmatprep.subr.bf16.mxu0 0
      %805 = vmatpush1.bf16.msra.mxu0 0
      %806 = vmatprep.subr.bf16.mxu0 0
      %807 = vmatpush1.bf16.msra.mxu0 0
      %808 = vmatprep.subr.bf16.mxu0 0
      %809 = vmatpush1.bf16.msra.mxu0 0
      %810 = vmatprep.subr.bf16.mxu0 0
      %811 = vmatpush1.bf16.msra.mxu0 0
      %812 = vmatprep.subr.bf16.mxu0 0
      %813 = vmatpush1.bf16.msra.mxu0 0
      %814 = vmatprep.mubr.bf16.mxu0 0
      %815 = vmatmul.mubr.bf16.gmra.mrb[0].mxu0 %v703
      %v816 = vpop.f32.mrb[0].mxu0
      %v817 = vadd.f32 0.0, %v816
      %v818 = vpop.f32.mrb[0].mxu0
      %v819 = vpop.f32.mrb[0].mxu0
      %v820 = vadd.f32 0.0, %v819
      %v821 = vpop.f32.mrb[0].mxu0
      %822 = vmatprep.mubr.bf16.mxu0 0
      %823 = vmatmul.mubr.bf16.gmra.mrb[0].mxu0 %v704
      %v824 = vpop.f32.mrb[0].mxu0
      %v825 = vadd.f32 0.0, %v824
      %v826 = vpop.f32.mrb[0].mxu0
      %v827 = vpop.f32.mrb[0].mxu0
      %v828 = vadd.f32 0.0, %v827
      %v829 = vpop.f32.mrb[0].mxu0
      %830 = vmatprep.mubr.bf16.mxu0 0
      %831 = vmatmul.mubr.bf16.gmra.mrb[0].mxu0 %v705
      %v832 = vpop.f32.mrb[0].mxu0
      %v833 = vadd.f32 0.0, %v832
      %v834 = vpop.f32.mrb[0].mxu0
      %v835 = vpop.f32.mrb[0].mxu0
      %v836 = vadd.f32 0.0, %v835
      %v837 = vpop.f32.mrb[0].mxu0
      %838 = vmatprep.mubr.bf16.mxu0 0
      %839 = vmatmul.mubr.bf16.gmra.mrb[0].mxu0 %v706
      %v840 = vpop.f32.mrb[0].mxu0
      %v841 = vadd.f32 0.0, %v840
      %v842 = vpop.f32.mrb[0].mxu0
      %v843 = vpop.f32.mrb[0].mxu0
      %v844 = vadd.f32 0.0, %v843
      %v845 = vpop.f32.mrb[0].mxu0
      %846 = vmatprep.mubr.bf16.mxu0 0
      %847 = vmatmul.mubr.bf16.gmra.mrb[0].mxu0 %v707
      %v848 = vpop.f32.mrb[0].mxu0
      %v849 = vadd.f32 0.0, %v848
      %v850 = vpop.f32.mrb[0].mxu0
      %v851 = vpop.f32.mrb[0].mxu0
      %v852 = vadd.f32 0.0, %v851
      %v853 = vpop.f32.mrb[0].mxu0
      %854 = vmatprep.mubr.bf16.mxu0 0
      %855 = vmatmul.mubr.bf16.gmra.mrb[0].mxu0 %v708
      %v856 = vpop.f32.mrb[0].mxu0
      %v857 = vadd.f32 0.0, %v856
      %v858 = vpop.f32.mrb[0].mxu0
      %v859 = vpop.f32.mrb[0].mxu0
      %v860 = vadd.f32 0.0, %v859
      %v861 = vpop.f32.mrb[0].mxu0
      %862 = vmatprep.mubr.bf16.mxu0 0
      %863 = vmatmul.mubr.bf16.gmra.mrb[0].mxu0 %v709
      %v864 = vpop.f32.mrb[0].mxu0
      %v865 = vadd.f32 0.0, %v864
      %v866 = vpop.f32.mrb[0].mxu0
      %v867 = vpop.f32.mrb[0].mxu0
      %v868 = vadd.f32 0.0, %v867
      %v869 = vpop.f32.mrb[0].mxu0
      %870 = vmatprep.mubr.bf16.mxu0 0
      %871 = vmatmul.mubr.bf16.gmra.mrb[0].mxu0 %v710
      %v872 = vpop.f32.mrb[0].mxu0
      %v873 = vadd.f32 0.0, %v872
      %v874 = vpop.f32.mrb[0].mxu0
      %v875 = vpop.f32.mrb[0].mxu0
      %v876 = vadd.f32 0.0, %v875
      %v877 = vpop.f32.mrb[0].mxu0
      %878 = vmatprep.mubr.bf16.mxu0 0
      %879 = vmatmul.mubr.bf16.gmra.mrb[0].mxu0 %v711
      %v880 = vpop.f32.mrb[0].mxu0
      %v881 = vadd.f32 0.0, %v880
      %v882 = vpop.f32.mrb[0].mxu0
      %v883 = vpop.f32.mrb[0].mxu0
      %v884 = vadd.f32 0.0, %v883
      %v885 = vpop.f32.mrb[0].mxu0
      %886 = vmatprep.mubr.bf16.mxu0 0
      %887 = vmatmul.mubr.bf16.gmra.mrb[0].mxu0 %v712
      %v888 = vpop.f32.mrb[0].mxu0
      %v889 = vadd.f32 0.0, %v888
      %v890 = vpop.f32.mrb[0].mxu0
      %v891 = vpop.f32.mrb[0].mxu0
      %v892 = vadd.f32 0.0, %v891
      %v893 = vpop.f32.mrb[0].mxu0
      %894 = vmatprep.mubr.bf16.mxu0 0
      %895 = vmatmul.mubr.bf16.gmra.mrb[0].mxu0 %v713
      %v896 = vpop.f32.mrb[0].mxu0
      %v897 = vadd.f32 0.0, %v896
      %v898 = vpop.f32.mrb[0].mxu0
      %v899 = vpop.f32.mrb[0].mxu0
      %v900 = vadd.f32 0.0, %v899
      %v901 = vpop.f32.mrb[0].mxu0
      %902 = vmatprep.mubr.bf16.mxu0 0
      %903 = vmatmul.mubr.bf16.gmra.mrb[0].mxu0 %v714
      %v904 = vpop.f32.mrb[0].mxu0
      %v905 = vadd.f32 0.0, %v904
      %v906 = vpop.f32.mrb[0].mxu0
      %v907 = vpop.f32.mrb[0].mxu0
      %v908 = vadd.f32 0.0, %v907
      %v909 = vpop.f32.mrb[0].mxu0
      %910 = vmatprep.mubr.bf16.mxu0 0
      %911 = vmatmul.mubr.bf16.gmra.mrb[0].mxu0 %v715
      %v912 = vpop.f32.mrb[0].mxu0
      %v913 = vadd.f32 0.0, %v912
      %v914 = vpop.f32.mrb[0].mxu0
      %v915 = vpop.f32.mrb[0].mxu0
      %v916 = vadd.f32 0.0, %v915
      %v917 = vpop.f32.mrb[0].mxu0
      %918 = vmatprep.mubr.bf16.mxu0 0
      %919 = vmatmul.mubr.bf16.gmra.mrb[0].mxu0 %v716
      %v920 = vpop.f32.mrb[0].mxu0
      %v921 = vadd.f32 0.0, %v920
      %v922 = vpop.f32.mrb[0].mxu0
      %v923 = vpop.f32.mrb[0].mxu0
      %v924 = vadd.f32 0.0, %v923
      %v925 = vpop.f32.mrb[0].mxu0
      %926 = vdwg.mxu0
      %v927 = vadd.f32 %v565, %v817
      %v928 = vadd.f32 %v568, %v820
      %v929 = vadd.f32 %v573, %v825
      %v930 = vadd.f32 %v576, %v828
      %v931 = vadd.f32 %v581, %v833
      %v932 = vadd.f32 %v584, %v836
      %v933 = vadd.f32 %v589, %v841
      %v934 = vadd.f32 %v592, %v844
      %v935 = vadd.f32 %v597, %v849
      %v936 = vadd.f32 %v600, %v852
      %v937 = vadd.f32 %v605, %v857
      %v938 = vadd.f32 %v608, %v860
      %v939 = vadd.f32 %v613, %v865
      %v940 = vadd.f32 %v616, %v868
      %v941 = vadd.f32 %v621, %v873
      %v942 = vadd.f32 %v624, %v876
      %v943 = vadd.f32 %v629, %v881
      %v944 = vadd.f32 %v632, %v884
      %v945 = vadd.f32 %v637, %v889
      %v946 = vadd.f32 %v640, %v892
      %v947 = vadd.f32 %v645, %v897
      %v948 = vadd.f32 %v648, %v900
      %v949 = vadd.f32 %v653, %v905
      %v950 = vadd.f32 %v656, %v908
      %v951 = vadd.f32 %v661, %v913
      %v952 = vadd.f32 %v664, %v916
      %v953 = vadd.f32 %v669, %v921
      %v954 = vadd.f32 %v672, %v924
      %v955 = vld [vmem:[%s165 + $0x10] sm:$0xff]
      %v956 = vld [vmem:[%s165 + $0x18] sm:$0xff]
      %v957 = vld [vmem:[%s165 + $0x20] sm:$0xff]
      %v958 = vld [vmem:[%s165 + $0x28] sm:$0xff]
      %v959 = vld [vmem:[%s165 + $0x30] sm:$0xff]
      %v960 = vld [vmem:[%s165 + $0x38] sm:$0xff]
      %v961 = vld [vmem:[%s165 + $0x40] sm:$0xff]
      %v962 = vld [vmem:[%s165 + $0x48] sm:$0xff]
      %v963 = vld [vmem:[%s165 + $0x50] sm:$0xff]
      %v964 = vld [vmem:[%s165 + $0x58] sm:$0xff]
      %v965 = vld [vmem:[%s165 + $0x60] sm:$0xff]
      %v966 = vld [vmem:[%s165 + $0x68] sm:$0xff]
      %v967 = vld [vmem:[%s165 + $0x70] sm:$0xff]
      %v968 = vld [vmem:[%s165 + $0x78] sm:$0xff]
      %v969 = vld [vmem:[%s165 + $0x80] sm:$0xff]
      %v970 = vld [vmem:[%s165 + $0x88] sm:$0xff]
      %v971 = vld [vmem:[%s165 + $0x90] sm:$0xff]
      %v972 = vld [vmem:[%s165 + $0x98] sm:$0xff]
      %v973 = vld [vmem:[%s165 + $0xa0] sm:$0xff]
      %v974 = vld [vmem:[%s165 + $0xa8] sm:$0xff]
      %v975 = vld [vmem:[%s165 + $0xb0] sm:$0xff]
      %v976 = vld [vmem:[%s165 + $0xb8] sm:$0xff]
      %v977 = vld [vmem:[%s165 + $0xc0] sm:$0xff]
      %v978 = vld [vmem:[%s165 + $0xc8] sm:$0xff]
      %v979 = vld [vmem:[%s165 + $0xd0] sm:$0xff]
      %v980 = vld [vmem:[%s165 + $0xd8] sm:$0xff]
      %v981 = vld [vmem:[%s165 + $0xe0] sm:$0xff]
      %v982 = vld [vmem:[%s165 + $0xe8] sm:$0xff]
      %v983 = vpack.c.bf16 %v956, %v955
      %v984 = vpack.c.bf16 %v958, %v957
      %v985 = vpack.c.bf16 %v960, %v959
      %v986 = vpack.c.bf16 %v962, %v961
      %v987 = vpack.c.bf16 %v964, %v963
      %v988 = vpack.c.bf16 %v966, %v965
      %v989 = vpack.c.bf16 %v968, %v967
      %v990 = vpack.c.bf16 %v970, %v969
      %v991 = vpack.c.bf16 %v972, %v971
      %v992 = vpack.c.bf16 %v974, %v973
      %v993 = vpack.c.bf16 %v976, %v975
      %v994 = vpack.c.bf16 %v978, %v977
      %v995 = vpack.c.bf16 %v980, %v979
      %v996 = vpack.c.bf16 %v982, %v981
      %s997 = scalar_lea.vmem %s1, 192
      %v998 = vld [vmem:[%s997] sm:$0xf]
      %v999 = vld [vmem:[%s997 + $0x4] sm:$0xf]
      %v1000 = vld [vmem:[%s997 + $0x8] sm:$0xf]
      %v1001 = vld [vmem:[%s997 + $0xc] sm:$0xf]
      %v1002 = vld [vmem:[%s997 + $0x10] sm:$0xf]
      %v1003 = vld [vmem:[%s997 + $0x14] sm:$0xf]
      %v1004 = vld [vmem:[%s997 + $0x18] sm:$0xf]
      %v1005 = vld [vmem:[%s997 + $0x1c] sm:$0xf]
      %v1006 = vld [vmem:[%s997 + $0x20] sm:$0xf]
      %v1007 = vld [vmem:[%s997 + $0x24] sm:$0xf]
      %v1008 = vld [vmem:[%s997 + $0x28] sm:$0xf]
      %v1009 = vld [vmem:[%s997 + $0x2c] sm:$0xf]
      %v1010 = vld [vmem:[%s997 + $0x30] sm:$0xf]
      %v1011 = vld [vmem:[%s997 + $0x34] sm:$0xf]
      %v1012 = vld [vmem:[%s997 + $0x38] sm:$0xf]
      %v1013 = vld [vmem:[%s997 + $0x3c] sm:$0xf]
      %v1030 = vunpack.c.l.b16 %v998
      %v1031 = vunpack.c.l.b16 %v999
      %v1032 = vunpack.c.l.b16 %v1000
      %v1033 = vunpack.c.l.b16 %v1001
      %v1034 = vunpack.c.l.b16 %v1002
      %v1035 = vunpack.c.l.b16 %v1003
      %v1036 = vunpack.c.l.b16 %v1004
      %v1037 = vunpack.c.l.b16 %v1005
      %v1038 = vunpack.c.l.b16 %v1006
      %v1039 = vunpack.c.l.b16 %v1007
      %v1040 = vunpack.c.l.b16 %v1008
      %v1041 = vunpack.c.l.b16 %v1009
      %v1042 = vunpack.c.l.b16 %v1010
      %v1043 = vunpack.c.l.b16 %v1011
      %v1044 = vunpack.c.l.b16 %v1012
      %v1045 = vunpack.c.l.b16 %v1013
      %v1046 = vpack.c.b16 %v1031, %v1030
      %v1047 = vpack.c.b16 %v1033, %v1032
      %v1048 = vpack.c.b16 %v1035, %v1034
      %v1049 = vpack.c.b16 %v1037, %v1036
      %v1050 = vpack.c.b16 %v1039, %v1038
      %v1051 = vpack.c.b16 %v1041, %v1040
      %v1052 = vpack.c.b16 %v1043, %v1042
      %v1053 = vpack.c.b16 %v1045, %v1044
      %1062 = vmatprep.subr.bf16.mxu0 0
      %1063 = vmatpush1.bf16.msra.mxu0 %v1046
      %1064 = vmatprep.subr.bf16.mxu0 0
      %1065 = vmatpush1.bf16.msra.mxu0 %v1047
      %1066 = vmatprep.subr.bf16.mxu0 0
      %1067 = vmatpush1.bf16.msra.mxu0 %v1048
      %1068 = vmatprep.subr.bf16.mxu0 0
      %1069 = vmatpush1.bf16.msra.mxu0 %v1049
      %1070 = vmatprep.subr.bf16.mxu0 0
      %1071 = vmatpush1.bf16.msra.mxu0 %v1050
      %1072 = vmatprep.subr.bf16.mxu0 0
      %1073 = vmatpush1.bf16.msra.mxu0 %v1051
      %1074 = vmatprep.subr.bf16.mxu0 0
      %1075 = vmatpush1.bf16.msra.mxu0 %v1052
      %1076 = vmatprep.subr.bf16.mxu0 0
      %1077 = vmatpush1.bf16.msra.mxu0 %v1053
      %1078 = vmatprep.subr.bf16.mxu0 0
      %1079 = vmatpush1.bf16.msra.mxu0 0
      %1080 = vmatprep.subr.bf16.mxu0 0
      %1081 = vmatpush1.bf16.msra.mxu0 0
      %1082 = vmatprep.subr.bf16.mxu0 0
      %1083 = vmatpush1.bf16.msra.mxu0 0
      %1084 = vmatprep.subr.bf16.mxu0 0
      %1085 = vmatpush1.bf16.msra.mxu0 0
      %1086 = vmatprep.subr.bf16.mxu0 0
      %1087 = vmatpush1.bf16.msra.mxu0 0
      %1088 = vmatprep.subr.bf16.mxu0 0
      %1089 = vmatpush1.bf16.msra.mxu0 0
      %1090 = vmatprep.subr.bf16.mxu0 0
      %1091 = vmatpush1.bf16.msra.mxu0 0
      %1092 = vmatprep.subr.bf16.mxu0 0
      %1093 = vmatpush1.bf16.msra.mxu0 0
      %1094 = vmatprep.mubr.bf16.mxu0 0
      %1095 = vmatmul.mubr.bf16.gmra.mrb[0].mxu0 %v983
      %v1096 = vpop.f32.mrb[0].mxu0
      %v1097 = vadd.f32 0.0, %v1096
      %v1098 = vpop.f32.mrb[0].mxu0
      %v1099 = vpop.f32.mrb[0].mxu0
      %v1100 = vadd.f32 0.0, %v1099
      %v1101 = vpop.f32.mrb[0].mxu0
      %1102 = vmatprep.mubr.bf16.mxu0 0
      %1103 = vmatmul.mubr.bf16.gmra.mrb[0].mxu0 %v984
      %v1104 = vpop.f32.mrb[0].mxu0
      %v1105 = vadd.f32 0.0, %v1104
      %v1106 = vpop.f32.mrb[0].mxu0
      %v1107 = vpop.f32.mrb[0].mxu0
      %v1108 = vadd.f32 0.0, %v1107
      %v1109 = vpop.f32.mrb[0].mxu0
      %1110 = vmatprep.mubr.bf16.mxu0 0
      %1111 = vmatmul.mubr.bf16.gmra.mrb[0].mxu0 %v985
      %v1112 = vpop.f32.mrb[0].mxu0
      %v1113 = vadd.f32 0.0, %v1112
      %v1114 = vpop.f32.mrb[0].mxu0
      %v1115 = vpop.f32.mrb[0].mxu0
      %v1116 = vadd.f32 0.0, %v1115
      %v1117 = vpop.f32.mrb[0].mxu0
      %1118 = vmatprep.mubr.bf16.mxu0 0
      %1119 = vmatmul.mubr.bf16.gmra.mrb[0].mxu0 %v986
      %v1120 = vpop.f32.mrb[0].mxu0
      %v1121 = vadd.f32 0.0, %v1120
      %v1122 = vpop.f32.mrb[0].mxu0
      %v1123 = vpop.f32.mrb[0].mxu0
      %v1124 = vadd.f32 0.0, %v1123
      %v1125 = vpop.f32.mrb[0].mxu0
      %1126 = vmatprep.mubr.bf16.mxu0 0
      %1127 = vmatmul.mubr.bf16.gmra.mrb[0].mxu0 %v987
      %v1128 = vpop.f32.mrb[0].mxu0
      %v1129 = vadd.f32 0.0, %v1128
      %v1130 = vpop.f32.mrb[0].mxu0
      %v1131 = vpop.f32.mrb[0].mxu0
      %v1132 = vadd.f32 0.0, %v1131
      %v1133 = vpop.f32.mrb[0].mxu0
      %1134 = vmatprep.mubr.bf16.mxu0 0
      %1135 = vmatmul.mubr.bf16.gmra.mrb[0].mxu0 %v988
      %v1136 = vpop.f32.mrb[0].mxu0
      %v1137 = vadd.f32 0.0, %v1136
      %v1138 = vpop.f32.mrb[0].mxu0
      %v1139 = vpop.f32.mrb[0].mxu0
      %v1140 = vadd.f32 0.0, %v1139
      %v1141 = vpop.f32.mrb[0].mxu0
      %1142 = vmatprep.mubr.bf16.mxu0 0
      %1143 = vmatmul.mubr.bf16.gmra.mrb[0].mxu0 %v989
      %v1144 = vpop.f32.mrb[0].mxu0
      %v1145 = vadd.f32 0.0, %v1144
      %v1146 = vpop.f32.mrb[0].mxu0
      %v1147 = vpop.f32.mrb[0].mxu0
      %v1148 = vadd.f32 0.0, %v1147
      %v1149 = vpop.f32.mrb[0].mxu0
      %1150 = vmatprep.mubr.bf16.mxu0 0
      %1151 = vmatmul.mubr.bf16.gmra.mrb[0].mxu0 %v990
      %v1152 = vpop.f32.mrb[0].mxu0
      %v1153 = vadd.f32 0.0, %v1152
      %v1154 = vpop.f32.mrb[0].mxu0
      %v1155 = vpop.f32.mrb[0].mxu0
      %v1156 = vadd.f32 0.0, %v1155
      %v1157 = vpop.f32.mrb[0].mxu0
      %1158 = vmatprep.mubr.bf16.mxu0 0
      %1159 = vmatmul.mubr.bf16.gmra.mrb[0].mxu0 %v991
      %v1160 = vpop.f32.mrb[0].mxu0
      %v1161 = vadd.f32 0.0, %v1160
      %v1162 = vpop.f32.mrb[0].mxu0
      %v1163 = vpop.f32.mrb[0].mxu0
      %v1164 = vadd.f32 0.0, %v1163
      %v1165 = vpop.f32.mrb[0].mxu0
      %1166 = vmatprep.mubr.bf16.mxu0 0
      %1167 = vmatmul.mubr.bf16.gmra.mrb[0].mxu0 %v992
      %v1168 = vpop.f32.mrb[0].mxu0
      %v1169 = vadd.f32 0.0, %v1168
      %v1170 = vpop.f32.mrb[0].mxu0
      %v1171 = vpop.f32.mrb[0].mxu0
      %v1172 = vadd.f32 0.0, %v1171
      %v1173 = vpop.f32.mrb[0].mxu0
      %1174 = vmatprep.mubr.bf16.mxu0 0
      %1175 = vmatmul.mubr.bf16.gmra.mrb[0].mxu0 %v993
      %v1176 = vpop.f32.mrb[0].mxu0
      %v1177 = vadd.f32 0.0, %v1176
      %v1178 = vpop.f32.mrb[0].mxu0
      %v1179 = vpop.f32.mrb[0].mxu0
      %v1180 = vadd.f32 0.0, %v1179
      %v1181 = vpop.f32.mrb[0].mxu0
      %1182 = vmatprep.mubr.bf16.mxu0 0
      %1183 = vmatmul.mubr.bf16.gmra.mrb[0].mxu0 %v994
      %v1184 = vpop.f32.mrb[0].mxu0
      %v1185 = vadd.f32 0.0, %v1184
      %v1186 = vpop.f32.mrb[0].mxu0
      %v1187 = vpop.f32.mrb[0].mxu0
      %v1188 = vadd.f32 0.0, %v1187
      %v1189 = vpop.f32.mrb[0].mxu0
      %1190 = vmatprep.mubr.bf16.mxu0 0
      %1191 = vmatmul.mubr.bf16.gmra.mrb[0].mxu0 %v995
      %v1192 = vpop.f32.mrb[0].mxu0
      %v1193 = vadd.f32 0.0, %v1192
      %v1194 = vpop.f32.mrb[0].mxu0
      %v1195 = vpop.f32.mrb[0].mxu0
      %v1196 = vadd.f32 0.0, %v1195
      %v1197 = vpop.f32.mrb[0].mxu0
      %1198 = vmatprep.mubr.bf16.mxu0 0
      %1199 = vmatmul.mubr.bf16.gmra.mrb[0].mxu0 %v996
      %v1200 = vpop.f32.mrb[0].mxu0
      %v1201 = vadd.f32 0.0, %v1200
      %v1202 = vpop.f32.mrb[0].mxu0
      %v1203 = vpop.f32.mrb[0].mxu0
      %v1204 = vadd.f32 0.0, %v1203
      %v1205 = vpop.f32.mrb[0].mxu0
      %1206 = vdwg.mxu0
      %v1207 = vadd.f32 %v927, %v1097
      %v1208 = vadd.f32 %v928, %v1100
      %v1209 = vadd.f32 %v929, %v1105
      %v1210 = vadd.f32 %v930, %v1108
      %v1211 = vadd.f32 %v931, %v1113
      %v1212 = vadd.f32 %v932, %v1116
      %v1213 = vadd.f32 %v933, %v1121
      %v1214 = vadd.f32 %v934, %v1124
      %v1215 = vadd.f32 %v935, %v1129
      %v1216 = vadd.f32 %v936, %v1132
      %v1217 = vadd.f32 %v937, %v1137
      %v1218 = vadd.f32 %v938, %v1140
      %v1219 = vadd.f32 %v939, %v1145
      %v1220 = vadd.f32 %v940, %v1148
      %v1221 = vadd.f32 %v941, %v1153
      %v1222 = vadd.f32 %v942, %v1156
      %v1223 = vadd.f32 %v943, %v1161
      %v1224 = vadd.f32 %v944, %v1164
      %v1225 = vadd.f32 %v945, %v1169
      %v1226 = vadd.f32 %v946, %v1172
      %v1227 = vadd.f32 %v947, %v1177
      %v1228 = vadd.f32 %v948, %v1180
      %v1229 = vadd.f32 %v949, %v1185
      %v1230 = vadd.f32 %v950, %v1188
      %v1231 = vadd.f32 %v951, %v1193
      %v1232 = vadd.f32 %v952, %v1196
      %v1233 = vadd.f32 %v953, %v1201
      %v1234 = vadd.f32 %v954, %v1204
      %v1235 = vld [vmem:[%s165 + $0x11] sm:$0xff]
      %v1236 = vld [vmem:[%s165 + $0x19] sm:$0xff]
      %v1237 = vld [vmem:[%s165 + $0x21] sm:$0xff]
      %v1238 = vld [vmem:[%s165 + $0x29] sm:$0xff]
      %v1239 = vld [vmem:[%s165 + $0x31] sm:$0xff]
      %v1240 = vld [vmem:[%s165 + $0x39] sm:$0xff]
      %v1241 = vld [vmem:[%s165 + $0x41] sm:$0xff]
      %v1242 = vld [vmem:[%s165 + $0x49] sm:$0xff]
      %v1243 = vld [vmem:[%s165 + $0x51] sm:$0xff]
      %v1244 = vld [vmem:[%s165 + $0x59] sm:$0xff]
      %v1245 = vld [vmem:[%s165 + $0x61] sm:$0xff]
      %v1246 = vld [vmem:[%s165 + $0x69] sm:$0xff]
      %v1247 = vld [vmem:[%s165 + $0x71] sm:$0xff]
      %v1248 = vld [vmem:[%s165 + $0x79] sm:$0xff]
      %v1249 = vld [vmem:[%s165 + $0x81] sm:$0xff]
      %v1250 = vld [vmem:[%s165 + $0x89] sm:$0xff]
      %v1251 = vld [vmem:[%s165 + $0x91] sm:$0xff]
      %v1252 = vld [vmem:[%s165 + $0x99] sm:$0xff]
      %v1253 = vld [vmem:[%s165 + $0xa1] sm:$0xff]
      %v1254 = vld [vmem:[%s165 + $0xa9] sm:$0xff]
      %v1255 = vld [vmem:[%s165 + $0xb1] sm:$0xff]
      %v1256 = vld [vmem:[%s165 + $0xb9] sm:$0xff]
      %v1257 = vld [vmem:[%s165 + $0xc1] sm:$0xff]
      %v1258 = vld [vmem:[%s165 + $0xc9] sm:$0xff]
      %v1259 = vld [vmem:[%s165 + $0xd1] sm:$0xff]
      %v1260 = vld [vmem:[%s165 + $0xd9] sm:$0xff]
      %v1261 = vld [vmem:[%s165 + $0xe1] sm:$0xff]
      %v1262 = vld [vmem:[%s165 + $0xe9] sm:$0xff]
      %v1263 = vpack.c.bf16 %v1236, %v1235
      %v1264 = vpack.c.bf16 %v1238, %v1237
      %v1265 = vpack.c.bf16 %v1240, %v1239
      %v1266 = vpack.c.bf16 %v1242, %v1241
      %v1267 = vpack.c.bf16 %v1244, %v1243
      %v1268 = vpack.c.bf16 %v1246, %v1245
      %v1269 = vpack.c.bf16 %v1248, %v1247
      %v1270 = vpack.c.bf16 %v1250, %v1249
      %v1271 = vpack.c.bf16 %v1252, %v1251
      %v1272 = vpack.c.bf16 %v1254, %v1253
      %v1273 = vpack.c.bf16 %v1256, %v1255
      %v1274 = vpack.c.bf16 %v1258, %v1257
      %v1275 = vpack.c.bf16 %v1260, %v1259
      %v1276 = vpack.c.bf16 %v1262, %v1261
      %s1277 = scalar_lea.vmem %s1, 256
      %v1278 = vld [vmem:[%s1277] sm:$0xf]
      %v1279 = vld [vmem:[%s1277 + $0x4] sm:$0xf]
      %v1280 = vld [vmem:[%s1277 + $0x8] sm:$0xf]
      %v1281 = vld [vmem:[%s1277 + $0xc] sm:$0xf]
      %v1282 = vld [vmem:[%s1277 + $0x10] sm:$0xf]
      %v1283 = vld [vmem:[%s1277 + $0x14] sm:$0xf]
      %v1284 = vld [vmem:[%s1277 + $0x18] sm:$0xf]
      %v1285 = vld [vmem:[%s1277 + $0x1c] sm:$0xf]
      %v1286 = vld [vmem:[%s1277 + $0x20] sm:$0xf]
      %v1287 = vld [vmem:[%s1277 + $0x24] sm:$0xf]
      %v1288 = vld [vmem:[%s1277 + $0x28] sm:$0xf]
      %v1289 = vld [vmem:[%s1277 + $0x2c] sm:$0xf]
      %v1290 = vld [vmem:[%s1277 + $0x30] sm:$0xf]
      %v1291 = vld [vmem:[%s1277 + $0x34] sm:$0xf]
      %v1292 = vld [vmem:[%s1277 + $0x38] sm:$0xf]
      %v1293 = vld [vmem:[%s1277 + $0x3c] sm:$0xf]
      %v1310 = vunpack.c.l.b16 %v1278
      %v1311 = vunpack.c.l.b16 %v1279
      %v1312 = vunpack.c.l.b16 %v1280
      %v1313 = vunpack.c.l.b16 %v1281
      %v1314 = vunpack.c.l.b16 %v1282
      %v1315 = vunpack.c.l.b16 %v1283
      %v1316 = vunpack.c.l.b16 %v1284
      %v1317 = vunpack.c.l.b16 %v1285
      %v1318 = vunpack.c.l.b16 %v1286
      %v1319 = vunpack.c.l.b16 %v1287
      %v1320 = vunpack.c.l.b16 %v1288
      %v1321 = vunpack.c.l.b16 %v1289
      %v1322 = vunpack.c.l.b16 %v1290
      %v1323 = vunpack.c.l.b16 %v1291
      %v1324 = vunpack.c.l.b16 %v1292
      %v1325 = vunpack.c.l.b16 %v1293
      %v1326 = vpack.c.b16 %v1311, %v1310
      %v1327 = vpack.c.b16 %v1313, %v1312
      %v1328 = vpack.c.b16 %v1315, %v1314
      %v1329 = vpack.c.b16 %v1317, %v1316
      %v1330 = vpack.c.b16 %v1319, %v1318
      %v1331 = vpack.c.b16 %v1321, %v1320
      %v1332 = vpack.c.b16 %v1323, %v1322
      %v1333 = vpack.c.b16 %v1325, %v1324
      %1342 = vmatprep.subr.bf16.mxu0 0
      %1343 = vmatpush1.bf16.msra.mxu0 %v1326
      %1344 = vmatprep.subr.bf16.mxu0 0
      %1345 = vmatpush1.bf16.msra.mxu0 %v1327
      %1346 = vmatprep.subr.bf16.mxu0 0
      %1347 = vmatpush1.bf16.msra.mxu0 %v1328
      %1348 = vmatprep.subr.bf16.mxu0 0
      %1349 = vmatpush1.bf16.msra.mxu0 %v1329
      %1350 = vmatprep.subr.bf16.mxu0 0
      %1351 = vmatpush1.bf16.msra.mxu0 %v1330
      %1352 = vmatprep.subr.bf16.mxu0 0
      %1353 = vmatpush1.bf16.msra.mxu0 %v1331
      %1354 = vmatprep.subr.bf16.mxu0 0
      %1355 = vmatpush1.bf16.msra.mxu0 %v1332
      %1356 = vmatprep.subr.bf16.mxu0 0
      %1357 = vmatpush1.bf16.msra.mxu0 %v1333
      %1358 = vmatprep.subr.bf16.mxu0 0
      %1359 = vmatpush1.bf16.msra.mxu0 0
      %1360 = vmatprep.subr.bf16.mxu0 0
      %1361 = vmatpush1.bf16.msra.mxu0 0
      %1362 = vmatprep.subr.bf16.mxu0 0
      %1363 = vmatpush1.bf16.msra.mxu0 0
      %1364 = vmatprep.subr.bf16.mxu0 0
      %1365 = vmatpush1.bf16.msra.mxu0 0
      %1366 = vmatprep.subr.bf16.mxu0 0
      %1367 = vmatpush1.bf16.msra.mxu0 0
      %1368 = vmatprep.subr.bf16.mxu0 0
      %1369 = vmatpush1.bf16.msra.mxu0 0
      %1370 = vmatprep.subr.bf16.mxu0 0
      %1371 = vmatpush1.bf16.msra.mxu0 0
      %1372 = vmatprep.subr.bf16.mxu0 0
      %1373 = vmatpush1.bf16.msra.mxu0 0
      %1374 = vmatprep.mubr.bf16.mxu0 0
      %1375 = vmatmul.mubr.bf16.gmra.mrb[0].mxu0 %v1263
      %v1376 = vpop.f32.mrb[0].mxu0
      %v1377 = vadd.f32 0.0, %v1376
      %v1378 = vpop.f32.mrb[0].mxu0
      %v1379 = vpop.f32.mrb[0].mxu0
      %v1380 = vadd.f32 0.0, %v1379
      %v1381 = vpop.f32.mrb[0].mxu0
      %1382 = vmatprep.mubr.bf16.mxu0 0
      %1383 = vmatmul.mubr.bf16.gmra.mrb[0].mxu0 %v1264
      %v1384 = vpop.f32.mrb[0].mxu0
      %v1385 = vadd.f32 0.0, %v1384
      %v1386 = vpop.f32.mrb[0].mxu0
      %v1387 = vpop.f32.mrb[0].mxu0
      %v1388 = vadd.f32 0.0, %v1387
      %v1389 = vpop.f32.mrb[0].mxu0
      %1390 = vmatprep.mubr.bf16.mxu0 0
      %1391 = vmatmul.mubr.bf16.gmra.mrb[0].mxu0 %v1265
      %v1392 = vpop.f32.mrb[0].mxu0
      %v1393 = vadd.f32 0.0, %v1392
      %v1394 = vpop.f32.mrb[0].mxu0
      %v1395 = vpop.f32.mrb[0].mxu0
      %v1396 = vadd.f32 0.0, %v1395
      %v1397 = vpop.f32.mrb[0].mxu0
      %1398 = vmatprep.mubr.bf16.mxu0 0
      %1399 = vmatmul.mubr.bf16.gmra.mrb[0].mxu0 %v1266
      %v1400 = vpop.f32.mrb[0].mxu0
      %v1401 = vadd.f32 0.0, %v1400
      %v1402 = vpop.f32.mrb[0].mxu0
      %v1403 = vpop.f32.mrb[0].mxu0
      %v1404 = vadd.f32 0.0, %v1403
      %v1405 = vpop.f32.mrb[0].mxu0
      %1406 = vmatprep.mubr.bf16.mxu0 0
      %1407 = vmatmul.mubr.bf16.gmra.mrb[0].mxu0 %v1267
      %v1408 = vpop.f32.mrb[0].mxu0
      %v1409 = vadd.f32 0.0, %v1408
      %v1410 = vpop.f32.mrb[0].mxu0
      %v1411 = vpop.f32.mrb[0].mxu0
      %v1412 = vadd.f32 0.0, %v1411
      %v1413 = vpop.f32.mrb[0].mxu0
      %1414 = vmatprep.mubr.bf16.mxu0 0
      %1415 = vmatmul.mubr.bf16.gmra.mrb[0].mxu0 %v1268
      %v1416 = vpop.f32.mrb[0].mxu0
      %v1417 = vadd.f32 0.0, %v1416
      %v1418 = vpop.f32.mrb[0].mxu0
      %v1419 = vpop.f32.mrb[0].mxu0
      %v1420 = vadd.f32 0.0, %v1419
      %v1421 = vpop.f32.mrb[0].mxu0
      %1422 = vmatprep.mubr.bf16.mxu0 0
      %1423 = vmatmul.mubr.bf16.gmra.mrb[0].mxu0 %v1269
      %v1424 = vpop.f32.mrb[0].mxu0
      %v1425 = vadd.f32 0.0, %v1424
      %v1426 = vpop.f32.mrb[0].mxu0
      %v1427 = vpop.f32.mrb[0].mxu0
      %v1428 = vadd.f32 0.0, %v1427
      %v1429 = vpop.f32.mrb[0].mxu0
      %1430 = vmatprep.mubr.bf16.mxu0 0
      %1431 = vmatmul.mubr.bf16.gmra.mrb[0].mxu0 %v1270
      %v1432 = vpop.f32.mrb[0].mxu0
      %v1433 = vadd.f32 0.0, %v1432
      %v1434 = vpop.f32.mrb[0].mxu0
      %v1435 = vpop.f32.mrb[0].mxu0
      %v1436 = vadd.f32 0.0, %v1435
      %v1437 = vpop.f32.mrb[0].mxu0
      %1438 = vmatprep.mubr.bf16.mxu0 0
      %1439 = vmatmul.mubr.bf16.gmra.mrb[0].mxu0 %v1271
      %v1440 = vpop.f32.mrb[0].mxu0
      %v1441 = vadd.f32 0.0, %v1440
      %v1442 = vpop.f32.mrb[0].mxu0
      %v1443 = vpop.f32.mrb[0].mxu0
      %v1444 = vadd.f32 0.0, %v1443
      %v1445 = vpop.f32.mrb[0].mxu0
      %1446 = vmatprep.mubr.bf16.mxu0 0
      %1447 = vmatmul.mubr.bf16.gmra.mrb[0].mxu0 %v1272
      %v1448 = vpop.f32.mrb[0].mxu0
      %v1449 = vadd.f32 0.0, %v1448
      %v1450 = vpop.f32.mrb[0].mxu0
      %v1451 = vpop.f32.mrb[0].mxu0
      %v1452 = vadd.f32 0.0, %v1451
      %v1453 = vpop.f32.mrb[0].mxu0
      %1454 = vmatprep.mubr.bf16.mxu0 0
      %1455 = vmatmul.mubr.bf16.gmra.mrb[0].mxu0 %v1273
      %v1456 = vpop.f32.mrb[0].mxu0
      %v1457 = vadd.f32 0.0, %v1456
      %v1458 = vpop.f32.mrb[0].mxu0
      %v1459 = vpop.f32.mrb[0].mxu0
      %v1460 = vadd.f32 0.0, %v1459
      %v1461 = vpop.f32.mrb[0].mxu0
      %1462 = vmatprep.mubr.bf16.mxu0 0
      %1463 = vmatmul.mubr.bf16.gmra.mrb[0].mxu0 %v1274
      %v1464 = vpop.f32.mrb[0].mxu0
      %v1465 = vadd.f32 0.0, %v1464
      %v1466 = vpop.f32.mrb[0].mxu0
      %v1467 = vpop.f32.mrb[0].mxu0
      %v1468 = vadd.f32 0.0, %v1467
      %v1469 = vpop.f32.mrb[0].mxu0
      %1470 = vmatprep.mubr.bf16.mxu0 0
      %1471 = vmatmul.mubr.bf16.gmra.mrb[0].mxu0 %v1275
      %v1472 = vpop.f32.mrb[0].mxu0
      %v1473 = vadd.f32 0.0, %v1472
      %v1474 = vpop.f32.mrb[0].mxu0
      %v1475 = vpop.f32.mrb[0].mxu0
      %v1476 = vadd.f32 0.0, %v1475
      %v1477 = vpop.f32.mrb[0].mxu0
      %1478 = vmatprep.mubr.bf16.mxu0 0
      %1479 = vmatmul.mubr.bf16.gmra.mrb[0].mxu0 %v1276
      %v1480 = vpop.f32.mrb[0].mxu0
      %v1481 = vadd.f32 0.0, %v1480
      %v1482 = vpop.f32.mrb[0].mxu0
      %v1483 = vpop.f32.mrb[0].mxu0
      %v1484 = vadd.f32 0.0, %v1483
      %v1485 = vpop.f32.mrb[0].mxu0
      %1486 = vdwg.mxu0
      %v1487 = vadd.f32 %v1207, %v1377
      %v1488 = vadd.f32 %v1208, %v1380
      %v1489 = vadd.f32 %v1209, %v1385
      %v1490 = vadd.f32 %v1210, %v1388
      %v1491 = vadd.f32 %v1211, %v1393
      %v1492 = vadd.f32 %v1212, %v1396
      %v1493 = vadd.f32 %v1213, %v1401
      %v1494 = vadd.f32 %v1214, %v1404
      %v1495 = vadd.f32 %v1215, %v1409
      %v1496 = vadd.f32 %v1216, %v1412
      %v1497 = vadd.f32 %v1217, %v1417
      %v1498 = vadd.f32 %v1218, %v1420
      %v1499 = vadd.f32 %v1219, %v1425
      %v1500 = vadd.f32 %v1220, %v1428
      %v1501 = vadd.f32 %v1221, %v1433
      %v1502 = vadd.f32 %v1222, %v1436
      %v1503 = vadd.f32 %v1223, %v1441
      %v1504 = vadd.f32 %v1224, %v1444
      %v1505 = vadd.f32 %v1225, %v1449
      %v1506 = vadd.f32 %v1226, %v1452
      %v1507 = vadd.f32 %v1227, %v1457
      %v1508 = vadd.f32 %v1228, %v1460
      %v1509 = vadd.f32 %v1229, %v1465
      %v1510 = vadd.f32 %v1230, %v1468
      %v1511 = vadd.f32 %v1231, %v1473
      %v1512 = vadd.f32 %v1232, %v1476
      %v1513 = vadd.f32 %v1233, %v1481
      %v1514 = vadd.f32 %v1234, %v1484
      %v1515 = vld [vmem:[%s165 + $0x12] sm:$0xff]
      %v1516 = vld [vmem:[%s165 + $0x1a] sm:$0xff]
      %v1517 = vld [vmem:[%s165 + $0x22] sm:$0xff]
      %v1518 = vld [vmem:[%s165 + $0x2a] sm:$0xff]
      %v1519 = vld [vmem:[%s165 + $0x32] sm:$0xff]
      %v1520 = vld [vmem:[%s165 + $0x3a] sm:$0xff]
      %v1521 = vld [vmem:[%s165 + $0x42] sm:$0xff]
      %v1522 = vld [vmem:[%s165 + $0x4a] sm:$0xff]
      %v1523 = vld [vmem:[%s165 + $0x52] sm:$0xff]
      %v1524 = vld [vmem:[%s165 + $0x5a] sm:$0xff]
      %v1525 = vld [vmem:[%s165 + $0x62] sm:$0xff]
      %v1526 = vld [vmem:[%s165 + $0x6a] sm:$0xff]
      %v1527 = vld [vmem:[%s165 + $0x72] sm:$0xff]
      %v1528 = vld [vmem:[%s165 + $0x7a] sm:$0xff]
      %v1529 = vld [vmem:[%s165 + $0x82] sm:$0xff]
      %v1530 = vld [vmem:[%s165 + $0x8a] sm:$0xff]
      %v1531 = vld [vmem:[%s165 + $0x92] sm:$0xff]
      %v1532 = vld [vmem:[%s165 + $0x9a] sm:$0xff]
      %v1533 = vld [vmem:[%s165 + $0xa2] sm:$0xff]
      %v1534 = vld [vmem:[%s165 + $0xaa] sm:$0xff]
      %v1535 = vld [vmem:[%s165 + $0xb2] sm:$0xff]
      %v1536 = vld [vmem:[%s165 + $0xba] sm:$0xff]
      %v1537 = vld [vmem:[%s165 + $0xc2] sm:$0xff]
      %v1538 = vld [vmem:[%s165 + $0xca] sm:$0xff]
      %v1539 = vld [vmem:[%s165 + $0xd2] sm:$0xff]
      %v1540 = vld [vmem:[%s165 + $0xda] sm:$0xff]
      %v1541 = vld [vmem:[%s165 + $0xe2] sm:$0xff]
      %v1542 = vld [vmem:[%s165 + $0xea] sm:$0xff]
      %v1543 = vpack.c.bf16 %v1516, %v1515
      %v1544 = vpack.c.bf16 %v1518, %v1517
      %v1545 = vpack.c.bf16 %v1520, %v1519
      %v1546 = vpack.c.bf16 %v1522, %v1521
      %v1547 = vpack.c.bf16 %v1524, %v1523
      %v1548 = vpack.c.bf16 %v1526, %v1525
      %v1549 = vpack.c.bf16 %v1528, %v1527
      %v1550 = vpack.c.bf16 %v1530, %v1529
      %v1551 = vpack.c.bf16 %v1532, %v1531
      %v1552 = vpack.c.bf16 %v1534, %v1533
      %v1553 = vpack.c.bf16 %v1536, %v1535
      %v1554 = vpack.c.bf16 %v1538, %v1537
      %v1555 = vpack.c.bf16 %v1540, %v1539
      %v1556 = vpack.c.bf16 %v1542, %v1541
      %s1557 = scalar_lea.vmem %s1, 320
      %v1558 = vld [vmem:[%s1557] sm:$0xf]
      %v1559 = vld [vmem:[%s1557 + $0x4] sm:$0xf]
      %v1560 = vld [vmem:[%s1557 + $0x8] sm:$0xf]
      %v1561 = vld [vmem:[%s1557 + $0xc] sm:$0xf]
      %v1562 = vld [vmem:[%s1557 + $0x10] sm:$0xf]
      %v1563 = vld [vmem:[%s1557 + $0x14] sm:$0xf]
      %v1564 = vld [vmem:[%s1557 + $0x18] sm:$0xf]
      %v1565 = vld [vmem:[%s1557 + $0x1c] sm:$0xf]
      %v1566 = vld [vmem:[%s1557 + $0x20] sm:$0xf]
      %v1567 = vld [vmem:[%s1557 + $0x24] sm:$0xf]
      %v1568 = vld [vmem:[%s1557 + $0x28] sm:$0xf]
      %v1569 = vld [vmem:[%s1557 + $0x2c] sm:$0xf]
      %v1570 = vld [vmem:[%s1557 + $0x30] sm:$0xf]
      %v1571 = vld [vmem:[%s1557 + $0x34] sm:$0xf]
      %v1572 = vld [vmem:[%s1557 + $0x38] sm:$0xf]
      %v1573 = vld [vmem:[%s1557 + $0x3c] sm:$0xf]
      %v1590 = vunpack.c.l.b16 %v1558
      %v1591 = vunpack.c.l.b16 %v1559
      %v1592 = vunpack.c.l.b16 %v1560
      %v1593 = vunpack.c.l.b16 %v1561
      %v1594 = vunpack.c.l.b16 %v1562
      %v1595 = vunpack.c.l.b16 %v1563
      %v1596 = vunpack.c.l.b16 %v1564
      %v1597 = vunpack.c.l.b16 %v1565
      %v1598 = vunpack.c.l.b16 %v1566
      %v1599 = vunpack.c.l.b16 %v1567
      %v1600 = vunpack.c.l.b16 %v1568
      %v1601 = vunpack.c.l.b16 %v1569
      %v1602 = vunpack.c.l.b16 %v1570
      %v1603 = vunpack.c.l.b16 %v1571
      %v1604 = vunpack.c.l.b16 %v1572
      %v1605 = vunpack.c.l.b16 %v1573
      %v1606 = vpack.c.b16 %v1591, %v1590
      %v1607 = vpack.c.b16 %v1593, %v1592
      %v1608 = vpack.c.b16 %v1595, %v1594
      %v1609 = vpack.c.b16 %v1597, %v1596
      %v1610 = vpack.c.b16 %v1599, %v1598
      %v1611 = vpack.c.b16 %v1601, %v1600
      %v1612 = vpack.c.b16 %v1603, %v1602
      %v1613 = vpack.c.b16 %v1605, %v1604
      %1622 = vmatprep.subr.bf16.mxu0 0
      %1623 = vmatpush1.bf16.msra.mxu0 %v1606
      %1624 = vmatprep.subr.bf16.mxu0 0
      %1625 = vmatpush1.bf16.msra.mxu0 %v1607
      %1626 = vmatprep.subr.bf16.mxu0 0
      %1627 = vmatpush1.bf16.msra.mxu0 %v1608
      %1628 = vmatprep.subr.bf16.mxu0 0
      %1629 = vmatpush1.bf16.msra.mxu0 %v1609
      %1630 = vmatprep.subr.bf16.mxu0 0
      %1631 = vmatpush1.bf16.msra.mxu0 %v1610
      %1632 = vmatprep.subr.bf16.mxu0 0
      %1633 = vmatpush1.bf16.msra.mxu0 %v1611
      %1634 = vmatprep.subr.bf16.mxu0 0
      %1635 = vmatpush1.bf16.msra.mxu0 %v1612
      %1636 = vmatprep.subr.bf16.mxu0 0
      %1637 = vmatpush1.bf16.msra.mxu0 %v1613
      %1638 = vmatprep.subr.bf16.mxu0 0
      %1639 = vmatpush1.bf16.msra.mxu0 0
      %1640 = vmatprep.subr.bf16.mxu0 0
      %1641 = vmatpush1.bf16.msra.mxu0 0
      %1642 = vmatprep.subr.bf16.mxu0 0
      %1643 = vmatpush1.bf16.msra.mxu0 0
      %1644 = vmatprep.subr.bf16.mxu0 0
      %1645 = vmatpush1.bf16.msra.mxu0 0
      %1646 = vmatprep.subr.bf16.mxu0 0
      %1647 = vmatpush1.bf16.msra.mxu0 0
      %1648 = vmatprep.subr.bf16.mxu0 0
      %1649 = vmatpush1.bf16.msra.mxu0 0
      %1650 = vmatprep.subr.bf16.mxu0 0
      %1651 = vmatpush1.bf16.msra.mxu0 0
      %1652 = vmatprep.subr.bf16.mxu0 0
      %1653 = vmatpush1.bf16.msra.mxu0 0
      %1654 = vmatprep.mubr.bf16.mxu0 0
      %1655 = vmatmul.mubr.bf16.gmra.mrb[0].mxu0 %v1543
      %v1656 = vpop.f32.mrb[0].mxu0
      %v1657 = vadd.f32 0.0, %v1656
      %v1658 = vpop.f32.mrb[0].mxu0
      %v1659 = vpop.f32.mrb[0].mxu0
      %v1660 = vadd.f32 0.0, %v1659
      %v1661 = vpop.f32.mrb[0].mxu0
      %1662 = vmatprep.mubr.bf16.mxu0 0
      %1663 = vmatmul.mubr.bf16.gmra.mrb[0].mxu0 %v1544
      %v1664 = vpop.f32.mrb[0].mxu0
      %v1665 = vadd.f32 0.0, %v1664
      %v1666 = vpop.f32.mrb[0].mxu0
      %v1667 = vpop.f32.mrb[0].mxu0
      %v1668 = vadd.f32 0.0, %v1667
      %v1669 = vpop.f32.mrb[0].mxu0
      %1670 = vmatprep.mubr.bf16.mxu0 0
      %1671 = vmatmul.mubr.bf16.gmra.mrb[0].mxu0 %v1545
      %v1672 = vpop.f32.mrb[0].mxu0
      %v1673 = vadd.f32 0.0, %v1672
      %v1674 = vpop.f32.mrb[0].mxu0
      %v1675 = vpop.f32.mrb[0].mxu0
      %v1676 = vadd.f32 0.0, %v1675
      %v1677 = vpop.f32.mrb[0].mxu0
      %1678 = vmatprep.mubr.bf16.mxu0 0
      %1679 = vmatmul.mubr.bf16.gmra.mrb[0].mxu0 %v1546
      %v1680 = vpop.f32.mrb[0].mxu0
      %v1681 = vadd.f32 0.0, %v1680
      %v1682 = vpop.f32.mrb[0].mxu0
      %v1683 = vpop.f32.mrb[0].mxu0
      %v1684 = vadd.f32 0.0, %v1683
      %v1685 = vpop.f32.mrb[0].mxu0
      %1686 = vmatprep.mubr.bf16.mxu0 0
      %1687 = vmatmul.mubr.bf16.gmra.mrb[0].mxu0 %v1547
      %v1688 = vpop.f32.mrb[0].mxu0
      %v1689 = vadd.f32 0.0, %v1688
      %v1690 = vpop.f32.mrb[0].mxu0
      %v1691 = vpop.f32.mrb[0].mxu0
      %v1692 = vadd.f32 0.0, %v1691
      %v1693 = vpop.f32.mrb[0].mxu0
      %1694 = vmatprep.mubr.bf16.mxu0 0
      %1695 = vmatmul.mubr.bf16.gmra.mrb[0].mxu0 %v1548
      %v1696 = vpop.f32.mrb[0].mxu0
      %v1697 = vadd.f32 0.0, %v1696
      %v1698 = vpop.f32.mrb[0].mxu0
      %v1699 = vpop.f32.mrb[0].mxu0
      %v1700 = vadd.f32 0.0, %v1699
      %v1701 = vpop.f32.mrb[0].mxu0
      %1702 = vmatprep.mubr.bf16.mxu0 0
      %1703 = vmatmul.mubr.bf16.gmra.mrb[0].mxu0 %v1549
      %v1704 = vpop.f32.mrb[0].mxu0
      %v1705 = vadd.f32 0.0, %v1704
      %v1706 = vpop.f32.mrb[0].mxu0
      %v1707 = vpop.f32.mrb[0].mxu0
      %v1708 = vadd.f32 0.0, %v1707
      %v1709 = vpop.f32.mrb[0].mxu0
      %1710 = vmatprep.mubr.bf16.mxu0 0
      %1711 = vmatmul.mubr.bf16.gmra.mrb[0].mxu0 %v1550
      %v1712 = vpop.f32.mrb[0].mxu0
      %v1713 = vadd.f32 0.0, %v1712
      %v1714 = vpop.f32.mrb[0].mxu0
      %v1715 = vpop.f32.mrb[0].mxu0
      %v1716 = vadd.f32 0.0, %v1715
      %v1717 = vpop.f32.mrb[0].mxu0
      %1718 = vmatprep.mubr.bf16.mxu0 0
      %1719 = vmatmul.mubr.bf16.gmra.mrb[0].mxu0 %v1551
      %v1720 = vpop.f32.mrb[0].mxu0
      %v1721 = vadd.f32 0.0, %v1720
      %v1722 = vpop.f32.mrb[0].mxu0
      %v1723 = vpop.f32.mrb[0].mxu0
      %v1724 = vadd.f32 0.0, %v1723
      %v1725 = vpop.f32.mrb[0].mxu0
      %1726 = vmatprep.mubr.bf16.mxu0 0
      %1727 = vmatmul.mubr.bf16.gmra.mrb[0].mxu0 %v1552
      %v1728 = vpop.f32.mrb[0].mxu0
      %v1729 = vadd.f32 0.0, %v1728
      %v1730 = vpop.f32.mrb[0].mxu0
      %v1731 = vpop.f32.mrb[0].mxu0
      %v1732 = vadd.f32 0.0, %v1731
      %v1733 = vpop.f32.mrb[0].mxu0
      %1734 = vmatprep.mubr.bf16.mxu0 0
      %1735 = vmatmul.mubr.bf16.gmra.mrb[0].mxu0 %v1553
      %v1736 = vpop.f32.mrb[0].mxu0
      %v1737 = vadd.f32 0.0, %v1736
      %v1738 = vpop.f32.mrb[0].mxu0
      %v1739 = vpop.f32.mrb[0].mxu0
      %v1740 = vadd.f32 0.0, %v1739
      %v1741 = vpop.f32.mrb[0].mxu0
      %1742 = vmatprep.mubr.bf16.mxu0 0
      %1743 = vmatmul.mubr.bf16.gmra.mrb[0].mxu0 %v1554
      %v1744 = vpop.f32.mrb[0].mxu0
      %v1745 = vadd.f32 0.0, %v1744
      %v1746 = vpop.f32.mrb[0].mxu0
      %v1747 = vpop.f32.mrb[0].mxu0
      %v1748 = vadd.f32 0.0, %v1747
      %v1749 = vpop.f32.mrb[0].mxu0
      %1750 = vmatprep.mubr.bf16.mxu0 0
      %1751 = vmatmul.mubr.bf16.gmra.mrb[0].mxu0 %v1555
      %v1752 = vpop.f32.mrb[0].mxu0
      %v1753 = vadd.f32 0.0, %v1752
      %v1754 = vpop.f32.mrb[0].mxu0
      %v1755 = vpop.f32.mrb[0].mxu0
      %v1756 = vadd.f32 0.0, %v1755
      %v1757 = vpop.f32.mrb[0].mxu0
      %1758 = vmatprep.mubr.bf16.mxu0 0
      %1759 = vmatmul.mubr.bf16.gmra.mrb[0].mxu0 %v1556
      %v1760 = vpop.f32.mrb[0].mxu0
      %v1761 = vadd.f32 0.0, %v1760
      %v1762 = vpop.f32.mrb[0].mxu0
      %v1763 = vpop.f32.mrb[0].mxu0
      %v1764 = vadd.f32 0.0, %v1763
      %v1765 = vpop.f32.mrb[0].mxu0
      %1766 = vdwg.mxu0
      %v1767 = vadd.f32 %v1487, %v1657
      %v1768 = vadd.f32 %v1488, %v1660
      %v1769 = vadd.f32 %v1489, %v1665
      %v1770 = vadd.f32 %v1490, %v1668
      %v1771 = vadd.f32 %v1491, %v1673
      %v1772 = vadd.f32 %v1492, %v1676
      %v1773 = vadd.f32 %v1493, %v1681
      %v1774 = vadd.f32 %v1494, %v1684
      %v1775 = vadd.f32 %v1495, %v1689
      %v1776 = vadd.f32 %v1496, %v1692
      %v1777 = vadd.f32 %v1497, %v1697
      %v1778 = vadd.f32 %v1498, %v1700
      %v1779 = vadd.f32 %v1499, %v1705
      %v1780 = vadd.f32 %v1500, %v1708
      %v1781 = vadd.f32 %v1501, %v1713
      %v1782 = vadd.f32 %v1502, %v1716
      %v1783 = vadd.f32 %v1503, %v1721
      %v1784 = vadd.f32 %v1504, %v1724
      %v1785 = vadd.f32 %v1505, %v1729
      %v1786 = vadd.f32 %v1506, %v1732
      %v1787 = vadd.f32 %v1507, %v1737
      %v1788 = vadd.f32 %v1508, %v1740
      %v1789 = vadd.f32 %v1509, %v1745
      %v1790 = vadd.f32 %v1510, %v1748
      %v1791 = vadd.f32 %v1511, %v1753
      %v1792 = vadd.f32 %v1512, %v1756
      %v1793 = vadd.f32 %v1513, %v1761
      %v1794 = vadd.f32 %v1514, %v1764
      %v1795 = vld [vmem:[%s165 + $0x20] sm:$0xff]
      %v1796 = vld [vmem:[%s165 + $0x28] sm:$0xff]
      %v1797 = vld [vmem:[%s165 + $0x30] sm:$0xff]
      %v1798 = vld [vmem:[%s165 + $0x38] sm:$0xff]
      %v1799 = vld [vmem:[%s165 + $0x40] sm:$0xff]
      %v1800 = vld [vmem:[%s165 + $0x48] sm:$0xff]
      %v1801 = vld [vmem:[%s165 + $0x50] sm:$0xff]
      %v1802 = vld [vmem:[%s165 + $0x58] sm:$0xff]
      %v1803 = vld [vmem:[%s165 + $0x60] sm:$0xff]
      %v1804 = vld [vmem:[%s165 + $0x68] sm:$0xff]
      %v1805 = vld [vmem:[%s165 + $0x70] sm:$0xff]
      %v1806 = vld [vmem:[%s165 + $0x78] sm:$0xff]
      %v1807 = vld [vmem:[%s165 + $0x80] sm:$0xff]
      %v1808 = vld [vmem:[%s165 + $0x88] sm:$0xff]
      %v1809 = vld [vmem:[%s165 + $0x90] sm:$0xff]
      %v1810 = vld [vmem:[%s165 + $0x98] sm:$0xff]
      %v1811 = vld [vmem:[%s165 + $0xa0] sm:$0xff]
      %v1812 = vld [vmem:[%s165 + $0xa8] sm:$0xff]
      %v1813 = vld [vmem:[%s165 + $0xb0] sm:$0xff]
      %v1814 = vld [vmem:[%s165 + $0xb8] sm:$0xff]
      %v1815 = vld [vmem:[%s165 + $0xc0] sm:$0xff]
      %v1816 = vld [vmem:[%s165 + $0xc8] sm:$0xff]
      %v1817 = vld [vmem:[%s165 + $0xd0] sm:$0xff]
      %v1818 = vld [vmem:[%s165 + $0xd8] sm:$0xff]
      %v1819 = vld [vmem:[%s165 + $0xe0] sm:$0xff]
      %v1820 = vld [vmem:[%s165 + $0xe8] sm:$0xff]
      %v1821 = vld [vmem:[%s165 + $0xf0] sm:$0xff]
      %v1822 = vld [vmem:[%s165 + $0xf8] sm:$0xff]
      %v1823 = vpack.c.bf16 %v1796, %v1795
      %v1824 = vpack.c.bf16 %v1798, %v1797
      %v1825 = vpack.c.bf16 %v1800, %v1799
      %v1826 = vpack.c.bf16 %v1802, %v1801
      %v1827 = vpack.c.bf16 %v1804, %v1803
      %v1828 = vpack.c.bf16 %v1806, %v1805
      %v1829 = vpack.c.bf16 %v1808, %v1807
      %v1830 = vpack.c.bf16 %v1810, %v1809
      %v1831 = vpack.c.bf16 %v1812, %v1811
      %v1832 = vpack.c.bf16 %v1814, %v1813
      %v1833 = vpack.c.bf16 %v1816, %v1815
      %v1834 = vpack.c.bf16 %v1818, %v1817
      %v1835 = vpack.c.bf16 %v1820, %v1819
      %v1836 = vpack.c.bf16 %v1822, %v1821
      %s1837 = scalar_lea.vmem %s1, 384
      %v1838 = vld [vmem:[%s1837] sm:$0xf]
      %v1839 = vld [vmem:[%s1837 + $0x4] sm:$0xf]
      %v1840 = vld [vmem:[%s1837 + $0x8] sm:$0xf]
      %v1841 = vld [vmem:[%s1837 + $0xc] sm:$0xf]
      %v1842 = vld [vmem:[%s1837 + $0x10] sm:$0xf]
      %v1843 = vld [vmem:[%s1837 + $0x14] sm:$0xf]
      %v1844 = vld [vmem:[%s1837 + $0x18] sm:$0xf]
      %v1845 = vld [vmem:[%s1837 + $0x1c] sm:$0xf]
      %v1846 = vld [vmem:[%s1837 + $0x20] sm:$0xf]
      %v1847 = vld [vmem:[%s1837 + $0x24] sm:$0xf]
      %v1848 = vld [vmem:[%s1837 + $0x28] sm:$0xf]
      %v1849 = vld [vmem:[%s1837 + $0x2c] sm:$0xf]
      %v1850 = vld [vmem:[%s1837 + $0x30] sm:$0xf]
      %v1851 = vld [vmem:[%s1837 + $0x34] sm:$0xf]
      %v1852 = vld [vmem:[%s1837 + $0x38] sm:$0xf]
      %v1853 = vld [vmem:[%s1837 + $0x3c] sm:$0xf]
      %v1870 = vunpack.c.l.b16 %v1838
      %v1871 = vunpack.c.l.b16 %v1839
      %v1872 = vunpack.c.l.b16 %v1840
      %v1873 = vunpack.c.l.b16 %v1841
      %v1874 = vunpack.c.l.b16 %v1842
      %v1875 = vunpack.c.l.b16 %v1843
      %v1876 = vunpack.c.l.b16 %v1844
      %v1877 = vunpack.c.l.b16 %v1845
      %v1878 = vunpack.c.l.b16 %v1846
      %v1879 = vunpack.c.l.b16 %v1847
      %v1880 = vunpack.c.l.b16 %v1848
      %v1881 = vunpack.c.l.b16 %v1849
      %v1882 = vunpack.c.l.b16 %v1850
      %v1883 = vunpack.c.l.b16 %v1851
      %v1884 = vunpack.c.l.b16 %v1852
      %v1885 = vunpack.c.l.b16 %v1853
      %v1886 = vpack.c.b16 %v1871, %v1870
      %v1887 = vpack.c.b16 %v1873, %v1872
      %v1888 = vpack.c.b16 %v1875, %v1874
      %v1889 = vpack.c.b16 %v1877, %v1876
      %v1890 = vpack.c.b16 %v1879, %v1878
      %v1891 = vpack.c.b16 %v1881, %v1880
      %v1892 = vpack.c.b16 %v1883, %v1882
      %v1893 = vpack.c.b16 %v1885, %v1884
      %1902 = vmatprep.subr.bf16.mxu0 0
      %1903 = vmatpush1.bf16.msra.mxu0 %v1886
      %1904 = vmatprep.subr.bf16.mxu0 0
      %1905 = vmatpush1.bf16.msra.mxu0 %v1887
      %1906 = vmatprep.subr.bf16.mxu0 0
      %1907 = vmatpush1.bf16.msra.mxu0 %v1888
      %1908 = vmatprep.subr.bf16.mxu0 0
      %1909 = vmatpush1.bf16.msra.mxu0 %v1889
      %1910 = vmatprep.subr.bf16.mxu0 0
      %1911 = vmatpush1.bf16.msra.mxu0 %v1890
      %1912 = vmatprep.subr.bf16.mxu0 0
      %1913 = vmatpush1.bf16.msra.mxu0 %v1891
      %1914 = vmatprep.subr.bf16.mxu0 0
      %1915 = vmatpush1.bf16.msra.mxu0 %v1892
      %1916 = vmatprep.subr.bf16.mxu0 0
      %1917 = vmatpush1.bf16.msra.mxu0 %v1893
      %1918 = vmatprep.subr.bf16.mxu0 0
      %1919 = vmatpush1.bf16.msra.mxu0 0
      %1920 = vmatprep.subr.bf16.mxu0 0
      %1921 = vmatpush1.bf16.msra.mxu0 0
      %1922 = vmatprep.subr.bf16.mxu0 0
      %1923 = vmatpush1.bf16.msra.mxu0 0
      %1924 = vmatprep.subr.bf16.mxu0 0
      %1925 = vmatpush1.bf16.msra.mxu0 0
      %1926 = vmatprep.subr.bf16.mxu0 0
      %1927 = vmatpush1.bf16.msra.mxu0 0
      %1928 = vmatprep.subr.bf16.mxu0 0
      %1929 = vmatpush1.bf16.msra.mxu0 0
      %1930 = vmatprep.subr.bf16.mxu0 0
      %1931 = vmatpush1.bf16.msra.mxu0 0
      %1932 = vmatprep.subr.bf16.mxu0 0
      %1933 = vmatpush1.bf16.msra.mxu0 0
      %1934 = vmatprep.mubr.bf16.mxu0 0
      %1935 = vmatmul.mubr.bf16.gmra.mrb[0].mxu0 %v1823
      %v1936 = vpop.f32.mrb[0].mxu0
      %v1937 = vadd.f32 0.0, %v1936
      %v1938 = vpop.f32.mrb[0].mxu0
      %v1939 = vpop.f32.mrb[0].mxu0
      %v1940 = vadd.f32 0.0, %v1939
      %v1941 = vpop.f32.mrb[0].mxu0
      %1942 = vmatprep.mubr.bf16.mxu0 0
      %1943 = vmatmul.mubr.bf16.gmra.mrb[0].mxu0 %v1824
      %v1944 = vpop.f32.mrb[0].mxu0
      %v1945 = vadd.f32 0.0, %v1944
      %v1946 = vpop.f32.mrb[0].mxu0
      %v1947 = vpop.f32.mrb[0].mxu0
      %v1948 = vadd.f32 0.0, %v1947
      %v1949 = vpop.f32.mrb[0].mxu0
      %1950 = vmatprep.mubr.bf16.mxu0 0
      %1951 = vmatmul.mubr.bf16.gmra.mrb[0].mxu0 %v1825
      %v1952 = vpop.f32.mrb[0].mxu0
      %v1953 = vadd.f32 0.0, %v1952
      %v1954 = vpop.f32.mrb[0].mxu0
      %v1955 = vpop.f32.mrb[0].mxu0
      %v1956 = vadd.f32 0.0, %v1955
      %v1957 = vpop.f32.mrb[0].mxu0
      %1958 = vmatprep.mubr.bf16.mxu0 0
      %1959 = vmatmul.mubr.bf16.gmra.mrb[0].mxu0 %v1826
      %v1960 = vpop.f32.mrb[0].mxu0
      %v1961 = vadd.f32 0.0, %v1960
      %v1962 = vpop.f32.mrb[0].mxu0
      %v1963 = vpop.f32.mrb[0].mxu0
      %v1964 = vadd.f32 0.0, %v1963
      %v1965 = vpop.f32.mrb[0].mxu0
      %1966 = vmatprep.mubr.bf16.mxu0 0
      %1967 = vmatmul.mubr.bf16.gmra.mrb[0].mxu0 %v1827
      %v1968 = vpop.f32.mrb[0].mxu0
      %v1969 = vadd.f32 0.0, %v1968
      %v1970 = vpop.f32.mrb[0].mxu0
      %v1971 = vpop.f32.mrb[0].mxu0
      %v1972 = vadd.f32 0.0, %v1971
      %v1973 = vpop.f32.mrb[0].mxu0
      %1974 = vmatprep.mubr.bf16.mxu0 0
      %1975 = vmatmul.mubr.bf16.gmra.mrb[0].mxu0 %v1828
      %v1976 = vpop.f32.mrb[0].mxu0
      %v1977 = vadd.f32 0.0, %v1976
      %v1978 = vpop.f32.mrb[0].mxu0
      %v1979 = vpop.f32.mrb[0].mxu0
      %v1980 = vadd.f32 0.0, %v1979
      %v1981 = vpop.f32.mrb[0].mxu0
      %1982 = vmatprep.mubr.bf16.mxu0 0
      %1983 = vmatmul.mubr.bf16.gmra.mrb[0].mxu0 %v1829
      %v1984 = vpop.f32.mrb[0].mxu0
      %v1985 = vadd.f32 0.0, %v1984
      %v1986 = vpop.f32.mrb[0].mxu0
      %v1987 = vpop.f32.mrb[0].mxu0
      %v1988 = vadd.f32 0.0, %v1987
      %v1989 = vpop.f32.mrb[0].mxu0
      %1990 = vmatprep.mubr.bf16.mxu0 0
      %1991 = vmatmul.mubr.bf16.gmra.mrb[0].mxu0 %v1830
      %v1992 = vpop.f32.mrb[0].mxu0
      %v1993 = vadd.f32 0.0, %v1992
      %v1994 = vpop.f32.mrb[0].mxu0
      %v1995 = vpop.f32.mrb[0].mxu0
      %v1996 = vadd.f32 0.0, %v1995
      %v1997 = vpop.f32.mrb[0].mxu0
      %1998 = vmatprep.mubr.bf16.mxu0 0
      %1999 = vmatmul.mubr.bf16.gmra.mrb[0].mxu0 %v1831
      %v2000 = vpop.f32.mrb[0].mxu0
      %v2001 = vadd.f32 0.0, %v2000
      %v2002 = vpop.f32.mrb[0].mxu0
      %v2003 = vpop.f32.mrb[0].mxu0
      %v2004 = vadd.f32 0.0, %v2003
      %v2005 = vpop.f32.mrb[0].mxu0
      %2006 = vmatprep.mubr.bf16.mxu0 0
      %2007 = vmatmul.mubr.bf16.gmra.mrb[0].mxu0 %v1832
      %v2008 = vpop.f32.mrb[0].mxu0
      %v2009 = vadd.f32 0.0, %v2008
      %v2010 = vpop.f32.mrb[0].mxu0
      %v2011 = vpop.f32.mrb[0].mxu0
      %v2012 = vadd.f32 0.0, %v2011
      %v2013 = vpop.f32.mrb[0].mxu0
      %2014 = vmatprep.mubr.bf16.mxu0 0
      %2015 = vmatmul.mubr.bf16.gmra.mrb[0].mxu0 %v1833
      %v2016 = vpop.f32.mrb[0].mxu0
      %v2017 = vadd.f32 0.0, %v2016
      %v2018 = vpop.f32.mrb[0].mxu0
      %v2019 = vpop.f32.mrb[0].mxu0
      %v2020 = vadd.f32 0.0, %v2019
      %v2021 = vpop.f32.mrb[0].mxu0
      %2022 = vmatprep.mubr.bf16.mxu0 0
      %2023 = vmatmul.mubr.bf16.gmra.mrb[0].mxu0 %v1834
      %v2024 = vpop.f32.mrb[0].mxu0
      %v2025 = vadd.f32 0.0, %v2024
      %v2026 = vpop.f32.mrb[0].mxu0
      %v2027 = vpop.f32.mrb[0].mxu0
      %v2028 = vadd.f32 0.0, %v2027
      %v2029 = vpop.f32.mrb[0].mxu0
      %2030 = vmatprep.mubr.bf16.mxu0 0
      %2031 = vmatmul.mubr.bf16.gmra.mrb[0].mxu0 %v1835
      %v2032 = vpop.f32.mrb[0].mxu0
      %v2033 = vadd.f32 0.0, %v2032
      %v2034 = vpop.f32.mrb[0].mxu0
      %v2035 = vpop.f32.mrb[0].mxu0
      %v2036 = vadd.f32 0.0, %v2035
      %v2037 = vpop.f32.mrb[0].mxu0
      %2038 = vmatprep.mubr.bf16.mxu0 0
      %2039 = vmatmul.mubr.bf16.gmra.mrb[0].mxu0 %v1836
      %v2040 = vpop.f32.mrb[0].mxu0
      %v2041 = vadd.f32 0.0, %v2040
      %v2042 = vpop.f32.mrb[0].mxu0
      %v2043 = vpop.f32.mrb[0].mxu0
      %v2044 = vadd.f32 0.0, %v2043
      %v2045 = vpop.f32.mrb[0].mxu0
      %2046 = vdwg.mxu0
      %v2047 = vadd.f32 %v1767, %v1937
      %v2048 = vadd.f32 %v1768, %v1940
      %v2049 = vadd.f32 %v1769, %v1945
      %v2050 = vadd.f32 %v1770, %v1948
      %v2051 = vadd.f32 %v1771, %v1953
      %v2052 = vadd.f32 %v1772, %v1956
      %v2053 = vadd.f32 %v1773, %v1961
      %v2054 = vadd.f32 %v1774, %v1964
      %v2055 = vadd.f32 %v1775, %v1969
      %v2056 = vadd.f32 %v1776, %v1972
      %v2057 = vadd.f32 %v1777, %v1977
      %v2058 = vadd.f32 %v1778, %v1980
      %v2059 = vadd.f32 %v1779, %v1985
      %v2060 = vadd.f32 %v1780, %v1988
      %v2061 = vadd.f32 %v1781, %v1993
      %v2062 = vadd.f32 %v1782, %v1996
      %v2063 = vadd.f32 %v1783, %v2001
      %v2064 = vadd.f32 %v1784, %v2004
      %v2065 = vadd.f32 %v1785, %v2009
      %v2066 = vadd.f32 %v1786, %v2012
      %v2067 = vadd.f32 %v1787, %v2017
      %v2068 = vadd.f32 %v1788, %v2020
      %v2069 = vadd.f32 %v1789, %v2025
      %v2070 = vadd.f32 %v1790, %v2028
      %v2071 = vadd.f32 %v1791, %v2033
      %v2072 = vadd.f32 %v1792, %v2036
      %v2073 = vadd.f32 %v1793, %v2041
      %v2074 = vadd.f32 %v1794, %v2044
      %v2075 = vld [vmem:[%s165 + $0x21] sm:$0xff]
      %v2076 = vld [vmem:[%s165 + $0x29] sm:$0xff]
      %v2077 = vld [vmem:[%s165 + $0x31] sm:$0xff]
      %v2078 = vld [vmem:[%s165 + $0x39] sm:$0xff]
      %v2079 = vld [vmem:[%s165 + $0x41] sm:$0xff]
      %v2080 = vld [vmem:[%s165 + $0x49] sm:$0xff]
      %v2081 = vld [vmem:[%s165 + $0x51] sm:$0xff]
      %v2082 = vld [vmem:[%s165 + $0x59] sm:$0xff]
      %v2083 = vld [vmem:[%s165 + $0x61] sm:$0xff]
      %v2084 = vld [vmem:[%s165 + $0x69] sm:$0xff]
      %v2085 = vld [vmem:[%s165 + $0x71] sm:$0xff]
      %v2086 = vld [vmem:[%s165 + $0x79] sm:$0xff]
      %v2087 = vld [vmem:[%s165 + $0x81] sm:$0xff]
      %v2088 = vld [vmem:[%s165 + $0x89] sm:$0xff]
      %v2089 = vld [vmem:[%s165 + $0x91] sm:$0xff]
      %v2090 = vld [vmem:[%s165 + $0x99] sm:$0xff]
      %v2091 = vld [vmem:[%s165 + $0xa1] sm:$0xff]
      %v2092 = vld [vmem:[%s165 + $0xa9] sm:$0xff]
      %v2093 = vld [vmem:[%s165 + $0xb1] sm:$0xff]
      %v2094 = vld [vmem:[%s165 + $0xb9] sm:$0xff]
      %v2095 = vld [vmem:[%s165 + $0xc1] sm:$0xff]
      %v2096 = vld [vmem:[%s165 + $0xc9] sm:$0xff]
      %v2097 = vld [vmem:[%s165 + $0xd1] sm:$0xff]
      %v2098 = vld [vmem:[%s165 + $0xd9] sm:$0xff]
      %v2099 = vld [vmem:[%s165 + $0xe1] sm:$0xff]
      %v2100 = vld [vmem:[%s165 + $0xe9] sm:$0xff]
      %v2101 = vld [vmem:[%s165 + $0xf1] sm:$0xff]
      %v2102 = vld [vmem:[%s165 + $0xf9] sm:$0xff]
      %v2103 = vpack.c.bf16 %v2076, %v2075
      %v2104 = vpack.c.bf16 %v2078, %v2077
      %v2105 = vpack.c.bf16 %v2080, %v2079
      %v2106 = vpack.c.bf16 %v2082, %v2081
      %v2107 = vpack.c.bf16 %v2084, %v2083
      %v2108 = vpack.c.bf16 %v2086, %v2085
      %v2109 = vpack.c.bf16 %v2088, %v2087
      %v2110 = vpack.c.bf16 %v2090, %v2089
      %v2111 = vpack.c.bf16 %v2092, %v2091
      %v2112 = vpack.c.bf16 %v2094, %v2093
      %v2113 = vpack.c.bf16 %v2096, %v2095
      %v2114 = vpack.c.bf16 %v2098, %v2097
      %v2115 = vpack.c.bf16 %v2100, %v2099
      %v2116 = vpack.c.bf16 %v2102, %v2101
      %s2117 = scalar_lea.vmem %s1, 448
      %v2118 = vld [vmem:[%s2117] sm:$0xf]
      %v2119 = vld [vmem:[%s2117 + $0x4] sm:$0xf]
      %v2120 = vld [vmem:[%s2117 + $0x8] sm:$0xf]
      %v2121 = vld [vmem:[%s2117 + $0xc] sm:$0xf]
      %v2122 = vld [vmem:[%s2117 + $0x10] sm:$0xf]
      %v2123 = vld [vmem:[%s2117 + $0x14] sm:$0xf]
      %v2124 = vld [vmem:[%s2117 + $0x18] sm:$0xf]
      %v2125 = vld [vmem:[%s2117 + $0x1c] sm:$0xf]
      %v2126 = vld [vmem:[%s2117 + $0x20] sm:$0xf]
      %v2127 = vld [vmem:[%s2117 + $0x24] sm:$0xf]
      %v2128 = vld [vmem:[%s2117 + $0x28] sm:$0xf]
      %v2129 = vld [vmem:[%s2117 + $0x2c] sm:$0xf]
      %v2130 = vld [vmem:[%s2117 + $0x30] sm:$0xf]
      %v2131 = vld [vmem:[%s2117 + $0x34] sm:$0xf]
      %v2132 = vld [vmem:[%s2117 + $0x38] sm:$0xf]
      %v2133 = vld [vmem:[%s2117 + $0x3c] sm:$0xf]
      %v2150 = vunpack.c.l.b16 %v2118
      %v2151 = vunpack.c.l.b16 %v2119
      %v2152 = vunpack.c.l.b16 %v2120
      %v2153 = vunpack.c.l.b16 %v2121
      %v2154 = vunpack.c.l.b16 %v2122
      %v2155 = vunpack.c.l.b16 %v2123
      %v2156 = vunpack.c.l.b16 %v2124
      %v2157 = vunpack.c.l.b16 %v2125
      %v2158 = vunpack.c.l.b16 %v2126
      %v2159 = vunpack.c.l.b16 %v2127
      %v2160 = vunpack.c.l.b16 %v2128
      %v2161 = vunpack.c.l.b16 %v2129
      %v2162 = vunpack.c.l.b16 %v2130
      %v2163 = vunpack.c.l.b16 %v2131
      %v2164 = vunpack.c.l.b16 %v2132
      %v2165 = vunpack.c.l.b16 %v2133
      %v2166 = vpack.c.b16 %v2151, %v2150
      %v2167 = vpack.c.b16 %v2153, %v2152
      %v2168 = vpack.c.b16 %v2155, %v2154
      %v2169 = vpack.c.b16 %v2157, %v2156
      %v2170 = vpack.c.b16 %v2159, %v2158
      %v2171 = vpack.c.b16 %v2161, %v2160
      %v2172 = vpack.c.b16 %v2163, %v2162
      %v2173 = vpack.c.b16 %v2165, %v2164
      %2182 = vmatprep.subr.bf16.mxu0 0
      %2183 = vmatpush1.bf16.msra.mxu0 %v2166
      %2184 = vmatprep.subr.bf16.mxu0 0
      %2185 = vmatpush1.bf16.msra.mxu0 %v2167
      %2186 = vmatprep.subr.bf16.mxu0 0
      %2187 = vmatpush1.bf16.msra.mxu0 %v2168
      %2188 = vmatprep.subr.bf16.mxu0 0
      %2189 = vmatpush1.bf16.msra.mxu0 %v2169
      %2190 = vmatprep.subr.bf16.mxu0 0
      %2191 = vmatpush1.bf16.msra.mxu0 %v2170
      %2192 = vmatprep.subr.bf16.mxu0 0
      %2193 = vmatpush1.bf16.msra.mxu0 %v2171
      %2194 = vmatprep.subr.bf16.mxu0 0
      %2195 = vmatpush1.bf16.msra.mxu0 %v2172
      %2196 = vmatprep.subr.bf16.mxu0 0
      %2197 = vmatpush1.bf16.msra.mxu0 %v2173
      %2198 = vmatprep.subr.bf16.mxu0 0
      %2199 = vmatpush1.bf16.msra.mxu0 0
      %2200 = vmatprep.subr.bf16.mxu0 0
      %2201 = vmatpush1.bf16.msra.mxu0 0
      %2202 = vmatprep.subr.bf16.mxu0 0
      %2203 = vmatpush1.bf16.msra.mxu0 0
      %2204 = vmatprep.subr.bf16.mxu0 0
      %2205 = vmatpush1.bf16.msra.mxu0 0
      %2206 = vmatprep.subr.bf16.mxu0 0
      %2207 = vmatpush1.bf16.msra.mxu0 0
      %2208 = vmatprep.subr.bf16.mxu0 0
      %2209 = vmatpush1.bf16.msra.mxu0 0
      %2210 = vmatprep.subr.bf16.mxu0 0
      %2211 = vmatpush1.bf16.msra.mxu0 0
      %2212 = vmatprep.subr.bf16.mxu0 0
      %2213 = vmatpush1.bf16.msra.mxu0 0
      %2214 = vmatprep.mubr.bf16.mxu0 0
      %2215 = vmatmul.mubr.bf16.gmra.mrb[0].mxu0 %v2103
      %v2216 = vpop.f32.mrb[0].mxu0
      %v2217 = vadd.f32 0.0, %v2216
      %v2218 = vpop.f32.mrb[0].mxu0
      %v2219 = vpop.f32.mrb[0].mxu0
      %v2220 = vadd.f32 0.0, %v2219
      %v2221 = vpop.f32.mrb[0].mxu0
      %2222 = vmatprep.mubr.bf16.mxu0 0
      %2223 = vmatmul.mubr.bf16.gmra.mrb[0].mxu0 %v2104
      %v2224 = vpop.f32.mrb[0].mxu0
      %v2225 = vadd.f32 0.0, %v2224
      %v2226 = vpop.f32.mrb[0].mxu0
      %v2227 = vpop.f32.mrb[0].mxu0
      %v2228 = vadd.f32 0.0, %v2227
      %v2229 = vpop.f32.mrb[0].mxu0
      %2230 = vmatprep.mubr.bf16.mxu0 0
      %2231 = vmatmul.mubr.bf16.gmra.mrb[0].mxu0 %v2105
      %v2232 = vpop.f32.mrb[0].mxu0
      %v2233 = vadd.f32 0.0, %v2232
      %v2234 = vpop.f32.mrb[0].mxu0
      %v2235 = vpop.f32.mrb[0].mxu0
      %v2236 = vadd.f32 0.0, %v2235
      %v2237 = vpop.f32.mrb[0].mxu0
      %2238 = vmatprep.mubr.bf16.mxu0 0
      %2239 = vmatmul.mubr.bf16.gmra.mrb[0].mxu0 %v2106
      %v2240 = vpop.f32.mrb[0].mxu0
      %v2241 = vadd.f32 0.0, %v2240
      %v2242 = vpop.f32.mrb[0].mxu0
      %v2243 = vpop.f32.mrb[0].mxu0
      %v2244 = vadd.f32 0.0, %v2243
      %v2245 = vpop.f32.mrb[0].mxu0
      %2246 = vmatprep.mubr.bf16.mxu0 0
      %2247 = vmatmul.mubr.bf16.gmra.mrb[0].mxu0 %v2107
      %v2248 = vpop.f32.mrb[0].mxu0
      %v2249 = vadd.f32 0.0, %v2248
      %v2250 = vpop.f32.mrb[0].mxu0
      %v2251 = vpop.f32.mrb[0].mxu0
      %v2252 = vadd.f32 0.0, %v2251
      %v2253 = vpop.f32.mrb[0].mxu0
      %2254 = vmatprep.mubr.bf16.mxu0 0
      %2255 = vmatmul.mubr.bf16.gmra.mrb[0].mxu0 %v2108
      %v2256 = vpop.f32.mrb[0].mxu0
      %v2257 = vadd.f32 0.0, %v2256
      %v2258 = vpop.f32.mrb[0].mxu0
      %v2259 = vpop.f32.mrb[0].mxu0
      %v2260 = vadd.f32 0.0, %v2259
      %v2261 = vpop.f32.mrb[0].mxu0
      %2262 = vmatprep.mubr.bf16.mxu0 0
      %2263 = vmatmul.mubr.bf16.gmra.mrb[0].mxu0 %v2109
      %v2264 = vpop.f32.mrb[0].mxu0
      %v2265 = vadd.f32 0.0, %v2264
      %v2266 = vpop.f32.mrb[0].mxu0
      %v2267 = vpop.f32.mrb[0].mxu0
      %v2268 = vadd.f32 0.0, %v2267
      %v2269 = vpop.f32.mrb[0].mxu0
      %2270 = vmatprep.mubr.bf16.mxu0 0
      %2271 = vmatmul.mubr.bf16.gmra.mrb[0].mxu0 %v2110
      %v2272 = vpop.f32.mrb[0].mxu0
      %v2273 = vadd.f32 0.0, %v2272
      %v2274 = vpop.f32.mrb[0].mxu0
      %v2275 = vpop.f32.mrb[0].mxu0
      %v2276 = vadd.f32 0.0, %v2275
      %v2277 = vpop.f32.mrb[0].mxu0
      %2278 = vmatprep.mubr.bf16.mxu0 0
      %2279 = vmatmul.mubr.bf16.gmra.mrb[0].mxu0 %v2111
      %v2280 = vpop.f32.mrb[0].mxu0
      %v2281 = vadd.f32 0.0, %v2280
      %v2282 = vpop.f32.mrb[0].mxu0
      %v2283 = vpop.f32.mrb[0].mxu0
      %v2284 = vadd.f32 0.0, %v2283
      %v2285 = vpop.f32.mrb[0].mxu0
      %2286 = vmatprep.mubr.bf16.mxu0 0
      %2287 = vmatmul.mubr.bf16.gmra.mrb[0].mxu0 %v2112
      %v2288 = vpop.f32.mrb[0].mxu0
      %v2289 = vadd.f32 0.0, %v2288
      %v2290 = vpop.f32.mrb[0].mxu0
      %v2291 = vpop.f32.mrb[0].mxu0
      %v2292 = vadd.f32 0.0, %v2291
      %v2293 = vpop.f32.mrb[0].mxu0
      %2294 = vmatprep.mubr.bf16.mxu0 0
      %2295 = vmatmul.mubr.bf16.gmra.mrb[0].mxu0 %v2113
      %v2296 = vpop.f32.mrb[0].mxu0
      %v2297 = vadd.f32 0.0, %v2296
      %v2298 = vpop.f32.mrb[0].mxu0
      %v2299 = vpop.f32.mrb[0].mxu0
      %v2300 = vadd.f32 0.0, %v2299
      %v2301 = vpop.f32.mrb[0].mxu0
      %2302 = vmatprep.mubr.bf16.mxu0 0
      %2303 = vmatmul.mubr.bf16.gmra.mrb[0].mxu0 %v2114
      %v2304 = vpop.f32.mrb[0].mxu0
      %v2305 = vadd.f32 0.0, %v2304
      %v2306 = vpop.f32.mrb[0].mxu0
      %v2307 = vpop.f32.mrb[0].mxu0
      %v2308 = vadd.f32 0.0, %v2307
      %v2309 = vpop.f32.mrb[0].mxu0
      %2310 = vmatprep.mubr.bf16.mxu0 0
      %2311 = vmatmul.mubr.bf16.gmra.mrb[0].mxu0 %v2115
      %v2312 = vpop.f32.mrb[0].mxu0
      %v2313 = vadd.f32 0.0, %v2312
      %v2314 = vpop.f32.mrb[0].mxu0
      %v2315 = vpop.f32.mrb[0].mxu0
      %v2316 = vadd.f32 0.0, %v2315
      %v2317 = vpop.f32.mrb[0].mxu0
      %2318 = vmatprep.mubr.bf16.mxu0 0
      %2319 = vmatmul.mubr.bf16.gmra.mrb[0].mxu0 %v2116
      %v2320 = vpop.f32.mrb[0].mxu0
      %v2321 = vadd.f32 0.0, %v2320
      %v2322 = vpop.f32.mrb[0].mxu0
      %v2323 = vpop.f32.mrb[0].mxu0
      %v2324 = vadd.f32 0.0, %v2323
      %v2325 = vpop.f32.mrb[0].mxu0
      %2326 = vdwg.mxu0
      %v2327 = vadd.f32 %v2047, %v2217
      %v2328 = vadd.f32 %v2048, %v2220
      %v2329 = vadd.f32 %v2049, %v2225
      %v2330 = vadd.f32 %v2050, %v2228
      %v2331 = vadd.f32 %v2051, %v2233
      %v2332 = vadd.f32 %v2052, %v2236
      %v2333 = vadd.f32 %v2053, %v2241
      %v2334 = vadd.f32 %v2054, %v2244
      %v2335 = vadd.f32 %v2055, %v2249
      %v2336 = vadd.f32 %v2056, %v2252
      %v2337 = vadd.f32 %v2057, %v2257
      %v2338 = vadd.f32 %v2058, %v2260
      %v2339 = vadd.f32 %v2059, %v2265
      %v2340 = vadd.f32 %v2060, %v2268
      %v2341 = vadd.f32 %v2061, %v2273
      %v2342 = vadd.f32 %v2062, %v2276
      %v2343 = vadd.f32 %v2063, %v2281
      %v2344 = vadd.f32 %v2064, %v2284
      %v2345 = vadd.f32 %v2065, %v2289
      %v2346 = vadd.f32 %v2066, %v2292
      %v2347 = vadd.f32 %v2067, %v2297
      %v2348 = vadd.f32 %v2068, %v2300
      %v2349 = vadd.f32 %v2069, %v2305
      %v2350 = vadd.f32 %v2070, %v2308
      %v2351 = vadd.f32 %v2071, %v2313
      %v2352 = vadd.f32 %v2072, %v2316
      %v2353 = vadd.f32 %v2073, %v2321
      %v2354 = vadd.f32 %v2074, %v2324
      %v2355 = vld [vmem:[%s165 + $0x22] sm:$0xff]
      %v2356 = vld [vmem:[%s165 + $0x2a] sm:$0xff]
      %v2357 = vld [vmem:[%s165 + $0x32] sm:$0xff]
      %v2358 = vld [vmem:[%s165 + $0x3a] sm:$0xff]
      %v2359 = vld [vmem:[%s165 + $0x42] sm:$0xff]
      %v2360 = vld [vmem:[%s165 + $0x4a] sm:$0xff]
      %v2361 = vld [vmem:[%s165 + $0x52] sm:$0xff]
      %v2362 = vld [vmem:[%s165 + $0x5a] sm:$0xff]
      %v2363 = vld [vmem:[%s165 + $0x62] sm:$0xff]
      %v2364 = vld [vmem:[%s165 + $0x6a] sm:$0xff]
      %v2365 = vld [vmem:[%s165 + $0x72] sm:$0xff]
      %v2366 = vld [vmem:[%s165 + $0x7a] sm:$0xff]
      %v2367 = vld [vmem:[%s165 + $0x82] sm:$0xff]
      %v2368 = vld [vmem:[%s165 + $0x8a] sm:$0xff]
      %v2369 = vld [vmem:[%s165 + $0x92] sm:$0xff]
      %v2370 = vld [vmem:[%s165 + $0x9a] sm:$0xff]
      %v2371 = vld [vmem:[%s165 + $0xa2] sm:$0xff]
      %v2372 = vld [vmem:[%s165 + $0xaa] sm:$0xff]
      %v2373 = vld [vmem:[%s165 + $0xb2] sm:$0xff]
      %v2374 = vld [vmem:[%s165 + $0xba] sm:$0xff]
      %v2375 = vld [vmem:[%s165 + $0xc2] sm:$0xff]
      %v2376 = vld [vmem:[%s165 + $0xca] sm:$0xff]
      %v2377 = vld [vmem:[%s165 + $0xd2] sm:$0xff]
      %v2378 = vld [vmem:[%s165 + $0xda] sm:$0xff]
      %v2379 = vld [vmem:[%s165 + $0xe2] sm:$0xff]
      %v2380 = vld [vmem:[%s165 + $0xea] sm:$0xff]
      %v2381 = vld [vmem:[%s165 + $0xf2] sm:$0xff]
      %v2382 = vld [vmem:[%s165 + $0xfa] sm:$0xff]
      %v2383 = vpack.c.bf16 %v2356, %v2355
      %v2384 = vpack.c.bf16 %v2358, %v2357
      %v2385 = vpack.c.bf16 %v2360, %v2359
      %v2386 = vpack.c.bf16 %v2362, %v2361
      %v2387 = vpack.c.bf16 %v2364, %v2363
      %v2388 = vpack.c.bf16 %v2366, %v2365
      %v2389 = vpack.c.bf16 %v2368, %v2367
      %v2390 = vpack.c.bf16 %v2370, %v2369
      %v2391 = vpack.c.bf16 %v2372, %v2371
      %v2392 = vpack.c.bf16 %v2374, %v2373
      %v2393 = vpack.c.bf16 %v2376, %v2375
      %v2394 = vpack.c.bf16 %v2378, %v2377
      %v2395 = vpack.c.bf16 %v2380, %v2379
      %v2396 = vpack.c.bf16 %v2382, %v2381
      %s2397 = scalar_lea.vmem %s1, 512
      %v2398 = vld [vmem:[%s2397] sm:$0xf]
      %v2399 = vld [vmem:[%s2397 + $0x4] sm:$0xf]
      %v2400 = vld [vmem:[%s2397 + $0x8] sm:$0xf]
      %v2401 = vld [vmem:[%s2397 + $0xc] sm:$0xf]
      %v2402 = vld [vmem:[%s2397 + $0x10] sm:$0xf]
      %v2403 = vld [vmem:[%s2397 + $0x14] sm:$0xf]
      %v2404 = vld [vmem:[%s2397 + $0x18] sm:$0xf]
      %v2405 = vld [vmem:[%s2397 + $0x1c] sm:$0xf]
      %v2406 = vld [vmem:[%s2397 + $0x20] sm:$0xf]
      %v2407 = vld [vmem:[%s2397 + $0x24] sm:$0xf]
      %v2408 = vld [vmem:[%s2397 + $0x28] sm:$0xf]
      %v2409 = vld [vmem:[%s2397 + $0x2c] sm:$0xf]
      %v2410 = vld [vmem:[%s2397 + $0x30] sm:$0xf]
      %v2411 = vld [vmem:[%s2397 + $0x34] sm:$0xf]
      %v2412 = vld [vmem:[%s2397 + $0x38] sm:$0xf]
      %v2413 = vld [vmem:[%s2397 + $0x3c] sm:$0xf]
      %v2430 = vunpack.c.l.b16 %v2398
      %v2431 = vunpack.c.l.b16 %v2399
      %v2432 = vunpack.c.l.b16 %v2400
      %v2433 = vunpack.c.l.b16 %v2401
      %v2434 = vunpack.c.l.b16 %v2402
      %v2435 = vunpack.c.l.b16 %v2403
      %v2436 = vunpack.c.l.b16 %v2404
      %v2437 = vunpack.c.l.b16 %v2405
      %v2438 = vunpack.c.l.b16 %v2406
      %v2439 = vunpack.c.l.b16 %v2407
      %v2440 = vunpack.c.l.b16 %v2408
      %v2441 = vunpack.c.l.b16 %v2409
      %v2442 = vunpack.c.l.b16 %v2410
      %v2443 = vunpack.c.l.b16 %v2411
      %v2444 = vunpack.c.l.b16 %v2412
      %v2445 = vunpack.c.l.b16 %v2413
      %v2446 = vpack.c.b16 %v2431, %v2430
      %v2447 = vpack.c.b16 %v2433, %v2432
      %v2448 = vpack.c.b16 %v2435, %v2434
      %v2449 = vpack.c.b16 %v2437, %v2436
      %v2450 = vpack.c.b16 %v2439, %v2438
      %v2451 = vpack.c.b16 %v2441, %v2440
      %v2452 = vpack.c.b16 %v2443, %v2442
      %v2453 = vpack.c.b16 %v2445, %v2444
      %2462 = vmatprep.subr.bf16.mxu0 0
      %2463 = vmatpush1.bf16.msra.mxu0 %v2446
      %2464 = vmatprep.subr.bf16.mxu0 0
      %2465 = vmatpush1.bf16.msra.mxu0 %v2447
      %2466 = vmatprep.subr.bf16.mxu0 0
      %2467 = vmatpush1.bf16.msra.mxu0 %v2448
      %2468 = vmatprep.subr.bf16.mxu0 0
      %2469 = vmatpush1.bf16.msra.mxu0 %v2449
      %2470 = vmatprep.subr.bf16.mxu0 0
      %2471 = vmatpush1.bf16.msra.mxu0 %v2450
      %2472 = vmatprep.subr.bf16.mxu0 0
      %2473 = vmatpush1.bf16.msra.mxu0 %v2451
      %2474 = vmatprep.subr.bf16.mxu0 0
      %2475 = vmatpush1.bf16.msra.mxu0 %v2452
      %2476 = vmatprep.subr.bf16.mxu0 0
      %2477 = vmatpush1.bf16.msra.mxu0 %v2453
      %2478 = vmatprep.subr.bf16.mxu0 0
      %2479 = vmatpush1.bf16.msra.mxu0 0
      %2480 = vmatprep.subr.bf16.mxu0 0
      %2481 = vmatpush1.bf16.msra.mxu0 0
      %2482 = vmatprep.subr.bf16.mxu0 0
      %2483 = vmatpush1.bf16.msra.mxu0 0
      %2484 = vmatprep.subr.bf16.mxu0 0
      %2485 = vmatpush1.bf16.msra.mxu0 0
      %2486 = vmatprep.subr.bf16.mxu0 0
      %2487 = vmatpush1.bf16.msra.mxu0 0
      %2488 = vmatprep.subr.bf16.mxu0 0
      %2489 = vmatpush1.bf16.msra.mxu0 0
      %2490 = vmatprep.subr.bf16.mxu0 0
      %2491 = vmatpush1.bf16.msra.mxu0 0
      %2492 = vmatprep.subr.bf16.mxu0 0
      %2493 = vmatpush1.bf16.msra.mxu0 0
      %2494 = vmatprep.mubr.bf16.mxu0 0
      %2495 = vmatmul.mubr.bf16.gmra.mrb[0].mxu0 %v2383
      %v2496 = vpop.f32.mrb[0].mxu0
      %v2497 = vadd.f32 0.0, %v2496
      %v2498 = vpop.f32.mrb[0].mxu0
      %v2499 = vpop.f32.mrb[0].mxu0
      %v2500 = vadd.f32 0.0, %v2499
      %v2501 = vpop.f32.mrb[0].mxu0
      %2502 = vmatprep.mubr.bf16.mxu0 0
      %2503 = vmatmul.mubr.bf16.gmra.mrb[0].mxu0 %v2384
      %v2504 = vpop.f32.mrb[0].mxu0
      %v2505 = vadd.f32 0.0, %v2504
      %v2506 = vpop.f32.mrb[0].mxu0
      %v2507 = vpop.f32.mrb[0].mxu0
      %v2508 = vadd.f32 0.0, %v2507
      %v2509 = vpop.f32.mrb[0].mxu0
      %2510 = vmatprep.mubr.bf16.mxu0 0
      %2511 = vmatmul.mubr.bf16.gmra.mrb[0].mxu0 %v2385
      %v2512 = vpop.f32.mrb[0].mxu0
      %v2513 = vadd.f32 0.0, %v2512
      %v2514 = vpop.f32.mrb[0].mxu0
      %v2515 = vpop.f32.mrb[0].mxu0
      %v2516 = vadd.f32 0.0, %v2515
      %v2517 = vpop.f32.mrb[0].mxu0
      %2518 = vmatprep.mubr.bf16.mxu0 0
      %2519 = vmatmul.mubr.bf16.gmra.mrb[0].mxu0 %v2386
      %v2520 = vpop.f32.mrb[0].mxu0
      %v2521 = vadd.f32 0.0, %v2520
      %v2522 = vpop.f32.mrb[0].mxu0
      %v2523 = vpop.f32.mrb[0].mxu0
      %v2524 = vadd.f32 0.0, %v2523
      %v2525 = vpop.f32.mrb[0].mxu0
      %2526 = vmatprep.mubr.bf16.mxu0 0
      %2527 = vmatmul.mubr.bf16.gmra.mrb[0].mxu0 %v2387
      %v2528 = vpop.f32.mrb[0].mxu0
      %v2529 = vadd.f32 0.0, %v2528
      %v2530 = vpop.f32.mrb[0].mxu0
      %v2531 = vpop.f32.mrb[0].mxu0
      %v2532 = vadd.f32 0.0, %v2531
      %v2533 = vpop.f32.mrb[0].mxu0
      %2534 = vmatprep.mubr.bf16.mxu0 0
      %2535 = vmatmul.mubr.bf16.gmra.mrb[0].mxu0 %v2388
      %v2536 = vpop.f32.mrb[0].mxu0
      %v2537 = vadd.f32 0.0, %v2536
      %v2538 = vpop.f32.mrb[0].mxu0
      %v2539 = vpop.f32.mrb[0].mxu0
      %v2540 = vadd.f32 0.0, %v2539
      %v2541 = vpop.f32.mrb[0].mxu0
      %2542 = vmatprep.mubr.bf16.mxu0 0
      %2543 = vmatmul.mubr.bf16.gmra.mrb[0].mxu0 %v2389
      %v2544 = vpop.f32.mrb[0].mxu0
      %v2545 = vadd.f32 0.0, %v2544
      %v2546 = vpop.f32.mrb[0].mxu0
      %v2547 = vpop.f32.mrb[0].mxu0
      %v2548 = vadd.f32 0.0, %v2547
      %v2549 = vpop.f32.mrb[0].mxu0
      %2550 = vmatprep.mubr.bf16.mxu0 0
      %2551 = vmatmul.mubr.bf16.gmra.mrb[0].mxu0 %v2390
      %v2552 = vpop.f32.mrb[0].mxu0
      %v2553 = vadd.f32 0.0, %v2552
      %v2554 = vpop.f32.mrb[0].mxu0
      %v2555 = vpop.f32.mrb[0].mxu0
      %v2556 = vadd.f32 0.0, %v2555
      %v2557 = vpop.f32.mrb[0].mxu0
      %2558 = vmatprep.mubr.bf16.mxu0 0
      %2559 = vmatmul.mubr.bf16.gmra.mrb[0].mxu0 %v2391
      %v2560 = vpop.f32.mrb[0].mxu0
      %v2561 = vadd.f32 0.0, %v2560
      %v2562 = vpop.f32.mrb[0].mxu0
      %v2563 = vpop.f32.mrb[0].mxu0
      %v2564 = vadd.f32 0.0, %v2563
      %v2565 = vpop.f32.mrb[0].mxu0
      %2566 = vmatprep.mubr.bf16.mxu0 0
      %2567 = vmatmul.mubr.bf16.gmra.mrb[0].mxu0 %v2392
      %v2568 = vpop.f32.mrb[0].mxu0
      %v2569 = vadd.f32 0.0, %v2568
      %v2570 = vpop.f32.mrb[0].mxu0
      %v2571 = vpop.f32.mrb[0].mxu0
      %v2572 = vadd.f32 0.0, %v2571
      %v2573 = vpop.f32.mrb[0].mxu0
      %2574 = vmatprep.mubr.bf16.mxu0 0
      %2575 = vmatmul.mubr.bf16.gmra.mrb[0].mxu0 %v2393
      %v2576 = vpop.f32.mrb[0].mxu0
      %v2577 = vadd.f32 0.0, %v2576
      %v2578 = vpop.f32.mrb[0].mxu0
      %v2579 = vpop.f32.mrb[0].mxu0
      %v2580 = vadd.f32 0.0, %v2579
      %v2581 = vpop.f32.mrb[0].mxu0
      %2582 = vmatprep.mubr.bf16.mxu0 0
      %2583 = vmatmul.mubr.bf16.gmra.mrb[0].mxu0 %v2394
      %v2584 = vpop.f32.mrb[0].mxu0
      %v2585 = vadd.f32 0.0, %v2584
      %v2586 = vpop.f32.mrb[0].mxu0
      %v2587 = vpop.f32.mrb[0].mxu0
      %v2588 = vadd.f32 0.0, %v2587
      %v2589 = vpop.f32.mrb[0].mxu0
      %2590 = vmatprep.mubr.bf16.mxu0 0
      %2591 = vmatmul.mubr.bf16.gmra.mrb[0].mxu0 %v2395
      %v2592 = vpop.f32.mrb[0].mxu0
      %v2593 = vadd.f32 0.0, %v2592
      %v2594 = vpop.f32.mrb[0].mxu0
      %v2595 = vpop.f32.mrb[0].mxu0
      %v2596 = vadd.f32 0.0, %v2595
      %v2597 = vpop.f32.mrb[0].mxu0
      %2598 = vmatprep.mubr.bf16.mxu0 0
      %2599 = vmatmul.mubr.bf16.gmra.mrb[0].mxu0 %v2396
      %v2600 = vpop.f32.mrb[0].mxu0
      %v2601 = vadd.f32 0.0, %v2600
      %v2602 = vpop.f32.mrb[0].mxu0
      %v2603 = vpop.f32.mrb[0].mxu0
      %v2604 = vadd.f32 0.0, %v2603
      %v2605 = vpop.f32.mrb[0].mxu0
      %2606 = vdwg.mxu0
      %v2607 = vadd.f32 %v2327, %v2497
      %v2608 = vadd.f32 %v2328, %v2500
      %v2609 = vadd.f32 %v2329, %v2505
      %v2610 = vadd.f32 %v2330, %v2508
      %v2611 = vadd.f32 %v2331, %v2513
      %v2612 = vadd.f32 %v2332, %v2516
      %v2613 = vadd.f32 %v2333, %v2521
      %v2614 = vadd.f32 %v2334, %v2524
      %v2615 = vadd.f32 %v2335, %v2529
      %v2616 = vadd.f32 %v2336, %v2532
      %v2617 = vadd.f32 %v2337, %v2537
      %v2618 = vadd.f32 %v2338, %v2540
      %v2619 = vadd.f32 %v2339, %v2545
      %v2620 = vadd.f32 %v2340, %v2548
      %v2621 = vadd.f32 %v2341, %v2553
      %v2622 = vadd.f32 %v2342, %v2556
      %v2623 = vadd.f32 %v2343, %v2561
      %v2624 = vadd.f32 %v2344, %v2564
      %v2625 = vadd.f32 %v2345, %v2569
      %v2626 = vadd.f32 %v2346, %v2572
      %v2627 = vadd.f32 %v2347, %v2577
      %v2628 = vadd.f32 %v2348, %v2580
      %v2629 = vadd.f32 %v2349, %v2585
      %v2630 = vadd.f32 %v2350, %v2588
      %v2631 = vadd.f32 %v2351, %v2593
      %v2632 = vadd.f32 %v2352, %v2596
      %v2633 = vadd.f32 %v2353, %v2601
      %v2634 = vadd.f32 %v2354, %v2604
      %v2635 = vld [vmem:[%s2] sm:$0x1]
      %v2637 = vlaneseq
      %v2638 = vshrl.u32 %v2637, 7
      %v2639 = vsub.s32 0, %v2638
      %v2640 = vrot.slane %v2635, %v2639
      %v2642 = vadd.f32 %v2607, %v2640
      %v2643 = vadd.f32 %v2608, %v2640
      %v2644 = vadd.f32 %v2609, %v2640
      %v2645 = vadd.f32 %v2610, %v2640
      %v2646 = vadd.f32 %v2611, %v2640
      %v2647 = vadd.f32 %v2612, %v2640
      %v2648 = vadd.f32 %v2613, %v2640
      %v2649 = vadd.f32 %v2614, %v2640
      %v2650 = vadd.f32 %v2615, %v2640
      %v2651 = vadd.f32 %v2616, %v2640
      %v2652 = vadd.f32 %v2617, %v2640
      %v2653 = vadd.f32 %v2618, %v2640
      %v2654 = vadd.f32 %v2619, %v2640
      %v2655 = vadd.f32 %v2620, %v2640
      %v2656 = vadd.f32 %v2621, %v2640
      %v2657 = vadd.f32 %v2622, %v2640
      %v2658 = vadd.f32 %v2623, %v2640
      %v2659 = vadd.f32 %v2624, %v2640
      %v2660 = vadd.f32 %v2625, %v2640
      %v2661 = vadd.f32 %v2626, %v2640
      %v2662 = vadd.f32 %v2627, %v2640
      %v2663 = vadd.f32 %v2628, %v2640
      %v2664 = vadd.f32 %v2629, %v2640
      %v2665 = vadd.f32 %v2630, %v2640
      %v2666 = vadd.f32 %v2631, %v2640
      %v2667 = vadd.f32 %v2632, %v2640
      %v2668 = vadd.f32 %v2633, %v2640
      %v2669 = vadd.f32 %v2634, %v2640
      %v2670 = vmax.f32 %v2642, 0.0
      %v2671 = vmax.f32 %v2643, 0.0
      %v2672 = vmax.f32 %v2644, 0.0
      %v2673 = vmax.f32 %v2645, 0.0
      %v2674 = vmax.f32 %v2646, 0.0
      %v2675 = vmax.f32 %v2647, 0.0
      %v2676 = vmax.f32 %v2648, 0.0
      %v2677 = vmax.f32 %v2649, 0.0
      %v2678 = vmax.f32 %v2650, 0.0
      %v2679 = vmax.f32 %v2651, 0.0
      %v2680 = vmax.f32 %v2652, 0.0
      %v2681 = vmax.f32 %v2653, 0.0
      %v2682 = vmax.f32 %v2654, 0.0
      %v2683 = vmax.f32 %v2655, 0.0
      %v2684 = vmax.f32 %v2656, 0.0
      %v2685 = vmax.f32 %v2657, 0.0
      %v2686 = vmax.f32 %v2658, 0.0
      %v2687 = vmax.f32 %v2659, 0.0
      %v2688 = vmax.f32 %v2660, 0.0
      %v2689 = vmax.f32 %v2661, 0.0
      %v2690 = vmax.f32 %v2662, 0.0
      %v2691 = vmax.f32 %v2663, 0.0
      %v2692 = vmax.f32 %v2664, 0.0
      %v2693 = vmax.f32 %v2665, 0.0
      %v2694 = vmax.f32 %v2666, 0.0
      %v2695 = vmax.f32 %v2667, 0.0
      %v2696 = vmax.f32 %v2668, 0.0
      %v2697 = vmax.f32 %v2669, 0.0
      %2698 = vst [vmem:[%s170] sm:$0xff] %v2670
      %2699 = vst [vmem:[%s170 + $0x8] sm:$0xff] %v2671
      %2700 = vst [vmem:[%s170 + $0x10] sm:$0xff] %v2672
      %2701 = vst [vmem:[%s170 + $0x18] sm:$0xff] %v2673
      %2702 = vst [vmem:[%s170 + $0x20] sm:$0xff] %v2674
      %2703 = vst [vmem:[%s170 + $0x28] sm:$0xff] %v2675
      %2704 = vst [vmem:[%s170 + $0x30] sm:$0xff] %v2676
      %2705 = vst [vmem:[%s170 + $0x38] sm:$0xff] %v2677
      %2706 = vst [vmem:[%s170 + $0x40] sm:$0xff] %v2678
      %2707 = vst [vmem:[%s170 + $0x48] sm:$0xff] %v2679
      %2708 = vst [vmem:[%s170 + $0x50] sm:$0xff] %v2680
      %2709 = vst [vmem:[%s170 + $0x58] sm:$0xff] %v2681
      %2710 = vst [vmem:[%s170 + $0x60] sm:$0xff] %v2682
      %2711 = vst [vmem:[%s170 + $0x68] sm:$0xff] %v2683
      %2712 = vst [vmem:[%s170 + $0x70] sm:$0xff] %v2684
      %2713 = vst [vmem:[%s170 + $0x78] sm:$0xff] %v2685
      %2714 = vst [vmem:[%s170 + $0x80] sm:$0xff] %v2686
      %2715 = vst [vmem:[%s170 + $0x88] sm:$0xff] %v2687
      %2716 = vst [vmem:[%s170 + $0x90] sm:$0xff] %v2688
      %2717 = vst [vmem:[%s170 + $0x98] sm:$0xff] %v2689
      %2718 = vst [vmem:[%s170 + $0xa0] sm:$0xff] %v2690
      %2719 = vst [vmem:[%s170 + $0xa8] sm:$0xff] %v2691
      %2720 = vst [vmem:[%s170 + $0xb0] sm:$0xff] %v2692
      %2721 = vst [vmem:[%s170 + $0xb8] sm:$0xff] %v2693
      %2722 = vst [vmem:[%s170 + $0xc0] sm:$0xff] %v2694
      %2723 = vst [vmem:[%s170 + $0xc8] sm:$0xff] %v2695
      %2724 = vst [vmem:[%s170 + $0xd0] sm:$0xff] %v2696
      %2725 = vst [vmem:[%s170 + $0xd8] sm:$0xff] %v2697
      %p2726 = scmp.lt.s32.totalorder %s14, 1
      %s2727 = scalar_select %p2726, %s14, 1
      %s2728 = smul.addr %s2727, 28
      %s2729 = smul.addr %s2728, 8
      %s2730 = scalar_lea.vmem %s3, %s2729
      // Predicated region
      $region33: #{_lambda_.3} parent=31 // pred_check
        %p2731 = pneg %p100
      $region34: #{_lambda_.3} parent=31 // pred_check_branch
        %2733 = sbr.rel (%p2731) target = $region36
      $region35: #{_lambda_.3} parent=31 // pred_region
        _
      $region36: #{_lambda_.3} parent=31 // pred_fallthru
        _
    $region32: #{_lambda_.3} parent=5 // pred_fallthru
      _
    %p2734 = scmp.le.s32.totalorder 2, %s9
    // Predicated region
    $region37: #{_lambda_.3} parent=5 // pred_check
      %p2735 = pneg %p2734
    $region38: #{_lambda_.3} parent=5 // pred_check_branch
      %2737 = sbr.rel (%p2735) target = $region40
    $region39: #{_lambda_.3} parent=5 // pred_region
      %s2738 = ssub.s32 %s9, 2
      // Predicated region
      $region41: #{_lambda_.3} parent=39 // pred_check
        %p2739 = pneg %p106
      $region42: #{_lambda_.3} parent=39 // pred_check_branch
        %2741 = sbr.rel (%p2739) target = $region44
      $region43: #{_lambda_.3} parent=39 // pred_region
        %p2742 = scmp.lt.s32.totalorder %s15, 1
        %s2743 = scalar_select %p2742, %s15, 1
        %s2744 = smul.addr %s2743, 28
        %s2745 = smul.addr %s2744, 8
        %s2746 = scalar_lea.vmem %s3, %s2745
      $region44: #{_lambda_.3} parent=39 // pred_fallthru
        _
    $region40: #{_lambda_.3} parent=5 // pred_fallthru
      _
  $region6: #{_lambda_.3} parent=0 // loop_footer
    %s13 = sadd.s32 1, %s9
  $region7: #{_lambda_.3} parent=0 // loop_footer_branch
    %8 = sbr.rel target = $region3
  $region8: #{_lambda_.3} parent=0 // loop_exit
    _

// kernel: _lambda_.4
$region0: #{_lambda_.4}
  #allocation0 [shape = 'u32[]', space=smem, size = 0x4, offset = 0x4, fixed_abs, tag = 'smem constant byte address 0x4 - core index']
  #allocation1 [shape = 'u32[144,128]{1,0:T(1,128)}', space=vmem, size = 0x12000, scoped, tag = 'internal scratch']
  %s0 = inlined_call_operand.vmem [shape: f32[2,210,128], index: 0, kind: input, shape index: {}]
  %s1 = inlined_call_operand.vmem [shape: bf16[9,128,128], index: 1, kind: input, shape index: {}]
  %s2 = inlined_call_operand.vmem [shape: f32[1,128], index: 2, kind: input, shape index: {}]
  %s3 = inlined_call_operand.vmem [shape: f32[2,168,128], index: 3, kind: output, shape index: {}]
  %s4 = sld [smem:[#allocation0]]
  $region45: #{_lambda_.4} parent=0
    _
  %s6 = ssub.s32 1, %s4
  %s7 = scalar_select 0, %s6, %s4
  loop: start=0, step=1, limit=4
  $region2: #{_lambda_.4} parent=0 // loop_pre_header
    _
  $region3: #{_lambda_.4} parent=0 // loop_header
    %s9 = sphi 0, %s13
    %p10 = scmp.ge.s32.totalorder %s9, 4
    %s19 = sphi 0, %s21
    %s22 = sphi 0, %s19
    %s23 = sphi 0, %s22
    %s39 = sphi 0, %s23
    %s43 = sphi 0, %s43
    %s45 = sphi 0, %s43
    %s46 = sphi 0, %s45
    %s60 = sphi 0, %s46
    %s64 = sphi 0, %s64
    %s66 = sphi 0, %s64
    %s67 = sphi 0, %s66
    %s81 = sphi 0, %s67
    %s87 = sphi 0, %s89
    %s90 = sphi 0, %s87
    %s91 = sphi 0, %s90
    %s107 = sphi 0, %s91
  $region4: #{_lambda_.4} parent=0 // loop_header_branch
    %12 = sbr.rel (%p10) target = $region8
  $region5: #{_lambda_.4} parent=0 // loop_body
    %s14 = ssub.s32 %s9, 1
    %s15 = ssub.s32 %s9, 2
    %s16 = sadd.s32 %s9, 1
    %s17 = ssub.s32 %s9, %s16
    %p18 = scmp.eq.s32.totalorder %s17, 0
    %s20 = sadd.s32 %s19, 1
    %s21 = scalar_select %p18, %s19, %s20
    %p24 = pneg %p18
    %p25 = scmp.eq.s32.totalorder %s9, 1
    %p26 = por %p24, %p25
    %p27 = scmp.ne.s32.totalorder %s19, %s22
    %p28 = scmp.eq.s32.totalorder %s9, 0
    %p29 = por %p27, %p28
    %p30 = scmp.ne.s32.totalorder %s19, %s22
    %p31 = scmp.eq.s32.totalorder %s14, 1
    %p32 = por %p30, %p31
    %p33 = scmp.ne.s32.totalorder %s22, %s23
    %p34 = scmp.eq.s32.totalorder %s14, 0
    %p35 = por %p33, %p34
    %p36 = scmp.ne.s32.totalorder %s22, %s23
    %p37 = scmp.eq.s32.totalorder %s15, 1
    %p38 = por %p36, %p37
    %p40 = scmp.ne.s32.totalorder %s23, %s39
    %p41 = scmp.eq.s32.totalorder %s15, 0
    %p42 = por %p40, %p41
    %s44 = sadd.s32 %s43, 1
    %p47 = scmp.eq.s32.totalorder %s9, 1
    %p48 = scmp.ne.s32.totalorder %s43, %s45
    %p49 = scmp.eq.s32.totalorder %s9, 0
    %p50 = por %p48, %p49
    %p51 = scmp.ne.s32.totalorder %s43, %s45
    %p52 = scmp.eq.s32.totalorder %s14, 1
    %p53 = por %p51, %p52
    %p54 = scmp.ne.s32.totalorder %s45, %s46
    %p55 = scmp.eq.s32.totalorder %s14, 0
    %p56 = por %p54, %p55
    %p57 = scmp.ne.s32.totalorder %s45, %s46
    %p58 = scmp.eq.s32.totalorder %s15, 1
    %p59 = por %p57, %p58
    %p61 = scmp.ne.s32.totalorder %s46, %s60
    %p62 = scmp.eq.s32.totalorder %s15, 0
    %p63 = por %p61, %p62
    %s65 = sadd.s32 %s64, 1
    %p68 = scmp.eq.s32.totalorder %s9, 1
    %p69 = scmp.ne.s32.totalorder %s64, %s66
    %p70 = scmp.eq.s32.totalorder %s9, 0
    %p71 = por %p69, %p70
    %p72 = scmp.ne.s32.totalorder %s64, %s66
    %p73 = scmp.eq.s32.totalorder %s14, 1
    %p74 = por %p72, %p73
    %p75 = scmp.ne.s32.totalorder %s66, %s67
    %p76 = scmp.eq.s32.totalorder %s14, 0
    %p77 = por %p75, %p76
    %p78 = scmp.ne.s32.totalorder %s66, %s67
    %p79 = scmp.eq.s32.totalorder %s15, 1
    %p80 = por %p78, %p79
    %p82 = scmp.ne.s32.totalorder %s67, %s81
    %p83 = scmp.eq.s32.totalorder %s15, 0
    %p84 = por %p82, %p83
    %s85 = ssub.s32 %s9, %s16
    %p86 = scmp.eq.s32.totalorder %s85, 0
    %s88 = sadd.s32 %s87, 1
    %s89 = scalar_select %p86, %s87, %s88
    %p92 = pneg %p86
    %p93 = scmp.eq.s32.totalorder %s9, 1
    %p94 = por %p92, %p93
    %p95 = scmp.ne.s32.totalorder %s87, %s90
    %p96 = scmp.eq.s32.totalorder %s9, 0
    %p97 = por %p95, %p96
    %p98 = scmp.ne.s32.totalorder %s87, %s90
    %p99 = scmp.eq.s32.totalorder %s14, 1
    %p100 = por %p98, %p99
    %p101 = scmp.ne.s32.totalorder %s90, %s91
    %p102 = scmp.eq.s32.totalorder %s14, 0
    %p103 = por %p101, %p102
    %p104 = scmp.ne.s32.totalorder %s90, %s91
    %p105 = scmp.eq.s32.totalorder %s15, 1
    %p106 = por %p104, %p105
    %p108 = scmp.ne.s32.totalorder %s91, %s107
    %p109 = scmp.eq.s32.totalorder %s15, 0
    %p110 = por %p108, %p109
    %p111 = scmp.le.s32.totalorder 1, %s9
    %p112 = scmp.lt.s32.totalorder %s9, 3
    %p113 = pnand %p111, %p112
    %p114 = pneg %p113
    // Predicated region
    $region9: #{_lambda_.4} parent=5 // pred_check
      _
    $region10: #{_lambda_.4} parent=5 // pred_check_branch
      %116 = sbr.rel (%p113) target = $region12
    $region11: #{_lambda_.4} parent=5 // pred_region
      %s117 = ssub.s32 %s9, 1
      // Predicated region
      $region13: #{_lambda_.4} parent=11 // pred_check
        %p118 = pneg %p56
      $region14: #{_lambda_.4} parent=11 // pred_check_branch
        %120 = sbr.rel (%p118) target = $region16
      $region15: #{_lambda_.4} parent=11 // pred_region
        _
      $region16: #{_lambda_.4} parent=11 // pred_fallthru
        _
      // Predicated region
      $region17: #{_lambda_.4} parent=11 // pred_check
        %p121 = pneg %p77
      $region18: #{_lambda_.4} parent=11 // pred_check_branch
        %123 = sbr.rel (%p121) target = $region20
      $region19: #{_lambda_.4} parent=11 // pred_region
        _
      $region20: #{_lambda_.4} parent=11 // pred_fallthru
        _
    $region12: #{_lambda_.4} parent=5 // pred_fallthru
      _
    %p124 = scmp.lt.s32.totalorder %s9, 2
    // Predicated region
    $region21: #{_lambda_.4} parent=5 // pred_check
      %p125 = pneg %p124
    $region22: #{_lambda_.4} parent=5 // pred_check_branch
      %127 = sbr.rel (%p125) target = $region24
    $region23: #{_lambda_.4} parent=5 // pred_region
      // Predicated region
      $region25: #{_lambda_.4} parent=23 // pred_check
        %p128 = pneg %p29
      $region26: #{_lambda_.4} parent=23 // pred_check_branch
        %130 = sbr.rel (%p128) target = $region28
      $region27: #{_lambda_.4} parent=23 // pred_region
        %p131 = scmp.lt.s32.totalorder %s9, 1
        %s132 = scalar_select %p131, %s9, 1
        %s133 = smul.addr %s132, 27
        %s134 = smul.addr %s133, 8
        %s135 = scalar_lea.vmem %s0, %s134
      $region28: #{_lambda_.4} parent=23 // pred_fallthru
        _
    $region24: #{_lambda_.4} parent=5 // pred_fallthru
      _
    %p136 = scmp.le.s32.totalorder 1, %s9
    %p137 = scmp.lt.s32.totalorder %s9, 3
    %p138 = pnand %p136, %p137
    %p139 = pneg %p138
    // Predicated region
    $region29: #{_lambda_.4} parent=5 // pred_check
      _
    $region30: #{_lambda_.4} parent=5 // pred_check_branch
      %141 = sbr.rel (%p138) target = $region32
    $region31: #{_lambda_.4} parent=5 // pred_region
      %s142 = ssub.s32 %s9, 1
      %p143 = scmp.lt.s32.totalorder %s14, 1
      %s144 = scalar_select %p143, %s14, 1
      %s145 = smul.addr %s144, 27
      %s146 = smul.addr %s145, 8
      %s147 = scalar_lea.vmem %s0, %s146
      %p148 = pneg %p35
      %p149 = pneg %p32
      %p150 = pneg %p56
      %p151 = pneg %p53
      %p152 = pneg %p77
      %p153 = pneg %p74
      %p154 = pneg %p103
      %p155 = pneg %p100
      %p156 = scmp.lt.s32.totalorder %s14, 1
      %s157 = scalar_select %p156, %s14, 1
      %s158 = smul.addr %s157, 21
      %s159 = smul.addr %s158, 8
      %s160 = scalar_lea.vmem %s3, %s159
      %p161 = scmp.lt.s32.totalorder %s14, 1
      %s162 = scalar_select %p161, %s14, 1
      %s163 = smul.addr %s162, 27
      %s164 = smul.addr %s163, 8
      %s165 = scalar_lea.vmem %s0, %s164
      %p166 = scmp.lt.s32.totalorder %s14, 1
      %s167 = scalar_select %p166, %s14, 1
      %s168 = smul.addr %s167, 21
      %s169 = smul.addr %s168, 8
      %s170 = scalar_lea.vmem %s3, %s169
      %v172 = vld [vmem:[%s165] sm:$0xff]
      %v173 = vld [vmem:[%s165 + $0x8] sm:$0xff]
      %v174 = vld [vmem:[%s165 + $0x10] sm:$0xff]
      %v175 = vld [vmem:[%s165 + $0x18] sm:$0xff]
      %v176 = vld [vmem:[%s165 + $0x20] sm:$0xff]
      %v177 = vld [vmem:[%s165 + $0x28] sm:$0xff]
      %v178 = vld [vmem:[%s165 + $0x30] sm:$0xff]
      %v179 = vld [vmem:[%s165 + $0x38] sm:$0xff]
      %v180 = vld [vmem:[%s165 + $0x40] sm:$0xff]
      %v181 = vld [vmem:[%s165 + $0x48] sm:$0xff]
      %v182 = vld [vmem:[%s165 + $0x50] sm:$0xff]
      %v183 = vld [vmem:[%s165 + $0x58] sm:$0xff]
      %v184 = vld [vmem:[%s165 + $0x60] sm:$0xff]
      %v185 = vld [vmem:[%s165 + $0x68] sm:$0xff]
      %v186 = vld [vmem:[%s165 + $0x70] sm:$0xff]
      %v187 = vld [vmem:[%s165 + $0x78] sm:$0xff]
      %v188 = vld [vmem:[%s165 + $0x80] sm:$0xff]
      %v189 = vld [vmem:[%s165 + $0x88] sm:$0xff]
      %v190 = vld [vmem:[%s165 + $0x90] sm:$0xff]
      %v191 = vld [vmem:[%s165 + $0x98] sm:$0xff]
      %v192 = vld [vmem:[%s165 + $0xa0] sm:$0xff]
      %v193 = vpack.c.bf16 %v173, %v172
      %v194 = vpack.c.bf16 %v175, %v174
      %v195 = vpack.c.bf16 %v177, %v176
      %v196 = vpack.c.bf16 %v179, %v178
      %v197 = vpack.c.bf16 %v181, %v180
      %v198 = vpack.c.bf16 %v183, %v182
      %v199 = vpack.c.bf16 %v185, %v184
      %v200 = vpack.c.bf16 %v187, %v186
      %v201 = vpack.c.bf16 %v189, %v188
      %v202 = vpack.c.bf16 %v191, %v190
      %v203 = vpack.c.bf16 %v192, %v192
      %v204 = vld [vmem:[%s1] sm:$0xf]
      %v205 = vld [vmem:[%s1 + $0x4] sm:$0xf]
      %v206 = vld [vmem:[%s1 + $0x8] sm:$0xf]
      %v207 = vld [vmem:[%s1 + $0xc] sm:$0xf]
      %v208 = vld [vmem:[%s1 + $0x10] sm:$0xf]
      %v209 = vld [vmem:[%s1 + $0x14] sm:$0xf]
      %v210 = vld [vmem:[%s1 + $0x18] sm:$0xf]
      %v211 = vld [vmem:[%s1 + $0x1c] sm:$0xf]
      %v212 = vld [vmem:[%s1 + $0x20] sm:$0xf]
      %v213 = vld [vmem:[%s1 + $0x24] sm:$0xf]
      %v214 = vld [vmem:[%s1 + $0x28] sm:$0xf]
      %v215 = vld [vmem:[%s1 + $0x2c] sm:$0xf]
      %v216 = vld [vmem:[%s1 + $0x30] sm:$0xf]
      %v217 = vld [vmem:[%s1 + $0x34] sm:$0xf]
      %v218 = vld [vmem:[%s1 + $0x38] sm:$0xf]
      %v219 = vld [vmem:[%s1 + $0x3c] sm:$0xf]
      %v220 = vld [vmem:[%s165 + $0x1] sm:$0xff]
      %v221 = vld [vmem:[%s165 + $0x9] sm:$0xff]
      %v222 = vld [vmem:[%s165 + $0x11] sm:$0xff]
      %v223 = vld [vmem:[%s165 + $0x19] sm:$0xff]
      %v224 = vld [vmem:[%s165 + $0x21] sm:$0xff]
      %v225 = vld [vmem:[%s165 + $0x29] sm:$0xff]
      %v226 = vld [vmem:[%s165 + $0x31] sm:$0xff]
      %v227 = vld [vmem:[%s165 + $0x39] sm:$0xff]
      %v228 = vld [vmem:[%s165 + $0x41] sm:$0xff]
      %v229 = vld [vmem:[%s165 + $0x49] sm:$0xff]
      %v230 = vld [vmem:[%s165 + $0x51] sm:$0xff]
      %v231 = vld [vmem:[%s165 + $0x59] sm:$0xff]
      %v232 = vld [vmem:[%s165 + $0x61] sm:$0xff]
      %v233 = vld [vmem:[%s165 + $0x69] sm:$0xff]
      %v234 = vld [vmem:[%s165 + $0x71] sm:$0xff]
      %v235 = vld [vmem:[%s165 + $0x79] sm:$0xff]
      %v236 = vld [vmem:[%s165 + $0x81] sm:$0xff]
      %v237 = vld [vmem:[%s165 + $0x89] sm:$0xff]
      %v238 = vld [vmem:[%s165 + $0x91] sm:$0xff]
      %v239 = vld [vmem:[%s165 + $0x99] sm:$0xff]
      %v240 = vld [vmem:[%s165 + $0xa1] sm:$0xff]
      %v241 = vpack.c.bf16 %v221, %v220
      %v242 = vpack.c.bf16 %v223, %v222
      %v243 = vpack.c.bf16 %v225, %v224
      %v244 = vpack.c.bf16 %v227, %v226
      %v245 = vpack.c.bf16 %v229, %v228
      %v246 = vpack.c.bf16 %v231, %v230
      %v247 = vpack.c.bf16 %v233, %v232
      %v248 = vpack.c.bf16 %v235, %v234
      %v249 = vpack.c.bf16 %v237, %v236
      %v250 = vpack.c.bf16 %v239, %v238
      %v251 = vpack.c.bf16 %v240, %v240
      %s252 = scalar_lea.vmem %s1, 64
      %v253 = vld [vmem:[%s252] sm:$0xf]
      %v254 = vld [vmem:[%s252 + $0x4] sm:$0xf]
      %v255 = vld [vmem:[%s252 + $0x8] sm:$0xf]
      %v256 = vld [vmem:[%s252 + $0xc] sm:$0xf]
      %v257 = vld [vmem:[%s252 + $0x10] sm:$0xf]
      %v258 = vld [vmem:[%s252 + $0x14] sm:$0xf]
      %v259 = vld [vmem:[%s252 + $0x18] sm:$0xf]
      %v260 = vld [vmem:[%s252 + $0x1c] sm:$0xf]
      %v261 = vld [vmem:[%s252 + $0x20] sm:$0xf]
      %v262 = vld [vmem:[%s252 + $0x24] sm:$0xf]
      %v263 = vld [vmem:[%s252 + $0x28] sm:$0xf]
      %v264 = vld [vmem:[%s252 + $0x2c] sm:$0xf]
      %v265 = vld [vmem:[%s252 + $0x30] sm:$0xf]
      %v266 = vld [vmem:[%s252 + $0x34] sm:$0xf]
      %v267 = vld [vmem:[%s252 + $0x38] sm:$0xf]
      %v268 = vld [vmem:[%s252 + $0x3c] sm:$0xf]
      %v285 = vunpack.c.l.b16 %v253
      %v286 = vunpack.c.l.b16 %v254
      %v287 = vunpack.c.l.b16 %v255
      %v288 = vunpack.c.l.b16 %v256
      %v289 = vunpack.c.l.b16 %v257
      %v290 = vunpack.c.l.b16 %v258
      %v291 = vunpack.c.l.b16 %v259
      %v292 = vunpack.c.l.b16 %v260
      %v293 = vunpack.c.l.b16 %v261
      %v294 = vunpack.c.l.b16 %v262
      %v295 = vunpack.c.l.b16 %v263
      %v296 = vunpack.c.l.b16 %v264
      %v297 = vunpack.c.l.b16 %v265
      %v298 = vunpack.c.l.b16 %v266
      %v299 = vunpack.c.l.b16 %v267
      %v300 = vunpack.c.l.b16 %v268
      %v301 = vpack.c.b16 %v286, %v285
      %v302 = vpack.c.b16 %v288, %v287
      %v303 = vpack.c.b16 %v290, %v289
      %v304 = vpack.c.b16 %v292, %v291
      %v305 = vpack.c.b16 %v294, %v293
      %v306 = vpack.c.b16 %v296, %v295
      %v307 = vpack.c.b16 %v298, %v297
      %v308 = vpack.c.b16 %v300, %v299
      %317 = vmatprep.subr.bf16.mxu0 0
      %318 = vmatpush1.bf16.msra.mxu0 %v301
      %319 = vmatprep.subr.bf16.mxu0 0
      %320 = vmatpush1.bf16.msra.mxu0 %v302
      %321 = vmatprep.subr.bf16.mxu0 0
      %322 = vmatpush1.bf16.msra.mxu0 %v303
      %323 = vmatprep.subr.bf16.mxu0 0
      %324 = vmatpush1.bf16.msra.mxu0 %v304
      %325 = vmatprep.subr.bf16.mxu0 0
      %326 = vmatpush1.bf16.msra.mxu0 %v305
      %327 = vmatprep.subr.bf16.mxu0 0
      %328 = vmatpush1.bf16.msra.mxu0 %v306
      %329 = vmatprep.subr.bf16.mxu0 0
      %330 = vmatpush1.bf16.msra.mxu0 %v307
      %331 = vmatprep.subr.bf16.mxu0 0
      %332 = vmatpush1.bf16.msra.mxu0 %v308
      %333 = vmatprep.subr.bf16.mxu0 0
      %334 = vmatpush1.bf16.msra.mxu0 0
      %335 = vmatprep.subr.bf16.mxu0 0
      %336 = vmatpush1.bf16.msra.mxu0 0
      %337 = vmatprep.subr.bf16.mxu0 0
      %338 = vmatpush1.bf16.msra.mxu0 0
      %339 = vmatprep.subr.bf16.mxu0 0
      %340 = vmatpush1.bf16.msra.mxu0 0
      %341 = vmatprep.subr.bf16.mxu0 0
      %342 = vmatpush1.bf16.msra.mxu0 0
      %343 = vmatprep.subr.bf16.mxu0 0
      %344 = vmatpush1.bf16.msra.mxu0 0
      %345 = vmatprep.subr.bf16.mxu0 0
      %346 = vmatpush1.bf16.msra.mxu0 0
      %347 = vmatprep.subr.bf16.mxu0 0
      %348 = vmatpush1.bf16.msra.mxu0 0
      %349 = vmatprep.mubr.bf16.mxu0 0
      %350 = vmatmul.mubr.bf16.gmra.mrb[0].mxu0 %v241
      %v351 = vpop.f32.mrb[0].mxu0
      %v352 = vadd.f32 0.0, %v351
      %v353 = vpop.f32.mrb[0].mxu0
      %v354 = vpop.f32.mrb[0].mxu0
      %v355 = vadd.f32 0.0, %v354
      %v356 = vpop.f32.mrb[0].mxu0
      %357 = vmatprep.mubr.bf16.mxu0 0
      %358 = vmatmul.mubr.bf16.gmra.mrb[0].mxu0 %v242
      %v359 = vpop.f32.mrb[0].mxu0
      %v360 = vadd.f32 0.0, %v359
      %v361 = vpop.f32.mrb[0].mxu0
      %v362 = vpop.f32.mrb[0].mxu0
      %v363 = vadd.f32 0.0, %v362
      %v364 = vpop.f32.mrb[0].mxu0
      %365 = vmatprep.mubr.bf16.mxu0 0
      %366 = vmatmul.mubr.bf16.gmra.mrb[0].mxu0 %v243
      %v367 = vpop.f32.mrb[0].mxu0
      %v368 = vadd.f32 0.0, %v367
      %v369 = vpop.f32.mrb[0].mxu0
      %v370 = vpop.f32.mrb[0].mxu0
      %v371 = vadd.f32 0.0, %v370
      %v372 = vpop.f32.mrb[0].mxu0
      %373 = vmatprep.mubr.bf16.mxu0 0
      %374 = vmatmul.mubr.bf16.gmra.mrb[0].mxu0 %v244
      %v375 = vpop.f32.mrb[0].mxu0
      %v376 = vadd.f32 0.0, %v375
      %v377 = vpop.f32.mrb[0].mxu0
      %v378 = vpop.f32.mrb[0].mxu0
      %v379 = vadd.f32 0.0, %v378
      %v380 = vpop.f32.mrb[0].mxu0
      %381 = vmatprep.mubr.bf16.mxu0 0
      %382 = vmatmul.mubr.bf16.gmra.mrb[0].mxu0 %v245
      %v383 = vpop.f32.mrb[0].mxu0
      %v384 = vadd.f32 0.0, %v383
      %v385 = vpop.f32.mrb[0].mxu0
      %v386 = vpop.f32.mrb[0].mxu0
      %v387 = vadd.f32 0.0, %v386
      %v388 = vpop.f32.mrb[0].mxu0
      %389 = vmatprep.mubr.bf16.mxu0 0
      %390 = vmatmul.mubr.bf16.gmra.mrb[0].mxu0 %v246
      %v391 = vpop.f32.mrb[0].mxu0
      %v392 = vadd.f32 0.0, %v391
      %v393 = vpop.f32.mrb[0].mxu0
      %v394 = vpop.f32.mrb[0].mxu0
      %v395 = vadd.f32 0.0, %v394
      %v396 = vpop.f32.mrb[0].mxu0
      %397 = vmatprep.mubr.bf16.mxu0 0
      %398 = vmatmul.mubr.bf16.gmra.mrb[0].mxu0 %v247
      %v399 = vpop.f32.mrb[0].mxu0
      %v400 = vadd.f32 0.0, %v399
      %v401 = vpop.f32.mrb[0].mxu0
      %v402 = vpop.f32.mrb[0].mxu0
      %v403 = vadd.f32 0.0, %v402
      %v404 = vpop.f32.mrb[0].mxu0
      %405 = vmatprep.mubr.bf16.mxu0 0
      %406 = vmatmul.mubr.bf16.gmra.mrb[0].mxu0 %v248
      %v407 = vpop.f32.mrb[0].mxu0
      %v408 = vadd.f32 0.0, %v407
      %v409 = vpop.f32.mrb[0].mxu0
      %v410 = vpop.f32.mrb[0].mxu0
      %v411 = vadd.f32 0.0, %v410
      %v412 = vpop.f32.mrb[0].mxu0
      %413 = vmatprep.mubr.bf16.mxu0 0
      %414 = vmatmul.mubr.bf16.gmra.mrb[0].mxu0 %v249
      %v415 = vpop.f32.mrb[0].mxu0
      %v416 = vadd.f32 0.0, %v415
      %v417 = vpop.f32.mrb[0].mxu0
      %v418 = vpop.f32.mrb[0].mxu0
      %v419 = vadd.f32 0.0, %v418
      %v420 = vpop.f32.mrb[0].mxu0
      %421 = vmatprep.mubr.bf16.mxu0 0
      %422 = vmatmul.mubr.bf16.gmra.mrb[0].mxu0 %v250
      %v423 = vpop.f32.mrb[0].mxu0
      %v424 = vadd.f32 0.0, %v423
      %v425 = vpop.f32.mrb[0].mxu0
      %v426 = vpop.f32.mrb[0].mxu0
      %v427 = vadd.f32 0.0, %v426
      %v428 = vpop.f32.mrb[0].mxu0
      %429 = vmatprep.mubr.bf16.mxu0 0
      %430 = vmatmul.mubr.bf16.gmra.mrb[0].mxu0 %v251
      %v431 = vpop.f32.mrb[0].mxu0
      %v432 = vadd.f32 0.0, %v431
      %v433 = vpop.f32.mrb[0].mxu0
      %v434 = vpop.f32.mrb[0].mxu0
      %v435 = vpop.f32.mrb[0].mxu0
      %436 = vdwg.mxu0
      %v453 = vunpack.c.l.b16 %v204
      %v454 = vunpack.c.l.b16 %v205
      %v455 = vunpack.c.l.b16 %v206
      %v456 = vunpack.c.l.b16 %v207
      %v457 = vunpack.c.l.b16 %v208
      %v458 = vunpack.c.l.b16 %v209
      %v459 = vunpack.c.l.b16 %v210
      %v460 = vunpack.c.l.b16 %v211
      %v461 = vunpack.c.l.b16 %v212
      %v462 = vunpack.c.l.b16 %v213
      %v463 = vunpack.c.l.b16 %v214
      %v464 = vunpack.c.l.b16 %v215
      %v465 = vunpack.c.l.b16 %v216
      %v466 = vunpack.c.l.b16 %v217
      %v467 = vunpack.c.l.b16 %v218
      %v468 = vunpack.c.l.b16 %v219
      %v469 = vpack.c.b16 %v454, %v453
      %v470 = vpack.c.b16 %v456, %v455
      %v471 = vpack.c.b16 %v458, %v457
      %v472 = vpack.c.b16 %v460, %v459
      %v473 = vpack.c.b16 %v462, %v461
      %v474 = vpack.c.b16 %v464, %v463
      %v475 = vpack.c.b16 %v466, %v465
      %v476 = vpack.c.b16 %v468, %v467
      %485 = vmatprep.subr.bf16.mxu0 0
      %486 = vmatpush1.bf16.msra.mxu0 %v469
      %487 = vmatprep.subr.bf16.mxu0 0
      %488 = vmatpush1.bf16.msra.mxu0 %v470
      %489 = vmatprep.subr.bf16.mxu0 0
      %490 = vmatpush1.bf16.msra.mxu0 %v471
      %491 = vmatprep.subr.bf16.mxu0 0
      %492 = vmatpush1.bf16.msra.mxu0 %v472
      %493 = vmatprep.subr.bf16.mxu0 0
      %494 = vmatpush1.bf16.msra.mxu0 %v473
      %495 = vmatprep.subr.bf16.mxu0 0
      %496 = vmatpush1.bf16.msra.mxu0 %v474
      %497 = vmatprep.subr.bf16.mxu0 0
      %498 = vmatpush1.bf16.msra.mxu0 %v475
      %499 = vmatprep.subr.bf16.mxu0 0
      %500 = vmatpush1.bf16.msra.mxu0 %v476
      %501 = vmatprep.subr.bf16.mxu0 0
      %502 = vmatpush1.bf16.msra.mxu0 0
      %503 = vmatprep.subr.bf16.mxu0 0
      %504 = vmatpush1.bf16.msra.mxu0 0
      %505 = vmatprep.subr.bf16.mxu0 0
      %506 = vmatpush1.bf16.msra.mxu0 0
      %507 = vmatprep.subr.bf16.mxu0 0
      %508 = vmatpush1.bf16.msra.mxu0 0
      %509 = vmatprep.subr.bf16.mxu0 0
      %510 = vmatpush1.bf16.msra.mxu0 0
      %511 = vmatprep.subr.bf16.mxu0 0
      %512 = vmatpush1.bf16.msra.mxu0 0
      %513 = vmatprep.subr.bf16.mxu0 0
      %514 = vmatpush1.bf16.msra.mxu0 0
      %515 = vmatprep.subr.bf16.mxu0 0
      %516 = vmatpush1.bf16.msra.mxu0 0
      %517 = vmatprep.mubr.bf16.mxu0 0
      %518 = vmatmul.mubr.bf16.gmra.mrb[0].mxu0 %v193
      %v519 = vpop.f32.mrb[0].mxu0
      %v520 = vadd.f32 %v352, %v519
      %v521 = vpop.f32.mrb[0].mxu0
      %v522 = vpop.f32.mrb[0].mxu0
      %v523 = vadd.f32 %v355, %v522
      %v524 = vpop.f32.mrb[0].mxu0
      %525 = vmatprep.mubr.bf16.mxu0 0
      %526 = vmatmul.mubr.bf16.gmra.mrb[0].mxu0 %v194
      %v527 = vpop.f32.mrb[0].mxu0
      %v528 = vadd.f32 %v360, %v527
      %v529 = vpop.f32.mrb[0].mxu0
      %v530 = vpop.f32.mrb[0].mxu0
      %v531 = vadd.f32 %v363, %v530
      %v532 = vpop.f32.mrb[0].mxu0
      %533 = vmatprep.mubr.bf16.mxu0 0
      %534 = vmatmul.mubr.bf16.gmra.mrb[0].mxu0 %v195
      %v535 = vpop.f32.mrb[0].mxu0
      %v536 = vadd.f32 %v368, %v535
      %v537 = vpop.f32.mrb[0].mxu0
      %v538 = vpop.f32.mrb[0].mxu0
      %v539 = vadd.f32 %v371, %v538
      %v540 = vpop.f32.mrb[0].mxu0
      %541 = vmatprep.mubr.bf16.mxu0 0
      %542 = vmatmul.mubr.bf16.gmra.mrb[0].mxu0 %v196
      %v543 = vpop.f32.mrb[0].mxu0
      %v544 = vadd.f32 %v376, %v543
      %v545 = vpop.f32.mrb[0].mxu0
      %v546 = vpop.f32.mrb[0].mxu0
      %v547 = vadd.f32 %v379, %v546
      %v548 = vpop.f32.mrb[0].mxu0
      %549 = vmatprep.mubr.bf16.mxu0 0
      %550 = vmatmul.mubr.bf16.gmra.mrb[0].mxu0 %v197
      %v551 = vpop.f32.mrb[0].mxu0
      %v552 = vadd.f32 %v384, %v551
      %v553 = vpop.f32.mrb[0].mxu0
      %v554 = vpop.f32.mrb[0].mxu0
      %v555 = vadd.f32 %v387, %v554
      %v556 = vpop.f32.mrb[0].mxu0
      %557 = vmatprep.mubr.bf16.mxu0 0
      %558 = vmatmul.mubr.bf16.gmra.mrb[0].mxu0 %v198
      %v559 = vpop.f32.mrb[0].mxu0
      %v560 = vadd.f32 %v392, %v559
      %v561 = vpop.f32.mrb[0].mxu0
      %v562 = vpop.f32.mrb[0].mxu0
      %v563 = vadd.f32 %v395, %v562
      %v564 = vpop.f32.mrb[0].mxu0
      %565 = vmatprep.mubr.bf16.mxu0 0
      %566 = vmatmul.mubr.bf16.gmra.mrb[0].mxu0 %v199
      %v567 = vpop.f32.mrb[0].mxu0
      %v568 = vadd.f32 %v400, %v567
      %v569 = vpop.f32.mrb[0].mxu0
      %v570 = vpop.f32.mrb[0].mxu0
      %v571 = vadd.f32 %v403, %v570
      %v572 = vpop.f32.mrb[0].mxu0
      %573 = vmatprep.mubr.bf16.mxu0 0
      %574 = vmatmul.mubr.bf16.gmra.mrb[0].mxu0 %v200
      %v575 = vpop.f32.mrb[0].mxu0
      %v576 = vadd.f32 %v408, %v575
      %v577 = vpop.f32.mrb[0].mxu0
      %v578 = vpop.f32.mrb[0].mxu0
      %v579 = vadd.f32 %v411, %v578
      %v580 = vpop.f32.mrb[0].mxu0
      %581 = vmatprep.mubr.bf16.mxu0 0
      %582 = vmatmul.mubr.bf16.gmra.mrb[0].mxu0 %v201
      %v583 = vpop.f32.mrb[0].mxu0
      %v584 = vadd.f32 %v416, %v583
      %v585 = vpop.f32.mrb[0].mxu0
      %v586 = vpop.f32.mrb[0].mxu0
      %v587 = vadd.f32 %v419, %v586
      %v588 = vpop.f32.mrb[0].mxu0
      %589 = vmatprep.mubr.bf16.mxu0 0
      %590 = vmatmul.mubr.bf16.gmra.mrb[0].mxu0 %v202
      %v591 = vpop.f32.mrb[0].mxu0
      %v592 = vadd.f32 %v424, %v591
      %v593 = vpop.f32.mrb[0].mxu0
      %v594 = vpop.f32.mrb[0].mxu0
      %v595 = vadd.f32 %v427, %v594
      %v596 = vpop.f32.mrb[0].mxu0
      %597 = vmatprep.mubr.bf16.mxu0 0
      %598 = vmatmul.mubr.bf16.gmra.mrb[0].mxu0 %v203
      %v599 = vpop.f32.mrb[0].mxu0
      %v600 = vadd.f32 %v432, %v599
      %v601 = vpop.f32.mrb[0].mxu0
      %v602 = vpop.f32.mrb[0].mxu0
      %v603 = vpop.f32.mrb[0].mxu0
      %604 = vdwg.mxu0
      %v605 = vld [vmem:[%s165 + $0x2] sm:$0xff]
      %v606 = vld [vmem:[%s165 + $0xa] sm:$0xff]
      %v607 = vld [vmem:[%s165 + $0x12] sm:$0xff]
      %v608 = vld [vmem:[%s165 + $0x1a] sm:$0xff]
      %v609 = vld [vmem:[%s165 + $0x22] sm:$0xff]
      %v610 = vld [vmem:[%s165 + $0x2a] sm:$0xff]
      %v611 = vld [vmem:[%s165 + $0x32] sm:$0xff]
      %v612 = vld [vmem:[%s165 + $0x3a] sm:$0xff]
      %v613 = vld [vmem:[%s165 + $0x42] sm:$0xff]
      %v614 = vld [vmem:[%s165 + $0x4a] sm:$0xff]
      %v615 = vld [vmem:[%s165 + $0x52] sm:$0xff]
      %v616 = vld [vmem:[%s165 + $0x5a] sm:$0xff]
      %v617 = vld [vmem:[%s165 + $0x62] sm:$0xff]
      %v618 = vld [vmem:[%s165 + $0x6a] sm:$0xff]
      %v619 = vld [vmem:[%s165 + $0x72] sm:$0xff]
      %v620 = vld [vmem:[%s165 + $0x7a] sm:$0xff]
      %v621 = vld [vmem:[%s165 + $0x82] sm:$0xff]
      %v622 = vld [vmem:[%s165 + $0x8a] sm:$0xff]
      %v623 = vld [vmem:[%s165 + $0x92] sm:$0xff]
      %v624 = vld [vmem:[%s165 + $0x9a] sm:$0xff]
      %v625 = vld [vmem:[%s165 + $0xa2] sm:$0xff]
      %v626 = vpack.c.bf16 %v606, %v605
      %v627 = vpack.c.bf16 %v608, %v607
      %v628 = vpack.c.bf16 %v610, %v609
      %v629 = vpack.c.bf16 %v612, %v611
      %v630 = vpack.c.bf16 %v614, %v613
      %v631 = vpack.c.bf16 %v616, %v615
      %v632 = vpack.c.bf16 %v618, %v617
      %v633 = vpack.c.bf16 %v620, %v619
      %v634 = vpack.c.bf16 %v622, %v621
      %v635 = vpack.c.bf16 %v624, %v623
      %v636 = vpack.c.bf16 %v625, %v625
      %s637 = scalar_lea.vmem %s1, 128
      %v638 = vld [vmem:[%s637] sm:$0xf]
      %v639 = vld [vmem:[%s637 + $0x4] sm:$0xf]
      %v640 = vld [vmem:[%s637 + $0x8] sm:$0xf]
      %v641 = vld [vmem:[%s637 + $0xc] sm:$0xf]
      %v642 = vld [vmem:[%s637 + $0x10] sm:$0xf]
      %v643 = vld [vmem:[%s637 + $0x14] sm:$0xf]
      %v644 = vld [vmem:[%s637 + $0x18] sm:$0xf]
      %v645 = vld [vmem:[%s637 + $0x1c] sm:$0xf]
      %v646 = vld [vmem:[%s637 + $0x20] sm:$0xf]
      %v647 = vld [vmem:[%s637 + $0x24] sm:$0xf]
      %v648 = vld [vmem:[%s637 + $0x28] sm:$0xf]
      %v649 = vld [vmem:[%s637 + $0x2c] sm:$0xf]
      %v650 = vld [vmem:[%s637 + $0x30] sm:$0xf]
      %v651 = vld [vmem:[%s637 + $0x34] sm:$0xf]
      %v652 = vld [vmem:[%s637 + $0x38] sm:$0xf]
      %v653 = vld [vmem:[%s637 + $0x3c] sm:$0xf]
      %v670 = vunpack.c.l.b16 %v638
      %v671 = vunpack.c.l.b16 %v639
      %v672 = vunpack.c.l.b16 %v640
      %v673 = vunpack.c.l.b16 %v641
      %v674 = vunpack.c.l.b16 %v642
      %v675 = vunpack.c.l.b16 %v643
      %v676 = vunpack.c.l.b16 %v644
      %v677 = vunpack.c.l.b16 %v645
      %v678 = vunpack.c.l.b16 %v646
      %v679 = vunpack.c.l.b16 %v647
      %v680 = vunpack.c.l.b16 %v648
      %v681 = vunpack.c.l.b16 %v649
      %v682 = vunpack.c.l.b16 %v650
      %v683 = vunpack.c.l.b16 %v651
      %v684 = vunpack.c.l.b16 %v652
      %v685 = vunpack.c.l.b16 %v653
      %v686 = vpack.c.b16 %v671, %v670
      %v687 = vpack.c.b16 %v673, %v672
      %v688 = vpack.c.b16 %v675, %v674
      %v689 = vpack.c.b16 %v677, %v676
      %v690 = vpack.c.b16 %v679, %v678
      %v691 = vpack.c.b16 %v681, %v680
      %v692 = vpack.c.b16 %v683, %v682
      %v693 = vpack.c.b16 %v685, %v684
      %702 = vmatprep.subr.bf16.mxu0 0
      %703 = vmatpush1.bf16.msra.mxu0 %v686
      %704 = vmatprep.subr.bf16.mxu0 0
      %705 = vmatpush1.bf16.msra.mxu0 %v687
      %706 = vmatprep.subr.bf16.mxu0 0
      %707 = vmatpush1.bf16.msra.mxu0 %v688
      %708 = vmatprep.subr.bf16.mxu0 0
      %709 = vmatpush1.bf16.msra.mxu0 %v689
      %710 = vmatprep.subr.bf16.mxu0 0
      %711 = vmatpush1.bf16.msra.mxu0 %v690
      %712 = vmatprep.subr.bf16.mxu0 0
      %713 = vmatpush1.bf16.msra.mxu0 %v691
      %714 = vmatprep.subr.bf16.mxu0 0
      %715 = vmatpush1.bf16.msra.mxu0 %v692
      %716 = vmatprep.subr.bf16.mxu0 0
      %717 = vmatpush1.bf16.msra.mxu0 %v693
      %718 = vmatprep.subr.bf16.mxu0 0
      %719 = vmatpush1.bf16.msra.mxu0 0
      %720 = vmatprep.subr.bf16.mxu0 0
      %721 = vmatpush1.bf16.msra.mxu0 0
      %722 = vmatprep.subr.bf16.mxu0 0
      %723 = vmatpush1.bf16.msra.mxu0 0
      %724 = vmatprep.subr.bf16.mxu0 0
      %725 = vmatpush1.bf16.msra.mxu0 0
      %726 = vmatprep.subr.bf16.mxu0 0
      %727 = vmatpush1.bf16.msra.mxu0 0
      %728 = vmatprep.subr.bf16.mxu0 0
      %729 = vmatpush1.bf16.msra.mxu0 0
      %730 = vmatprep.subr.bf16.mxu0 0
      %731 = vmatpush1.bf16.msra.mxu0 0
      %732 = vmatprep.subr.bf16.mxu0 0
      %733 = vmatpush1.bf16.msra.mxu0 0
      %734 = vmatprep.mubr.bf16.mxu0 0
      %735 = vmatmul.mubr.bf16.gmra.mrb[0].mxu0 %v626
      %v736 = vpop.f32.mrb[0].mxu0
      %v737 = vadd.f32 0.0, %v736
      %v738 = vpop.f32.mrb[0].mxu0
      %v739 = vpop.f32.mrb[0].mxu0
      %v740 = vadd.f32 0.0, %v739
      %v741 = vpop.f32.mrb[0].mxu0
      %742 = vmatprep.mubr.bf16.mxu0 0
      %743 = vmatmul.mubr.bf16.gmra.mrb[0].mxu0 %v627
      %v744 = vpop.f32.mrb[0].mxu0
      %v745 = vadd.f32 0.0, %v744
      %v746 = vpop.f32.mrb[0].mxu0
      %v747 = vpop.f32.mrb[0].mxu0
      %v748 = vadd.f32 0.0, %v747
      %v749 = vpop.f32.mrb[0].mxu0
      %750 = vmatprep.mubr.bf16.mxu0 0
      %751 = vmatmul.mubr.bf16.gmra.mrb[0].mxu0 %v628
      %v752 = vpop.f32.mrb[0].mxu0
      %v753 = vadd.f32 0.0, %v752
      %v754 = vpop.f32.mrb[0].mxu0
      %v755 = vpop.f32.mrb[0].mxu0
      %v756 = vadd.f32 0.0, %v755
      %v757 = vpop.f32.mrb[0].mxu0
      %758 = vmatprep.mubr.bf16.mxu0 0
      %759 = vmatmul.mubr.bf16.gmra.mrb[0].mxu0 %v629
      %v760 = vpop.f32.mrb[0].mxu0
      %v761 = vadd.f32 0.0, %v760
      %v762 = vpop.f32.mrb[0].mxu0
      %v763 = vpop.f32.mrb[0].mxu0
      %v764 = vadd.f32 0.0, %v763
      %v765 = vpop.f32.mrb[0].mxu0
      %766 = vmatprep.mubr.bf16.mxu0 0
      %767 = vmatmul.mubr.bf16.gmra.mrb[0].mxu0 %v630
      %v768 = vpop.f32.mrb[0].mxu0
      %v769 = vadd.f32 0.0, %v768
      %v770 = vpop.f32.mrb[0].mxu0
      %v771 = vpop.f32.mrb[0].mxu0
      %v772 = vadd.f32 0.0, %v771
      %v773 = vpop.f32.mrb[0].mxu0
      %774 = vmatprep.mubr.bf16.mxu0 0
      %775 = vmatmul.mubr.bf16.gmra.mrb[0].mxu0 %v631
      %v776 = vpop.f32.mrb[0].mxu0
      %v777 = vadd.f32 0.0, %v776
      %v778 = vpop.f32.mrb[0].mxu0
      %v779 = vpop.f32.mrb[0].mxu0
      %v780 = vadd.f32 0.0, %v779
      %v781 = vpop.f32.mrb[0].mxu0
      %782 = vmatprep.mubr.bf16.mxu0 0
      %783 = vmatmul.mubr.bf16.gmra.mrb[0].mxu0 %v632
      %v784 = vpop.f32.mrb[0].mxu0
      %v785 = vadd.f32 0.0, %v784
      %v786 = vpop.f32.mrb[0].mxu0
      %v787 = vpop.f32.mrb[0].mxu0
      %v788 = vadd.f32 0.0, %v787
      %v789 = vpop.f32.mrb[0].mxu0
      %790 = vmatprep.mubr.bf16.mxu0 0
      %791 = vmatmul.mubr.bf16.gmra.mrb[0].mxu0 %v633
      %v792 = vpop.f32.mrb[0].mxu0
      %v793 = vadd.f32 0.0, %v792
      %v794 = vpop.f32.mrb[0].mxu0
      %v795 = vpop.f32.mrb[0].mxu0
      %v796 = vadd.f32 0.0, %v795
      %v797 = vpop.f32.mrb[0].mxu0
      %798 = vmatprep.mubr.bf16.mxu0 0
      %799 = vmatmul.mubr.bf16.gmra.mrb[0].mxu0 %v634
      %v800 = vpop.f32.mrb[0].mxu0
      %v801 = vadd.f32 0.0, %v800
      %v802 = vpop.f32.mrb[0].mxu0
      %v803 = vpop.f32.mrb[0].mxu0
      %v804 = vadd.f32 0.0, %v803
      %v805 = vpop.f32.mrb[0].mxu0
      %806 = vmatprep.mubr.bf16.mxu0 0
      %807 = vmatmul.mubr.bf16.gmra.mrb[0].mxu0 %v635
      %v808 = vpop.f32.mrb[0].mxu0
      %v809 = vadd.f32 0.0, %v808
      %v810 = vpop.f32.mrb[0].mxu0
      %v811 = vpop.f32.mrb[0].mxu0
      %v812 = vadd.f32 0.0, %v811
      %v813 = vpop.f32.mrb[0].mxu0
      %814 = vmatprep.mubr.bf16.mxu0 0
      %815 = vmatmul.mubr.bf16.gmra.mrb[0].mxu0 %v636
      %v816 = vpop.f32.mrb[0].mxu0
      %v817 = vadd.f32 0.0, %v816
      %v818 = vpop.f32.mrb[0].mxu0
      %v819 = vpop.f32.mrb[0].mxu0
      %v820 = vpop.f32.mrb[0].mxu0
      %821 = vdwg.mxu0
      %v822 = vadd.f32 %v520, %v737
      %v823 = vadd.f32 %v523, %v740
      %v824 = vadd.f32 %v528, %v745
      %v825 = vadd.f32 %v531, %v748
      %v826 = vadd.f32 %v536, %v753
      %v827 = vadd.f32 %v539, %v756
      %v828 = vadd.f32 %v544, %v761
      %v829 = vadd.f32 %v547, %v764
      %v830 = vadd.f32 %v552, %v769
      %v831 = vadd.f32 %v555, %v772
      %v832 = vadd.f32 %v560, %v777
      %v833 = vadd.f32 %v563, %v780
      %v834 = vadd.f32 %v568, %v785
      %v835 = vadd.f32 %v571, %v788
      %v836 = vadd.f32 %v576, %v793
      %v837 = vadd.f32 %v579, %v796
      %v838 = vadd.f32 %v584, %v801
      %v839 = vadd.f32 %v587, %v804
      %v840 = vadd.f32 %v592, %v809
      %v841 = vadd.f32 %v595, %v812
      %v842 = vadd.f32 %v600, %v817
      %v843 = vld [vmem:[%s165 + $0xe] sm:$0xff]
      %v844 = vld [vmem:[%s165 + $0x16] sm:$0xff]
      %v845 = vld [vmem:[%s165 + $0x1e] sm:$0xff]
      %v846 = vld [vmem:[%s165 + $0x26] sm:$0xff]
      %v847 = vld [vmem:[%s165 + $0x2e] sm:$0xff]
      %v848 = vld [vmem:[%s165 + $0x36] sm:$0xff]
      %v849 = vld [vmem:[%s165 + $0x3e] sm:$0xff]
      %v850 = vld [vmem:[%s165 + $0x46] sm:$0xff]
      %v851 = vld [vmem:[%s165 + $0x4e] sm:$0xff]
      %v852 = vld [vmem:[%s165 + $0x56] sm:$0xff]
      %v853 = vld [vmem:[%s165 + $0x5e] sm:$0xff]
      %v854 = vld [vmem:[%s165 + $0x66] sm:$0xff]
      %v855 = vld [vmem:[%s165 + $0x6e] sm:$0xff]
      %v856 = vld [vmem:[%s165 + $0x76] sm:$0xff]
      %v857 = vld [vmem:[%s165 + $0x7e] sm:$0xff]
      %v858 = vld [vmem:[%s165 + $0x86] sm:$0xff]
      %v859 = vld [vmem:[%s165 + $0x8e] sm:$0xff]
      %v860 = vld [vmem:[%s165 + $0x96] sm:$0xff]
      %v861 = vld [vmem:[%s165 + $0x9e] sm:$0xff]
      %v862 = vld [vmem:[%s165 + $0xa6] sm:$0xff]
      %v863 = vld [vmem:[%s165 + $0xae] sm:$0xff]
      %v864 = vpack.c.bf16 %v844, %v843
      %v865 = vpack.c.bf16 %v846, %v845
      %v866 = vpack.c.bf16 %v848, %v847
      %v867 = vpack.c.bf16 %v850, %v849
      %v868 = vpack.c.bf16 %v852, %v851
      %v869 = vpack.c.bf16 %v854, %v853
      %v870 = vpack.c.bf16 %v856, %v855
      %v871 = vpack.c.bf16 %v858, %v857
      %v872 = vpack.c.bf16 %v860, %v859
      %v873 = vpack.c.bf16 %v862, %v861
      %v874 = vpack.c.bf16 %v863, %v863
      %s875 = scalar_lea.vmem %s1, 192
      %v876 = vld [vmem:[%s875] sm:$0xf]
      %v877 = vld [vmem:[%s875 + $0x4] sm:$0xf]
      %v878 = vld [vmem:[%s875 + $0x8] sm:$0xf]
      %v879 = vld [vmem:[%s875 + $0xc] sm:$0xf]
      %v880 = vld [vmem:[%s875 + $0x10] sm:$0xf]
      %v881 = vld [vmem:[%s875 + $0x14] sm:$0xf]
      %v882 = vld [vmem:[%s875 + $0x18] sm:$0xf]
      %v883 = vld [vmem:[%s875 + $0x1c] sm:$0xf]
      %v884 = vld [vmem:[%s875 + $0x20] sm:$0xf]
      %v885 = vld [vmem:[%s875 + $0x24] sm:$0xf]
      %v886 = vld [vmem:[%s875 + $0x28] sm:$0xf]
      %v887 = vld [vmem:[%s875 + $0x2c] sm:$0xf]
      %v888 = vld [vmem:[%s875 + $0x30] sm:$0xf]
      %v889 = vld [vmem:[%s875 + $0x34] sm:$0xf]
      %v890 = vld [vmem:[%s875 + $0x38] sm:$0xf]
      %v891 = vld [vmem:[%s875 + $0x3c] sm:$0xf]
      %v908 = vunpack.c.l.b16 %v876
      %v909 = vunpack.c.l.b16 %v877
      %v910 = vunpack.c.l.b16 %v878
      %v911 = vunpack.c.l.b16 %v879
      %v912 = vunpack.c.l.b16 %v880
      %v913 = vunpack.c.l.b16 %v881
      %v914 = vunpack.c.l.b16 %v882
      %v915 = vunpack.c.l.b16 %v883
      %v916 = vunpack.c.l.b16 %v884
      %v917 = vunpack.c.l.b16 %v885
      %v918 = vunpack.c.l.b16 %v886
      %v919 = vunpack.c.l.b16 %v887
      %v920 = vunpack.c.l.b16 %v888
      %v921 = vunpack.c.l.b16 %v889
      %v922 = vunpack.c.l.b16 %v890
      %v923 = vunpack.c.l.b16 %v891
      %v924 = vpack.c.b16 %v909, %v908
      %v925 = vpack.c.b16 %v911, %v910
      %v926 = vpack.c.b16 %v913, %v912
      %v927 = vpack.c.b16 %v915, %v914
      %v928 = vpack.c.b16 %v917, %v916
      %v929 = vpack.c.b16 %v919, %v918
      %v930 = vpack.c.b16 %v921, %v920
      %v931 = vpack.c.b16 %v923, %v922
      %940 = vmatprep.subr.bf16.mxu0 0
      %941 = vmatpush1.bf16.msra.mxu0 %v924
      %942 = vmatprep.subr.bf16.mxu0 0
      %943 = vmatpush1.bf16.msra.mxu0 %v925
      %944 = vmatprep.subr.bf16.mxu0 0
      %945 = vmatpush1.bf16.msra.mxu0 %v926
      %946 = vmatprep.subr.bf16.mxu0 0
      %947 = vmatpush1.bf16.msra.mxu0 %v927
      %948 = vmatprep.subr.bf16.mxu0 0
      %949 = vmatpush1.bf16.msra.mxu0 %v928
      %950 = vmatprep.subr.bf16.mxu0 0
      %951 = vmatpush1.bf16.msra.mxu0 %v929
      %952 = vmatprep.subr.bf16.mxu0 0
      %953 = vmatpush1.bf16.msra.mxu0 %v930
      %954 = vmatprep.subr.bf16.mxu0 0
      %955 = vmatpush1.bf16.msra.mxu0 %v931
      %956 = vmatprep.subr.bf16.mxu0 0
      %957 = vmatpush1.bf16.msra.mxu0 0
      %958 = vmatprep.subr.bf16.mxu0 0
      %959 = vmatpush1.bf16.msra.mxu0 0
      %960 = vmatprep.subr.bf16.mxu0 0
      %961 = vmatpush1.bf16.msra.mxu0 0
      %962 = vmatprep.subr.bf16.mxu0 0
      %963 = vmatpush1.bf16.msra.mxu0 0
      %964 = vmatprep.subr.bf16.mxu0 0
      %965 = vmatpush1.bf16.msra.mxu0 0
      %966 = vmatprep.subr.bf16.mxu0 0
      %967 = vmatpush1.bf16.msra.mxu0 0
      %968 = vmatprep.subr.bf16.mxu0 0
      %969 = vmatpush1.bf16.msra.mxu0 0
      %970 = vmatprep.subr.bf16.mxu0 0
      %971 = vmatpush1.bf16.msra.mxu0 0
      %972 = vmatprep.mubr.bf16.mxu0 0
      %973 = vmatmul.mubr.bf16.gmra.mrb[0].mxu0 %v864
      %v974 = vpop.f32.mrb[0].mxu0
      %v975 = vadd.f32 0.0, %v974
      %v976 = vpop.f32.mrb[0].mxu0
      %v977 = vpop.f32.mrb[0].mxu0
      %v978 = vadd.f32 0.0, %v977
      %v979 = vpop.f32.mrb[0].mxu0
      %980 = vmatprep.mubr.bf16.mxu0 0
      %981 = vmatmul.mubr.bf16.gmra.mrb[0].mxu0 %v865
      %v982 = vpop.f32.mrb[0].mxu0
      %v983 = vadd.f32 0.0, %v982
      %v984 = vpop.f32.mrb[0].mxu0
      %v985 = vpop.f32.mrb[0].mxu0
      %v986 = vadd.f32 0.0, %v985
      %v987 = vpop.f32.mrb[0].mxu0
      %988 = vmatprep.mubr.bf16.mxu0 0
      %989 = vmatmul.mubr.bf16.gmra.mrb[0].mxu0 %v866
      %v990 = vpop.f32.mrb[0].mxu0
      %v991 = vadd.f32 0.0, %v990
      %v992 = vpop.f32.mrb[0].mxu0
      %v993 = vpop.f32.mrb[0].mxu0
      %v994 = vadd.f32 0.0, %v993
      %v995 = vpop.f32.mrb[0].mxu0
      %996 = vmatprep.mubr.bf16.mxu0 0
      %997 = vmatmul.mubr.bf16.gmra.mrb[0].mxu0 %v867
      %v998 = vpop.f32.mrb[0].mxu0
      %v999 = vadd.f32 0.0, %v998
      %v1000 = vpop.f32.mrb[0].mxu0
      %v1001 = vpop.f32.mrb[0].mxu0
      %v1002 = vadd.f32 0.0, %v1001
      %v1003 = vpop.f32.mrb[0].mxu0
      %1004 = vmatprep.mubr.bf16.mxu0 0
      %1005 = vmatmul.mubr.bf16.gmra.mrb[0].mxu0 %v868
      %v1006 = vpop.f32.mrb[0].mxu0
      %v1007 = vadd.f32 0.0, %v1006
      %v1008 = vpop.f32.mrb[0].mxu0
      %v1009 = vpop.f32.mrb[0].mxu0
      %v1010 = vadd.f32 0.0, %v1009
      %v1011 = vpop.f32.mrb[0].mxu0
      %1012 = vmatprep.mubr.bf16.mxu0 0
      %1013 = vmatmul.mubr.bf16.gmra.mrb[0].mxu0 %v869
      %v1014 = vpop.f32.mrb[0].mxu0
      %v1015 = vadd.f32 0.0, %v1014
      %v1016 = vpop.f32.mrb[0].mxu0
      %v1017 = vpop.f32.mrb[0].mxu0
      %v1018 = vadd.f32 0.0, %v1017
      %v1019 = vpop.f32.mrb[0].mxu0
      %1020 = vmatprep.mubr.bf16.mxu0 0
      %1021 = vmatmul.mubr.bf16.gmra.mrb[0].mxu0 %v870
      %v1022 = vpop.f32.mrb[0].mxu0
      %v1023 = vadd.f32 0.0, %v1022
      %v1024 = vpop.f32.mrb[0].mxu0
      %v1025 = vpop.f32.mrb[0].mxu0
      %v1026 = vadd.f32 0.0, %v1025
      %v1027 = vpop.f32.mrb[0].mxu0
      %1028 = vmatprep.mubr.bf16.mxu0 0
      %1029 = vmatmul.mubr.bf16.gmra.mrb[0].mxu0 %v871
      %v1030 = vpop.f32.mrb[0].mxu0
      %v1031 = vadd.f32 0.0, %v1030
      %v1032 = vpop.f32.mrb[0].mxu0
      %v1033 = vpop.f32.mrb[0].mxu0
      %v1034 = vadd.f32 0.0, %v1033
      %v1035 = vpop.f32.mrb[0].mxu0
      %1036 = vmatprep.mubr.bf16.mxu0 0
      %1037 = vmatmul.mubr.bf16.gmra.mrb[0].mxu0 %v872
      %v1038 = vpop.f32.mrb[0].mxu0
      %v1039 = vadd.f32 0.0, %v1038
      %v1040 = vpop.f32.mrb[0].mxu0
      %v1041 = vpop.f32.mrb[0].mxu0
      %v1042 = vadd.f32 0.0, %v1041
      %v1043 = vpop.f32.mrb[0].mxu0
      %1044 = vmatprep.mubr.bf16.mxu0 0
      %1045 = vmatmul.mubr.bf16.gmra.mrb[0].mxu0 %v873
      %v1046 = vpop.f32.mrb[0].mxu0
      %v1047 = vadd.f32 0.0, %v1046
      %v1048 = vpop.f32.mrb[0].mxu0
      %v1049 = vpop.f32.mrb[0].mxu0
      %v1050 = vadd.f32 0.0, %v1049
      %v1051 = vpop.f32.mrb[0].mxu0
      %1052 = vmatprep.mubr.bf16.mxu0 0
      %1053 = vmatmul.mubr.bf16.gmra.mrb[0].mxu0 %v874
      %v1054 = vpop.f32.mrb[0].mxu0
      %v1055 = vadd.f32 0.0, %v1054
      %v1056 = vpop.f32.mrb[0].mxu0
      %v1057 = vpop.f32.mrb[0].mxu0
      %v1058 = vpop.f32.mrb[0].mxu0
      %1059 = vdwg.mxu0
      %v1060 = vadd.f32 %v822, %v975
      %v1061 = vadd.f32 %v823, %v978
      %v1062 = vadd.f32 %v824, %v983
      %v1063 = vadd.f32 %v825, %v986
      %v1064 = vadd.f32 %v826, %v991
      %v1065 = vadd.f32 %v827, %v994
      %v1066 = vadd.f32 %v828, %v999
      %v1067 = vadd.f32 %v829, %v1002
      %v1068 = vadd.f32 %v830, %v1007
      %v1069 = vadd.f32 %v831, %v1010
      %v1070 = vadd.f32 %v832, %v1015
      %v1071 = vadd.f32 %v833, %v1018
      %v1072 = vadd.f32 %v834, %v1023
      %v1073 = vadd.f32 %v835, %v1026
      %v1074 = vadd.f32 %v836, %v1031
      %v1075 = vadd.f32 %v837, %v1034
      %v1076 = vadd.f32 %v838, %v1039
      %v1077 = vadd.f32 %v839, %v1042
      %v1078 = vadd.f32 %v840, %v1047
      %v1079 = vadd.f32 %v841, %v1050
      %v1080 = vadd.f32 %v842, %v1055
      %v1081 = vld [vmem:[%s165 + $0xf] sm:$0xff]
      %v1082 = vld [vmem:[%s165 + $0x17] sm:$0xff]
      %v1083 = vld [vmem:[%s165 + $0x1f] sm:$0xff]
      %v1084 = vld [vmem:[%s165 + $0x27] sm:$0xff]
      %v1085 = vld [vmem:[%s165 + $0x2f] sm:$0xff]
      %v1086 = vld [vmem:[%s165 + $0x37] sm:$0xff]
      %v1087 = vld [vmem:[%s165 + $0x3f] sm:$0xff]
      %v1088 = vld [vmem:[%s165 + $0x47] sm:$0xff]
      %v1089 = vld [vmem:[%s165 + $0x4f] sm:$0xff]
      %v1090 = vld [vmem:[%s165 + $0x57] sm:$0xff]
      %v1091 = vld [vmem:[%s165 + $0x5f] sm:$0xff]
      %v1092 = vld [vmem:[%s165 + $0x67] sm:$0xff]
      %v1093 = vld [vmem:[%s165 + $0x6f] sm:$0xff]
      %v1094 = vld [vmem:[%s165 + $0x77] sm:$0xff]
      %v1095 = vld [vmem:[%s165 + $0x7f] sm:$0xff]
      %v1096 = vld [vmem:[%s165 + $0x87] sm:$0xff]
      %v1097 = vld [vmem:[%s165 + $0x8f] sm:$0xff]
      %v1098 = vld [vmem:[%s165 + $0x97] sm:$0xff]
      %v1099 = vld [vmem:[%s165 + $0x9f] sm:$0xff]
      %v1100 = vld [vmem:[%s165 + $0xa7] sm:$0xff]
      %v1101 = vld [vmem:[%s165 + $0xaf] sm:$0xff]
      %v1102 = vpack.c.bf16 %v1082, %v1081
      %v1103 = vpack.c.bf16 %v1084, %v1083
      %v1104 = vpack.c.bf16 %v1086, %v1085
      %v1105 = vpack.c.bf16 %v1088, %v1087
      %v1106 = vpack.c.bf16 %v1090, %v1089
      %v1107 = vpack.c.bf16 %v1092, %v1091
      %v1108 = vpack.c.bf16 %v1094, %v1093
      %v1109 = vpack.c.bf16 %v1096, %v1095
      %v1110 = vpack.c.bf16 %v1098, %v1097
      %v1111 = vpack.c.bf16 %v1100, %v1099
      %v1112 = vpack.c.bf16 %v1101, %v1101
      %s1113 = scalar_lea.vmem %s1, 256
      %v1114 = vld [vmem:[%s1113] sm:$0xf]
      %v1115 = vld [vmem:[%s1113 + $0x4] sm:$0xf]
      %v1116 = vld [vmem:[%s1113 + $0x8] sm:$0xf]
      %v1117 = vld [vmem:[%s1113 + $0xc] sm:$0xf]
      %v1118 = vld [vmem:[%s1113 + $0x10] sm:$0xf]
      %v1119 = vld [vmem:[%s1113 + $0x14] sm:$0xf]
      %v1120 = vld [vmem:[%s1113 + $0x18] sm:$0xf]
      %v1121 = vld [vmem:[%s1113 + $0x1c] sm:$0xf]
      %v1122 = vld [vmem:[%s1113 + $0x20] sm:$0xf]
      %v1123 = vld [vmem:[%s1113 + $0x24] sm:$0xf]
      %v1124 = vld [vmem:[%s1113 + $0x28] sm:$0xf]
      %v1125 = vld [vmem:[%s1113 + $0x2c] sm:$0xf]
      %v1126 = vld [vmem:[%s1113 + $0x30] sm:$0xf]
      %v1127 = vld [vmem:[%s1113 + $0x34] sm:$0xf]
      %v1128 = vld [vmem:[%s1113 + $0x38] sm:$0xf]
      %v1129 = vld [vmem:[%s1113 + $0x3c] sm:$0xf]
      %v1146 = vunpack.c.l.b16 %v1114
      %v1147 = vunpack.c.l.b16 %v1115
      %v1148 = vunpack.c.l.b16 %v1116
      %v1149 = vunpack.c.l.b16 %v1117
      %v1150 = vunpack.c.l.b16 %v1118
      %v1151 = vunpack.c.l.b16 %v1119
      %v1152 = vunpack.c.l.b16 %v1120
      %v1153 = vunpack.c.l.b16 %v1121
      %v1154 = vunpack.c.l.b16 %v1122
      %v1155 = vunpack.c.l.b16 %v1123
      %v1156 = vunpack.c.l.b16 %v1124
      %v1157 = vunpack.c.l.b16 %v1125
      %v1158 = vunpack.c.l.b16 %v1126
      %v1159 = vunpack.c.l.b16 %v1127
      %v1160 = vunpack.c.l.b16 %v1128
      %v1161 = vunpack.c.l.b16 %v1129
      %v1162 = vpack.c.b16 %v1147, %v1146
      %v1163 = vpack.c.b16 %v1149, %v1148
      %v1164 = vpack.c.b16 %v1151, %v1150
      %v1165 = vpack.c.b16 %v1153, %v1152
      %v1166 = vpack.c.b16 %v1155, %v1154
      %v1167 = vpack.c.b16 %v1157, %v1156
      %v1168 = vpack.c.b16 %v1159, %v1158
      %v1169 = vpack.c.b16 %v1161, %v1160
      %1178 = vmatprep.subr.bf16.mxu0 0
      %1179 = vmatpush1.bf16.msra.mxu0 %v1162
      %1180 = vmatprep.subr.bf16.mxu0 0
      %1181 = vmatpush1.bf16.msra.mxu0 %v1163
      %1182 = vmatprep.subr.bf16.mxu0 0
      %1183 = vmatpush1.bf16.msra.mxu0 %v1164
      %1184 = vmatprep.subr.bf16.mxu0 0
      %1185 = vmatpush1.bf16.msra.mxu0 %v1165
      %1186 = vmatprep.subr.bf16.mxu0 0
      %1187 = vmatpush1.bf16.msra.mxu0 %v1166
      %1188 = vmatprep.subr.bf16.mxu0 0
      %1189 = vmatpush1.bf16.msra.mxu0 %v1167
      %1190 = vmatprep.subr.bf16.mxu0 0
      %1191 = vmatpush1.bf16.msra.mxu0 %v1168
      %1192 = vmatprep.subr.bf16.mxu0 0
      %1193 = vmatpush1.bf16.msra.mxu0 %v1169
      %1194 = vmatprep.subr.bf16.mxu0 0
      %1195 = vmatpush1.bf16.msra.mxu0 0
      %1196 = vmatprep.subr.bf16.mxu0 0
      %1197 = vmatpush1.bf16.msra.mxu0 0
      %1198 = vmatprep.subr.bf16.mxu0 0
      %1199 = vmatpush1.bf16.msra.mxu0 0
      %1200 = vmatprep.subr.bf16.mxu0 0
      %1201 = vmatpush1.bf16.msra.mxu0 0
      %1202 = vmatprep.subr.bf16.mxu0 0
      %1203 = vmatpush1.bf16.msra.mxu0 0
      %1204 = vmatprep.subr.bf16.mxu0 0
      %1205 = vmatpush1.bf16.msra.mxu0 0
      %1206 = vmatprep.subr.bf16.mxu0 0
      %1207 = vmatpush1.bf16.msra.mxu0 0
      %1208 = vmatprep.subr.bf16.mxu0 0
      %1209 = vmatpush1.bf16.msra.mxu0 0
      %1210 = vmatprep.mubr.bf16.mxu0 0
      %1211 = vmatmul.mubr.bf16.gmra.mrb[0].mxu0 %v1102
      %v1212 = vpop.f32.mrb[0].mxu0
      %v1213 = vadd.f32 0.0, %v1212
      %v1214 = vpop.f32.mrb[0].mxu0
      %v1215 = vpop.f32.mrb[0].mxu0
      %v1216 = vadd.f32 0.0, %v1215
      %v1217 = vpop.f32.mrb[0].mxu0
      %1218 = vmatprep.mubr.bf16.mxu0 0
      %1219 = vmatmul.mubr.bf16.gmra.mrb[0].mxu0 %v1103
      %v1220 = vpop.f32.mrb[0].mxu0
      %v1221 = vadd.f32 0.0, %v1220
      %v1222 = vpop.f32.mrb[0].mxu0
      %v1223 = vpop.f32.mrb[0].mxu0
      %v1224 = vadd.f32 0.0, %v1223
      %v1225 = vpop.f32.mrb[0].mxu0
      %1226 = vmatprep.mubr.bf16.mxu0 0
      %1227 = vmatmul.mubr.bf16.gmra.mrb[0].mxu0 %v1104
      %v1228 = vpop.f32.mrb[0].mxu0
      %v1229 = vadd.f32 0.0, %v1228
      %v1230 = vpop.f32.mrb[0].mxu0
      %v1231 = vpop.f32.mrb[0].mxu0
      %v1232 = vadd.f32 0.0, %v1231
      %v1233 = vpop.f32.mrb[0].mxu0
      %1234 = vmatprep.mubr.bf16.mxu0 0
      %1235 = vmatmul.mubr.bf16.gmra.mrb[0].mxu0 %v1105
      %v1236 = vpop.f32.mrb[0].mxu0
      %v1237 = vadd.f32 0.0, %v1236
      %v1238 = vpop.f32.mrb[0].mxu0
      %v1239 = vpop.f32.mrb[0].mxu0
      %v1240 = vadd.f32 0.0, %v1239
      %v1241 = vpop.f32.mrb[0].mxu0
      %1242 = vmatprep.mubr.bf16.mxu0 0
      %1243 = vmatmul.mubr.bf16.gmra.mrb[0].mxu0 %v1106
      %v1244 = vpop.f32.mrb[0].mxu0
      %v1245 = vadd.f32 0.0, %v1244
      %v1246 = vpop.f32.mrb[0].mxu0
      %v1247 = vpop.f32.mrb[0].mxu0
      %v1248 = vadd.f32 0.0, %v1247
      %v1249 = vpop.f32.mrb[0].mxu0
      %1250 = vmatprep.mubr.bf16.mxu0 0
      %1251 = vmatmul.mubr.bf16.gmra.mrb[0].mxu0 %v1107
      %v1252 = vpop.f32.mrb[0].mxu0
      %v1253 = vadd.f32 0.0, %v1252
      %v1254 = vpop.f32.mrb[0].mxu0
      %v1255 = vpop.f32.mrb[0].mxu0
      %v1256 = vadd.f32 0.0, %v1255
      %v1257 = vpop.f32.mrb[0].mxu0
      %1258 = vmatprep.mubr.bf16.mxu0 0
      %1259 = vmatmul.mubr.bf16.gmra.mrb[0].mxu0 %v1108
      %v1260 = vpop.f32.mrb[0].mxu0
      %v1261 = vadd.f32 0.0, %v1260
      %v1262 = vpop.f32.mrb[0].mxu0
      %v1263 = vpop.f32.mrb[0].mxu0
      %v1264 = vadd.f32 0.0, %v1263
      %v1265 = vpop.f32.mrb[0].mxu0
      %1266 = vmatprep.mubr.bf16.mxu0 0
      %1267 = vmatmul.mubr.bf16.gmra.mrb[0].mxu0 %v1109
      %v1268 = vpop.f32.mrb[0].mxu0
      %v1269 = vadd.f32 0.0, %v1268
      %v1270 = vpop.f32.mrb[0].mxu0
      %v1271 = vpop.f32.mrb[0].mxu0
      %v1272 = vadd.f32 0.0, %v1271
      %v1273 = vpop.f32.mrb[0].mxu0
      %1274 = vmatprep.mubr.bf16.mxu0 0
      %1275 = vmatmul.mubr.bf16.gmra.mrb[0].mxu0 %v1110
      %v1276 = vpop.f32.mrb[0].mxu0
      %v1277 = vadd.f32 0.0, %v1276
      %v1278 = vpop.f32.mrb[0].mxu0
      %v1279 = vpop.f32.mrb[0].mxu0
      %v1280 = vadd.f32 0.0, %v1279
      %v1281 = vpop.f32.mrb[0].mxu0
      %1282 = vmatprep.mubr.bf16.mxu0 0
      %1283 = vmatmul.mubr.bf16.gmra.mrb[0].mxu0 %v1111
      %v1284 = vpop.f32.mrb[0].mxu0
      %v1285 = vadd.f32 0.0, %v1284
      %v1286 = vpop.f32.mrb[0].mxu0
      %v1287 = vpop.f32.mrb[0].mxu0
      %v1288 = vadd.f32 0.0, %v1287
      %v1289 = vpop.f32.mrb[0].mxu0
      %1290 = vmatprep.mubr.bf16.mxu0 0
      %1291 = vmatmul.mubr.bf16.gmra.mrb[0].mxu0 %v1112
      %v1292 = vpop.f32.mrb[0].mxu0
      %v1293 = vadd.f32 0.0, %v1292
      %v1294 = vpop.f32.mrb[0].mxu0
      %v1295 = vpop.f32.mrb[0].mxu0
      %v1296 = vpop.f32.mrb[0].mxu0
      %1297 = vdwg.mxu0
      %v1298 = vadd.f32 %v1060, %v1213
      %v1299 = vadd.f32 %v1061, %v1216
      %v1300 = vadd.f32 %v1062, %v1221
      %v1301 = vadd.f32 %v1063, %v1224
      %v1302 = vadd.f32 %v1064, %v1229
      %v1303 = vadd.f32 %v1065, %v1232
      %v1304 = vadd.f32 %v1066, %v1237
      %v1305 = vadd.f32 %v1067, %v1240
      %v1306 = vadd.f32 %v1068, %v1245
      %v1307 = vadd.f32 %v1069, %v1248
      %v1308 = vadd.f32 %v1070, %v1253
      %v1309 = vadd.f32 %v1071, %v1256
      %v1310 = vadd.f32 %v1072, %v1261
      %v1311 = vadd.f32 %v1073, %v1264
      %v1312 = vadd.f32 %v1074, %v1269
      %v1313 = vadd.f32 %v1075, %v1272
      %v1314 = vadd.f32 %v1076, %v1277
      %v1315 = vadd.f32 %v1077, %v1280
      %v1316 = vadd.f32 %v1078, %v1285
      %v1317 = vadd.f32 %v1079, %v1288
      %v1318 = vadd.f32 %v1080, %v1293
      %v1319 = vld [vmem:[%s165 + $0x10] sm:$0xff]
      %v1320 = vld [vmem:[%s165 + $0x18] sm:$0xff]
      %v1321 = vld [vmem:[%s165 + $0x20] sm:$0xff]
      %v1322 = vld [vmem:[%s165 + $0x28] sm:$0xff]
      %v1323 = vld [vmem:[%s165 + $0x30] sm:$0xff]
      %v1324 = vld [vmem:[%s165 + $0x38] sm:$0xff]
      %v1325 = vld [vmem:[%s165 + $0x40] sm:$0xff]
      %v1326 = vld [vmem:[%s165 + $0x48] sm:$0xff]
      %v1327 = vld [vmem:[%s165 + $0x50] sm:$0xff]
      %v1328 = vld [vmem:[%s165 + $0x58] sm:$0xff]
      %v1329 = vld [vmem:[%s165 + $0x60] sm:$0xff]
      %v1330 = vld [vmem:[%s165 + $0x68] sm:$0xff]
      %v1331 = vld [vmem:[%s165 + $0x70] sm:$0xff]
      %v1332 = vld [vmem:[%s165 + $0x78] sm:$0xff]
      %v1333 = vld [vmem:[%s165 + $0x80] sm:$0xff]
      %v1334 = vld [vmem:[%s165 + $0x88] sm:$0xff]
      %v1335 = vld [vmem:[%s165 + $0x90] sm:$0xff]
      %v1336 = vld [vmem:[%s165 + $0x98] sm:$0xff]
      %v1337 = vld [vmem:[%s165 + $0xa0] sm:$0xff]
      %v1338 = vld [vmem:[%s165 + $0xa8] sm:$0xff]
      %v1339 = vld [vmem:[%s165 + $0xb0] sm:$0xff]
      %v1340 = vpack.c.bf16 %v1320, %v1319
      %v1341 = vpack.c.bf16 %v1322, %v1321
      %v1342 = vpack.c.bf16 %v1324, %v1323
      %v1343 = vpack.c.bf16 %v1326, %v1325
      %v1344 = vpack.c.bf16 %v1328, %v1327
      %v1345 = vpack.c.bf16 %v1330, %v1329
      %v1346 = vpack.c.bf16 %v1332, %v1331
      %v1347 = vpack.c.bf16 %v1334, %v1333
      %v1348 = vpack.c.bf16 %v1336, %v1335
      %v1349 = vpack.c.bf16 %v1338, %v1337
      %v1350 = vpack.c.bf16 %v1339, %v1339
      %s1351 = scalar_lea.vmem %s1, 320
      %v1352 = vld [vmem:[%s1351] sm:$0xf]
      %v1353 = vld [vmem:[%s1351 + $0x4] sm:$0xf]
      %v1354 = vld [vmem:[%s1351 + $0x8] sm:$0xf]
      %v1355 = vld [vmem:[%s1351 + $0xc] sm:$0xf]
      %v1356 = vld [vmem:[%s1351 + $0x10] sm:$0xf]
      %v1357 = vld [vmem:[%s1351 + $0x14] sm:$0xf]
      %v1358 = vld [vmem:[%s1351 + $0x18] sm:$0xf]
      %v1359 = vld [vmem:[%s1351 + $0x1c] sm:$0xf]
      %v1360 = vld [vmem:[%s1351 + $0x20] sm:$0xf]
      %v1361 = vld [vmem:[%s1351 + $0x24] sm:$0xf]
      %v1362 = vld [vmem:[%s1351 + $0x28] sm:$0xf]
      %v1363 = vld [vmem:[%s1351 + $0x2c] sm:$0xf]
      %v1364 = vld [vmem:[%s1351 + $0x30] sm:$0xf]
      %v1365 = vld [vmem:[%s1351 + $0x34] sm:$0xf]
      %v1366 = vld [vmem:[%s1351 + $0x38] sm:$0xf]
      %v1367 = vld [vmem:[%s1351 + $0x3c] sm:$0xf]
      %v1384 = vunpack.c.l.b16 %v1352
      %v1385 = vunpack.c.l.b16 %v1353
      %v1386 = vunpack.c.l.b16 %v1354
      %v1387 = vunpack.c.l.b16 %v1355
      %v1388 = vunpack.c.l.b16 %v1356
      %v1389 = vunpack.c.l.b16 %v1357
      %v1390 = vunpack.c.l.b16 %v1358
      %v1391 = vunpack.c.l.b16 %v1359
      %v1392 = vunpack.c.l.b16 %v1360
      %v1393 = vunpack.c.l.b16 %v1361
      %v1394 = vunpack.c.l.b16 %v1362
      %v1395 = vunpack.c.l.b16 %v1363
      %v1396 = vunpack.c.l.b16 %v1364
      %v1397 = vunpack.c.l.b16 %v1365
      %v1398 = vunpack.c.l.b16 %v1366
      %v1399 = vunpack.c.l.b16 %v1367
      %v1400 = vpack.c.b16 %v1385, %v1384
      %v1401 = vpack.c.b16 %v1387, %v1386
      %v1402 = vpack.c.b16 %v1389, %v1388
      %v1403 = vpack.c.b16 %v1391, %v1390
      %v1404 = vpack.c.b16 %v1393, %v1392
      %v1405 = vpack.c.b16 %v1395, %v1394
      %v1406 = vpack.c.b16 %v1397, %v1396
      %v1407 = vpack.c.b16 %v1399, %v1398
      %1416 = vmatprep.subr.bf16.mxu0 0
      %1417 = vmatpush1.bf16.msra.mxu0 %v1400
      %1418 = vmatprep.subr.bf16.mxu0 0
      %1419 = vmatpush1.bf16.msra.mxu0 %v1401
      %1420 = vmatprep.subr.bf16.mxu0 0
      %1421 = vmatpush1.bf16.msra.mxu0 %v1402
      %1422 = vmatprep.subr.bf16.mxu0 0
      %1423 = vmatpush1.bf16.msra.mxu0 %v1403
      %1424 = vmatprep.subr.bf16.mxu0 0
      %1425 = vmatpush1.bf16.msra.mxu0 %v1404
      %1426 = vmatprep.subr.bf16.mxu0 0
      %1427 = vmatpush1.bf16.msra.mxu0 %v1405
      %1428 = vmatprep.subr.bf16.mxu0 0
      %1429 = vmatpush1.bf16.msra.mxu0 %v1406
      %1430 = vmatprep.subr.bf16.mxu0 0
      %1431 = vmatpush1.bf16.msra.mxu0 %v1407
      %1432 = vmatprep.subr.bf16.mxu0 0
      %1433 = vmatpush1.bf16.msra.mxu0 0
      %1434 = vmatprep.subr.bf16.mxu0 0
      %1435 = vmatpush1.bf16.msra.mxu0 0
      %1436 = vmatprep.subr.bf16.mxu0 0
      %1437 = vmatpush1.bf16.msra.mxu0 0
      %1438 = vmatprep.subr.bf16.mxu0 0
      %1439 = vmatpush1.bf16.msra.mxu0 0
      %1440 = vmatprep.subr.bf16.mxu0 0
      %1441 = vmatpush1.bf16.msra.mxu0 0
      %1442 = vmatprep.subr.bf16.mxu0 0
      %1443 = vmatpush1.bf16.msra.mxu0 0
      %1444 = vmatprep.subr.bf16.mxu0 0
      %1445 = vmatpush1.bf16.msra.mxu0 0
      %1446 = vmatprep.subr.bf16.mxu0 0
      %1447 = vmatpush1.bf16.msra.mxu0 0
      %1448 = vmatprep.mubr.bf16.mxu0 0
      %1449 = vmatmul.mubr.bf16.gmra.mrb[0].mxu0 %v1340
      %v1450 = vpop.f32.mrb[0].mxu0
      %v1451 = vadd.f32 0.0, %v1450
      %v1452 = vpop.f32.mrb[0].mxu0
      %v1453 = vpop.f32.mrb[0].mxu0
      %v1454 = vadd.f32 0.0, %v1453
      %v1455 = vpop.f32.mrb[0].mxu0
      %1456 = vmatprep.mubr.bf16.mxu0 0
      %1457 = vmatmul.mubr.bf16.gmra.mrb[0].mxu0 %v1341
      %v1458 = vpop.f32.mrb[0].mxu0
      %v1459 = vadd.f32 0.0, %v1458
      %v1460 = vpop.f32.mrb[0].mxu0
      %v1461 = vpop.f32.mrb[0].mxu0
      %v1462 = vadd.f32 0.0, %v1461
      %v1463 = vpop.f32.mrb[0].mxu0
      %1464 = vmatprep.mubr.bf16.mxu0 0
      %1465 = vmatmul.mubr.bf16.gmra.mrb[0].mxu0 %v1342
      %v1466 = vpop.f32.mrb[0].mxu0
      %v1467 = vadd.f32 0.0, %v1466
      %v1468 = vpop.f32.mrb[0].mxu0
      %v1469 = vpop.f32.mrb[0].mxu0
      %v1470 = vadd.f32 0.0, %v1469
      %v1471 = vpop.f32.mrb[0].mxu0
      %1472 = vmatprep.mubr.bf16.mxu0 0
      %1473 = vmatmul.mubr.bf16.gmra.mrb[0].mxu0 %v1343
      %v1474 = vpop.f32.mrb[0].mxu0
      %v1475 = vadd.f32 0.0, %v1474
      %v1476 = vpop.f32.mrb[0].mxu0
      %v1477 = vpop.f32.mrb[0].mxu0
      %v1478 = vadd.f32 0.0, %v1477
      %v1479 = vpop.f32.mrb[0].mxu0
      %1480 = vmatprep.mubr.bf16.mxu0 0
      %1481 = vmatmul.mubr.bf16.gmra.mrb[0].mxu0 %v1344
      %v1482 = vpop.f32.mrb[0].mxu0
      %v1483 = vadd.f32 0.0, %v1482
      %v1484 = vpop.f32.mrb[0].mxu0
      %v1485 = vpop.f32.mrb[0].mxu0
      %v1486 = vadd.f32 0.0, %v1485
      %v1487 = vpop.f32.mrb[0].mxu0
      %1488 = vmatprep.mubr.bf16.mxu0 0
      %1489 = vmatmul.mubr.bf16.gmra.mrb[0].mxu0 %v1345
      %v1490 = vpop.f32.mrb[0].mxu0
      %v1491 = vadd.f32 0.0, %v1490
      %v1492 = vpop.f32.mrb[0].mxu0
      %v1493 = vpop.f32.mrb[0].mxu0
      %v1494 = vadd.f32 0.0, %v1493
      %v1495 = vpop.f32.mrb[0].mxu0
      %1496 = vmatprep.mubr.bf16.mxu0 0
      %1497 = vmatmul.mubr.bf16.gmra.mrb[0].mxu0 %v1346
      %v1498 = vpop.f32.mrb[0].mxu0
      %v1499 = vadd.f32 0.0, %v1498
      %v1500 = vpop.f32.mrb[0].mxu0
      %v1501 = vpop.f32.mrb[0].mxu0
      %v1502 = vadd.f32 0.0, %v1501
      %v1503 = vpop.f32.mrb[0].mxu0
      %1504 = vmatprep.mubr.bf16.mxu0 0
      %1505 = vmatmul.mubr.bf16.gmra.mrb[0].mxu0 %v1347
      %v1506 = vpop.f32.mrb[0].mxu0
      %v1507 = vadd.f32 0.0, %v1506
      %v1508 = vpop.f32.mrb[0].mxu0
      %v1509 = vpop.f32.mrb[0].mxu0
      %v1510 = vadd.f32 0.0, %v1509
      %v1511 = vpop.f32.mrb[0].mxu0
      %1512 = vmatprep.mubr.bf16.mxu0 0
      %1513 = vmatmul.mubr.bf16.gmra.mrb[0].mxu0 %v1348
      %v1514 = vpop.f32.mrb[0].mxu0
      %v1515 = vadd.f32 0.0, %v1514
      %v1516 = vpop.f32.mrb[0].mxu0
      %v1517 = vpop.f32.mrb[0].mxu0
      %v1518 = vadd.f32 0.0, %v1517
      %v1519 = vpop.f32.mrb[0].mxu0
      %1520 = vmatprep.mubr.bf16.mxu0 0
      %1521 = vmatmul.mubr.bf16.gmra.mrb[0].mxu0 %v1349
      %v1522 = vpop.f32.mrb[0].mxu0
      %v1523 = vadd.f32 0.0, %v1522
      %v1524 = vpop.f32.mrb[0].mxu0
      %v1525 = vpop.f32.mrb[0].mxu0
      %v1526 = vadd.f32 0.0, %v1525
      %v1527 = vpop.f32.mrb[0].mxu0
      %1528 = vmatprep.mubr.bf16.mxu0 0
      %1529 = vmatmul.mubr.bf16.gmra.mrb[0].mxu0 %v1350
      %v1530 = vpop.f32.mrb[0].mxu0
      %v1531 = vadd.f32 0.0, %v1530
      %v1532 = vpop.f32.mrb[0].mxu0
      %v1533 = vpop.f32.mrb[0].mxu0
      %v1534 = vpop.f32.mrb[0].mxu0
      %1535 = vdwg.mxu0
      %v1536 = vadd.f32 %v1298, %v1451
      %v1537 = vadd.f32 %v1299, %v1454
      %v1538 = vadd.f32 %v1300, %v1459
      %v1539 = vadd.f32 %v1301, %v1462
      %v1540 = vadd.f32 %v1302, %v1467
      %v1541 = vadd.f32 %v1303, %v1470
      %v1542 = vadd.f32 %v1304, %v1475
      %v1543 = vadd.f32 %v1305, %v1478
      %v1544 = vadd.f32 %v1306, %v1483
      %v1545 = vadd.f32 %v1307, %v1486
      %v1546 = vadd.f32 %v1308, %v1491
      %v1547 = vadd.f32 %v1309, %v1494
      %v1548 = vadd.f32 %v1310, %v1499
      %v1549 = vadd.f32 %v1311, %v1502
      %v1550 = vadd.f32 %v1312, %v1507
      %v1551 = vadd.f32 %v1313, %v1510
      %v1552 = vadd.f32 %v1314, %v1515
      %v1553 = vadd.f32 %v1315, %v1518
      %v1554 = vadd.f32 %v1316, %v1523
      %v1555 = vadd.f32 %v1317, %v1526
      %v1556 = vadd.f32 %v1318, %v1531
      %v1557 = vld [vmem:[%s165 + $0x1c] sm:$0xff]
      %v1558 = vld [vmem:[%s165 + $0x24] sm:$0xff]
      %v1559 = vld [vmem:[%s165 + $0x2c] sm:$0xff]
      %v1560 = vld [vmem:[%s165 + $0x34] sm:$0xff]
      %v1561 = vld [vmem:[%s165 + $0x3c] sm:$0xff]
      %v1562 = vld [vmem:[%s165 + $0x44] sm:$0xff]
      %v1563 = vld [vmem:[%s165 + $0x4c] sm:$0xff]
      %v1564 = vld [vmem:[%s165 + $0x54] sm:$0xff]
      %v1565 = vld [vmem:[%s165 + $0x5c] sm:$0xff]
      %v1566 = vld [vmem:[%s165 + $0x64] sm:$0xff]
      %v1567 = vld [vmem:[%s165 + $0x6c] sm:$0xff]
      %v1568 = vld [vmem:[%s165 + $0x74] sm:$0xff]
      %v1569 = vld [vmem:[%s165 + $0x7c] sm:$0xff]
      %v1570 = vld [vmem:[%s165 + $0x84] sm:$0xff]
      %v1571 = vld [vmem:[%s165 + $0x8c] sm:$0xff]
      %v1572 = vld [vmem:[%s165 + $0x94] sm:$0xff]
      %v1573 = vld [vmem:[%s165 + $0x9c] sm:$0xff]
      %v1574 = vld [vmem:[%s165 + $0xa4] sm:$0xff]
      %v1575 = vld [vmem:[%s165 + $0xac] sm:$0xff]
      %v1576 = vld [vmem:[%s165 + $0xb4] sm:$0xff]
      %v1577 = vld [vmem:[%s165 + $0xbc] sm:$0xff]
      %v1578 = vpack.c.bf16 %v1558, %v1557
      %v1579 = vpack.c.bf16 %v1560, %v1559
      %v1580 = vpack.c.bf16 %v1562, %v1561
      %v1581 = vpack.c.bf16 %v1564, %v1563
      %v1582 = vpack.c.bf16 %v1566, %v1565
      %v1583 = vpack.c.bf16 %v1568, %v1567
      %v1584 = vpack.c.bf16 %v1570, %v1569
      %v1585 = vpack.c.bf16 %v1572, %v1571
      %v1586 = vpack.c.bf16 %v1574, %v1573
      %v1587 = vpack.c.bf16 %v1576, %v1575
      %v1588 = vpack.c.bf16 %v1577, %v1577
      %s1589 = scalar_lea.vmem %s1, 384
      %v1590 = vld [vmem:[%s1589] sm:$0xf]
      %v1591 = vld [vmem:[%s1589 + $0x4] sm:$0xf]
      %v1592 = vld [vmem:[%s1589 + $0x8] sm:$0xf]
      %v1593 = vld [vmem:[%s1589 + $0xc] sm:$0xf]
      %v1594 = vld [vmem:[%s1589 + $0x10] sm:$0xf]
      %v1595 = vld [vmem:[%s1589 + $0x14] sm:$0xf]
      %v1596 = vld [vmem:[%s1589 + $0x18] sm:$0xf]
      %v1597 = vld [vmem:[%s1589 + $0x1c] sm:$0xf]
      %v1598 = vld [vmem:[%s1589 + $0x20] sm:$0xf]
      %v1599 = vld [vmem:[%s1589 + $0x24] sm:$0xf]
      %v1600 = vld [vmem:[%s1589 + $0x28] sm:$0xf]
      %v1601 = vld [vmem:[%s1589 + $0x2c] sm:$0xf]
      %v1602 = vld [vmem:[%s1589 + $0x30] sm:$0xf]
      %v1603 = vld [vmem:[%s1589 + $0x34] sm:$0xf]
      %v1604 = vld [vmem:[%s1589 + $0x38] sm:$0xf]
      %v1605 = vld [vmem:[%s1589 + $0x3c] sm:$0xf]
      %v1622 = vunpack.c.l.b16 %v1590
      %v1623 = vunpack.c.l.b16 %v1591
      %v1624 = vunpack.c.l.b16 %v1592
      %v1625 = vunpack.c.l.b16 %v1593
      %v1626 = vunpack.c.l.b16 %v1594
      %v1627 = vunpack.c.l.b16 %v1595
      %v1628 = vunpack.c.l.b16 %v1596
      %v1629 = vunpack.c.l.b16 %v1597
      %v1630 = vunpack.c.l.b16 %v1598
      %v1631 = vunpack.c.l.b16 %v1599
      %v1632 = vunpack.c.l.b16 %v1600
      %v1633 = vunpack.c.l.b16 %v1601
      %v1634 = vunpack.c.l.b16 %v1602
      %v1635 = vunpack.c.l.b16 %v1603
      %v1636 = vunpack.c.l.b16 %v1604
      %v1637 = vunpack.c.l.b16 %v1605
      %v1638 = vpack.c.b16 %v1623, %v1622
      %v1639 = vpack.c.b16 %v1625, %v1624
      %v1640 = vpack.c.b16 %v1627, %v1626
      %v1641 = vpack.c.b16 %v1629, %v1628
      %v1642 = vpack.c.b16 %v1631, %v1630
      %v1643 = vpack.c.b16 %v1633, %v1632
      %v1644 = vpack.c.b16 %v1635, %v1634
      %v1645 = vpack.c.b16 %v1637, %v1636
      %1654 = vmatprep.subr.bf16.mxu0 0
      %1655 = vmatpush1.bf16.msra.mxu0 %v1638
      %1656 = vmatprep.subr.bf16.mxu0 0
      %1657 = vmatpush1.bf16.msra.mxu0 %v1639
      %1658 = vmatprep.subr.bf16.mxu0 0
      %1659 = vmatpush1.bf16.msra.mxu0 %v1640
      %1660 = vmatprep.subr.bf16.mxu0 0
      %1661 = vmatpush1.bf16.msra.mxu0 %v1641
      %1662 = vmatprep.subr.bf16.mxu0 0
      %1663 = vmatpush1.bf16.msra.mxu0 %v1642
      %1664 = vmatprep.subr.bf16.mxu0 0
      %1665 = vmatpush1.bf16.msra.mxu0 %v1643
      %1666 = vmatprep.subr.bf16.mxu0 0
      %1667 = vmatpush1.bf16.msra.mxu0 %v1644
      %1668 = vmatprep.subr.bf16.mxu0 0
      %1669 = vmatpush1.bf16.msra.mxu0 %v1645
      %1670 = vmatprep.subr.bf16.mxu0 0
      %1671 = vmatpush1.bf16.msra.mxu0 0
      %1672 = vmatprep.subr.bf16.mxu0 0
      %1673 = vmatpush1.bf16.msra.mxu0 0
      %1674 = vmatprep.subr.bf16.mxu0 0
      %1675 = vmatpush1.bf16.msra.mxu0 0
      %1676 = vmatprep.subr.bf16.mxu0 0
      %1677 = vmatpush1.bf16.msra.mxu0 0
      %1678 = vmatprep.subr.bf16.mxu0 0
      %1679 = vmatpush1.bf16.msra.mxu0 0
      %1680 = vmatprep.subr.bf16.mxu0 0
      %1681 = vmatpush1.bf16.msra.mxu0 0
      %1682 = vmatprep.subr.bf16.mxu0 0
      %1683 = vmatpush1.bf16.msra.mxu0 0
      %1684 = vmatprep.subr.bf16.mxu0 0
      %1685 = vmatpush1.bf16.msra.mxu0 0
      %1686 = vmatprep.mubr.bf16.mxu0 0
      %1687 = vmatmul.mubr.bf16.gmra.mrb[0].mxu0 %v1578
      %v1688 = vpop.f32.mrb[0].mxu0
      %v1689 = vadd.f32 0.0, %v1688
      %v1690 = vpop.f32.mrb[0].mxu0
      %v1691 = vpop.f32.mrb[0].mxu0
      %v1692 = vadd.f32 0.0, %v1691
      %v1693 = vpop.f32.mrb[0].mxu0
      %1694 = vmatprep.mubr.bf16.mxu0 0
      %1695 = vmatmul.mubr.bf16.gmra.mrb[0].mxu0 %v1579
      %v1696 = vpop.f32.mrb[0].mxu0
      %v1697 = vadd.f32 0.0, %v1696
      %v1698 = vpop.f32.mrb[0].mxu0
      %v1699 = vpop.f32.mrb[0].mxu0
      %v1700 = vadd.f32 0.0, %v1699
      %v1701 = vpop.f32.mrb[0].mxu0
      %1702 = vmatprep.mubr.bf16.mxu0 0
      %1703 = vmatmul.mubr.bf16.gmra.mrb[0].mxu0 %v1580
      %v1704 = vpop.f32.mrb[0].mxu0
      %v1705 = vadd.f32 0.0, %v1704
      %v1706 = vpop.f32.mrb[0].mxu0
      %v1707 = vpop.f32.mrb[0].mxu0
      %v1708 = vadd.f32 0.0, %v1707
      %v1709 = vpop.f32.mrb[0].mxu0
      %1710 = vmatprep.mubr.bf16.mxu0 0
      %1711 = vmatmul.mubr.bf16.gmra.mrb[0].mxu0 %v1581
      %v1712 = vpop.f32.mrb[0].mxu0
      %v1713 = vadd.f32 0.0, %v1712
      %v1714 = vpop.f32.mrb[0].mxu0
      %v1715 = vpop.f32.mrb[0].mxu0
      %v1716 = vadd.f32 0.0, %v1715
      %v1717 = vpop.f32.mrb[0].mxu0
      %1718 = vmatprep.mubr.bf16.mxu0 0
      %1719 = vmatmul.mubr.bf16.gmra.mrb[0].mxu0 %v1582
      %v1720 = vpop.f32.mrb[0].mxu0
      %v1721 = vadd.f32 0.0, %v1720
      %v1722 = vpop.f32.mrb[0].mxu0
      %v1723 = vpop.f32.mrb[0].mxu0
      %v1724 = vadd.f32 0.0, %v1723
      %v1725 = vpop.f32.mrb[0].mxu0
      %1726 = vmatprep.mubr.bf16.mxu0 0
      %1727 = vmatmul.mubr.bf16.gmra.mrb[0].mxu0 %v1583
      %v1728 = vpop.f32.mrb[0].mxu0
      %v1729 = vadd.f32 0.0, %v1728
      %v1730 = vpop.f32.mrb[0].mxu0
      %v1731 = vpop.f32.mrb[0].mxu0
      %v1732 = vadd.f32 0.0, %v1731
      %v1733 = vpop.f32.mrb[0].mxu0
      %1734 = vmatprep.mubr.bf16.mxu0 0
      %1735 = vmatmul.mubr.bf16.gmra.mrb[0].mxu0 %v1584
      %v1736 = vpop.f32.mrb[0].mxu0
      %v1737 = vadd.f32 0.0, %v1736
      %v1738 = vpop.f32.mrb[0].mxu0
      %v1739 = vpop.f32.mrb[0].mxu0
      %v1740 = vadd.f32 0.0, %v1739
      %v1741 = vpop.f32.mrb[0].mxu0
      %1742 = vmatprep.mubr.bf16.mxu0 0
      %1743 = vmatmul.mubr.bf16.gmra.mrb[0].mxu0 %v1585
      %v1744 = vpop.f32.mrb[0].mxu0
      %v1745 = vadd.f32 0.0, %v1744
      %v1746 = vpop.f32.mrb[0].mxu0
      %v1747 = vpop.f32.mrb[0].mxu0
      %v1748 = vadd.f32 0.0, %v1747
      %v1749 = vpop.f32.mrb[0].mxu0
      %1750 = vmatprep.mubr.bf16.mxu0 0
      %1751 = vmatmul.mubr.bf16.gmra.mrb[0].mxu0 %v1586
      %v1752 = vpop.f32.mrb[0].mxu0
      %v1753 = vadd.f32 0.0, %v1752
      %v1754 = vpop.f32.mrb[0].mxu0
      %v1755 = vpop.f32.mrb[0].mxu0
      %v1756 = vadd.f32 0.0, %v1755
      %v1757 = vpop.f32.mrb[0].mxu0
      %1758 = vmatprep.mubr.bf16.mxu0 0
      %1759 = vmatmul.mubr.bf16.gmra.mrb[0].mxu0 %v1587
      %v1760 = vpop.f32.mrb[0].mxu0
      %v1761 = vadd.f32 0.0, %v1760
      %v1762 = vpop.f32.mrb[0].mxu0
      %v1763 = vpop.f32.mrb[0].mxu0
      %v1764 = vadd.f32 0.0, %v1763
      %v1765 = vpop.f32.mrb[0].mxu0
      %1766 = vmatprep.mubr.bf16.mxu0 0
      %1767 = vmatmul.mubr.bf16.gmra.mrb[0].mxu0 %v1588
      %v1768 = vpop.f32.mrb[0].mxu0
      %v1769 = vadd.f32 0.0, %v1768
      %v1770 = vpop.f32.mrb[0].mxu0
      %v1771 = vpop.f32.mrb[0].mxu0
      %v1772 = vpop.f32.mrb[0].mxu0
      %1773 = vdwg.mxu0
      %v1774 = vadd.f32 %v1536, %v1689
      %v1775 = vadd.f32 %v1537, %v1692
      %v1776 = vadd.f32 %v1538, %v1697
      %v1777 = vadd.f32 %v1539, %v1700
      %v1778 = vadd.f32 %v1540, %v1705
      %v1779 = vadd.f32 %v1541, %v1708
      %v1780 = vadd.f32 %v1542, %v1713
      %v1781 = vadd.f32 %v1543, %v1716
      %v1782 = vadd.f32 %v1544, %v1721
      %v1783 = vadd.f32 %v1545, %v1724
      %v1784 = vadd.f32 %v1546, %v1729
      %v1785 = vadd.f32 %v1547, %v1732
      %v1786 = vadd.f32 %v1548, %v1737
      %v1787 = vadd.f32 %v1549, %v1740
      %v1788 = vadd.f32 %v1550, %v1745
      %v1789 = vadd.f32 %v1551, %v1748
      %v1790 = vadd.f32 %v1552, %v1753
      %v1791 = vadd.f32 %v1553, %v1756
      %v1792 = vadd.f32 %v1554, %v1761
      %v1793 = vadd.f32 %v1555, %v1764
      %v1794 = vadd.f32 %v1556, %v1769
      %v1795 = vld [vmem:[%s165 + $0x1d] sm:$0xff]
      %v1796 = vld [vmem:[%s165 + $0x25] sm:$0xff]
      %v1797 = vld [vmem:[%s165 + $0x2d] sm:$0xff]
      %v1798 = vld [vmem:[%s165 + $0x35] sm:$0xff]
      %v1799 = vld [vmem:[%s165 + $0x3d] sm:$0xff]
      %v1800 = vld [vmem:[%s165 + $0x45] sm:$0xff]
      %v1801 = vld [vmem:[%s165 + $0x4d] sm:$0xff]
      %v1802 = vld [vmem:[%s165 + $0x55] sm:$0xff]
      %v1803 = vld [vmem:[%s165 + $0x5d] sm:$0xff]
      %v1804 = vld [vmem:[%s165 + $0x65] sm:$0xff]
      %v1805 = vld [vmem:[%s165 + $0x6d] sm:$0xff]
      %v1806 = vld [vmem:[%s165 + $0x75] sm:$0xff]
      %v1807 = vld [vmem:[%s165 + $0x7d] sm:$0xff]
      %v1808 = vld [vmem:[%s165 + $0x85] sm:$0xff]
      %v1809 = vld [vmem:[%s165 + $0x8d] sm:$0xff]
      %v1810 = vld [vmem:[%s165 + $0x95] sm:$0xff]
      %v1811 = vld [vmem:[%s165 + $0x9d] sm:$0xff]
      %v1812 = vld [vmem:[%s165 + $0xa5] sm:$0xff]
      %v1813 = vld [vmem:[%s165 + $0xad] sm:$0xff]
      %v1814 = vld [vmem:[%s165 + $0xb5] sm:$0xff]
      %v1815 = vld [vmem:[%s165 + $0xbd] sm:$0xff]
      %v1816 = vpack.c.bf16 %v1796, %v1795
      %v1817 = vpack.c.bf16 %v1798, %v1797
      %v1818 = vpack.c.bf16 %v1800, %v1799
      %v1819 = vpack.c.bf16 %v1802, %v1801
      %v1820 = vpack.c.bf16 %v1804, %v1803
      %v1821 = vpack.c.bf16 %v1806, %v1805
      %v1822 = vpack.c.bf16 %v1808, %v1807
      %v1823 = vpack.c.bf16 %v1810, %v1809
      %v1824 = vpack.c.bf16 %v1812, %v1811
      %v1825 = vpack.c.bf16 %v1814, %v1813
      %v1826 = vpack.c.bf16 %v1815, %v1815
      %s1827 = scalar_lea.vmem %s1, 448
      %v1828 = vld [vmem:[%s1827] sm:$0xf]
      %v1829 = vld [vmem:[%s1827 + $0x4] sm:$0xf]
      %v1830 = vld [vmem:[%s1827 + $0x8] sm:$0xf]
      %v1831 = vld [vmem:[%s1827 + $0xc] sm:$0xf]
      %v1832 = vld [vmem:[%s1827 + $0x10] sm:$0xf]
      %v1833 = vld [vmem:[%s1827 + $0x14] sm:$0xf]
      %v1834 = vld [vmem:[%s1827 + $0x18] sm:$0xf]
      %v1835 = vld [vmem:[%s1827 + $0x1c] sm:$0xf]
      %v1836 = vld [vmem:[%s1827 + $0x20] sm:$0xf]
      %v1837 = vld [vmem:[%s1827 + $0x24] sm:$0xf]
      %v1838 = vld [vmem:[%s1827 + $0x28] sm:$0xf]
      %v1839 = vld [vmem:[%s1827 + $0x2c] sm:$0xf]
      %v1840 = vld [vmem:[%s1827 + $0x30] sm:$0xf]
      %v1841 = vld [vmem:[%s1827 + $0x34] sm:$0xf]
      %v1842 = vld [vmem:[%s1827 + $0x38] sm:$0xf]
      %v1843 = vld [vmem:[%s1827 + $0x3c] sm:$0xf]
      %v1860 = vunpack.c.l.b16 %v1828
      %v1861 = vunpack.c.l.b16 %v1829
      %v1862 = vunpack.c.l.b16 %v1830
      %v1863 = vunpack.c.l.b16 %v1831
      %v1864 = vunpack.c.l.b16 %v1832
      %v1865 = vunpack.c.l.b16 %v1833
      %v1866 = vunpack.c.l.b16 %v1834
      %v1867 = vunpack.c.l.b16 %v1835
      %v1868 = vunpack.c.l.b16 %v1836
      %v1869 = vunpack.c.l.b16 %v1837
      %v1870 = vunpack.c.l.b16 %v1838
      %v1871 = vunpack.c.l.b16 %v1839
      %v1872 = vunpack.c.l.b16 %v1840
      %v1873 = vunpack.c.l.b16 %v1841
      %v1874 = vunpack.c.l.b16 %v1842
      %v1875 = vunpack.c.l.b16 %v1843
      %v1876 = vpack.c.b16 %v1861, %v1860
      %v1877 = vpack.c.b16 %v1863, %v1862
      %v1878 = vpack.c.b16 %v1865, %v1864
      %v1879 = vpack.c.b16 %v1867, %v1866
      %v1880 = vpack.c.b16 %v1869, %v1868
      %v1881 = vpack.c.b16 %v1871, %v1870
      %v1882 = vpack.c.b16 %v1873, %v1872
      %v1883 = vpack.c.b16 %v1875, %v1874
      %1892 = vmatprep.subr.bf16.mxu0 0
      %1893 = vmatpush1.bf16.msra.mxu0 %v1876
      %1894 = vmatprep.subr.bf16.mxu0 0
      %1895 = vmatpush1.bf16.msra.mxu0 %v1877
      %1896 = vmatprep.subr.bf16.mxu0 0
      %1897 = vmatpush1.bf16.msra.mxu0 %v1878
      %1898 = vmatprep.subr.bf16.mxu0 0
      %1899 = vmatpush1.bf16.msra.mxu0 %v1879
      %1900 = vmatprep.subr.bf16.mxu0 0
      %1901 = vmatpush1.bf16.msra.mxu0 %v1880
      %1902 = vmatprep.subr.bf16.mxu0 0
      %1903 = vmatpush1.bf16.msra.mxu0 %v1881
      %1904 = vmatprep.subr.bf16.mxu0 0
      %1905 = vmatpush1.bf16.msra.mxu0 %v1882
      %1906 = vmatprep.subr.bf16.mxu0 0
      %1907 = vmatpush1.bf16.msra.mxu0 %v1883
      %1908 = vmatprep.subr.bf16.mxu0 0
      %1909 = vmatpush1.bf16.msra.mxu0 0
      %1910 = vmatprep.subr.bf16.mxu0 0
      %1911 = vmatpush1.bf16.msra.mxu0 0
      %1912 = vmatprep.subr.bf16.mxu0 0
      %1913 = vmatpush1.bf16.msra.mxu0 0
      %1914 = vmatprep.subr.bf16.mxu0 0
      %1915 = vmatpush1.bf16.msra.mxu0 0
      %1916 = vmatprep.subr.bf16.mxu0 0
      %1917 = vmatpush1.bf16.msra.mxu0 0
      %1918 = vmatprep.subr.bf16.mxu0 0
      %1919 = vmatpush1.bf16.msra.mxu0 0
      %1920 = vmatprep.subr.bf16.mxu0 0
      %1921 = vmatpush1.bf16.msra.mxu0 0
      %1922 = vmatprep.subr.bf16.mxu0 0
      %1923 = vmatpush1.bf16.msra.mxu0 0
      %1924 = vmatprep.mubr.bf16.mxu0 0
      %1925 = vmatmul.mubr.bf16.gmra.mrb[0].mxu0 %v1816
      %v1926 = vpop.f32.mrb[0].mxu0
      %v1927 = vadd.f32 0.0, %v1926
      %v1928 = vpop.f32.mrb[0].mxu0
      %v1929 = vpop.f32.mrb[0].mxu0
      %v1930 = vadd.f32 0.0, %v1929
      %v1931 = vpop.f32.mrb[0].mxu0
      %1932 = vmatprep.mubr.bf16.mxu0 0
      %1933 = vmatmul.mubr.bf16.gmra.mrb[0].mxu0 %v1817
      %v1934 = vpop.f32.mrb[0].mxu0
      %v1935 = vadd.f32 0.0, %v1934
      %v1936 = vpop.f32.mrb[0].mxu0
      %v1937 = vpop.f32.mrb[0].mxu0
      %v1938 = vadd.f32 0.0, %v1937
      %v1939 = vpop.f32.mrb[0].mxu0
      %1940 = vmatprep.mubr.bf16.mxu0 0
      %1941 = vmatmul.mubr.bf16.gmra.mrb[0].mxu0 %v1818
      %v1942 = vpop.f32.mrb[0].mxu0
      %v1943 = vadd.f32 0.0, %v1942
      %v1944 = vpop.f32.mrb[0].mxu0
      %v1945 = vpop.f32.mrb[0].mxu0
      %v1946 = vadd.f32 0.0, %v1945
      %v1947 = vpop.f32.mrb[0].mxu0
      %1948 = vmatprep.mubr.bf16.mxu0 0
      %1949 = vmatmul.mubr.bf16.gmra.mrb[0].mxu0 %v1819
      %v1950 = vpop.f32.mrb[0].mxu0
      %v1951 = vadd.f32 0.0, %v1950
      %v1952 = vpop.f32.mrb[0].mxu0
      %v1953 = vpop.f32.mrb[0].mxu0
      %v1954 = vadd.f32 0.0, %v1953
      %v1955 = vpop.f32.mrb[0].mxu0
      %1956 = vmatprep.mubr.bf16.mxu0 0
      %1957 = vmatmul.mubr.bf16.gmra.mrb[0].mxu0 %v1820
      %v1958 = vpop.f32.mrb[0].mxu0
      %v1959 = vadd.f32 0.0, %v1958
      %v1960 = vpop.f32.mrb[0].mxu0
      %v1961 = vpop.f32.mrb[0].mxu0
      %v1962 = vadd.f32 0.0, %v1961
      %v1963 = vpop.f32.mrb[0].mxu0
      %1964 = vmatprep.mubr.bf16.mxu0 0
      %1965 = vmatmul.mubr.bf16.gmra.mrb[0].mxu0 %v1821
      %v1966 = vpop.f32.mrb[0].mxu0
      %v1967 = vadd.f32 0.0, %v1966
      %v1968 = vpop.f32.mrb[0].mxu0
      %v1969 = vpop.f32.mrb[0].mxu0
      %v1970 = vadd.f32 0.0, %v1969
      %v1971 = vpop.f32.mrb[0].mxu0
      %1972 = vmatprep.mubr.bf16.mxu0 0
      %1973 = vmatmul.mubr.bf16.gmra.mrb[0].mxu0 %v1822
      %v1974 = vpop.f32.mrb[0].mxu0
      %v1975 = vadd.f32 0.0, %v1974
      %v1976 = vpop.f32.mrb[0].mxu0
      %v1977 = vpop.f32.mrb[0].mxu0
      %v1978 = vadd.f32 0.0, %v1977
      %v1979 = vpop.f32.mrb[0].mxu0
      %1980 = vmatprep.mubr.bf16.mxu0 0
      %1981 = vmatmul.mubr.bf16.gmra.mrb[0].mxu0 %v1823
      %v1982 = vpop.f32.mrb[0].mxu0
      %v1983 = vadd.f32 0.0, %v1982
      %v1984 = vpop.f32.mrb[0].mxu0
      %v1985 = vpop.f32.mrb[0].mxu0
      %v1986 = vadd.f32 0.0, %v1985
      %v1987 = vpop.f32.mrb[0].mxu0
      %1988 = vmatprep.mubr.bf16.mxu0 0
      %1989 = vmatmul.mubr.bf16.gmra.mrb[0].mxu0 %v1824
      %v1990 = vpop.f32.mrb[0].mxu0
      %v1991 = vadd.f32 0.0, %v1990
      %v1992 = vpop.f32.mrb[0].mxu0
      %v1993 = vpop.f32.mrb[0].mxu0
      %v1994 = vadd.f32 0.0, %v1993
      %v1995 = vpop.f32.mrb[0].mxu0
      %1996 = vmatprep.mubr.bf16.mxu0 0
      %1997 = vmatmul.mubr.bf16.gmra.mrb[0].mxu0 %v1825
      %v1998 = vpop.f32.mrb[0].mxu0
      %v1999 = vadd.f32 0.0, %v1998
      %v2000 = vpop.f32.mrb[0].mxu0
      %v2001 = vpop.f32.mrb[0].mxu0
      %v2002 = vadd.f32 0.0, %v2001
      %v2003 = vpop.f32.mrb[0].mxu0
      %2004 = vmatprep.mubr.bf16.mxu0 0
      %2005 = vmatmul.mubr.bf16.gmra.mrb[0].mxu0 %v1826
      %v2006 = vpop.f32.mrb[0].mxu0
      %v2007 = vadd.f32 0.0, %v2006
      %v2008 = vpop.f32.mrb[0].mxu0
      %v2009 = vpop.f32.mrb[0].mxu0
      %v2010 = vpop.f32.mrb[0].mxu0
      %2011 = vdwg.mxu0
      %v2012 = vadd.f32 %v1774, %v1927
      %v2013 = vadd.f32 %v1775, %v1930
      %v2014 = vadd.f32 %v1776, %v1935
      %v2015 = vadd.f32 %v1777, %v1938
      %v2016 = vadd.f32 %v1778, %v1943
      %v2017 = vadd.f32 %v1779, %v1946
      %v2018 = vadd.f32 %v1780, %v1951
      %v2019 = vadd.f32 %v1781, %v1954
      %v2020 = vadd.f32 %v1782, %v1959
      %v2021 = vadd.f32 %v1783, %v1962
      %v2022 = vadd.f32 %v1784, %v1967
      %v2023 = vadd.f32 %v1785, %v1970
      %v2024 = vadd.f32 %v1786, %v1975
      %v2025 = vadd.f32 %v1787, %v1978
      %v2026 = vadd.f32 %v1788, %v1983
      %v2027 = vadd.f32 %v1789, %v1986
      %v2028 = vadd.f32 %v1790, %v1991
      %v2029 = vadd.f32 %v1791, %v1994
      %v2030 = vadd.f32 %v1792, %v1999
      %v2031 = vadd.f32 %v1793, %v2002
      %v2032 = vadd.f32 %v1794, %v2007
      %v2033 = vld [vmem:[%s165 + $0x1e] sm:$0xff]
      %v2034 = vld [vmem:[%s165 + $0x26] sm:$0xff]
      %v2035 = vld [vmem:[%s165 + $0x2e] sm:$0xff]
      %v2036 = vld [vmem:[%s165 + $0x36] sm:$0xff]
      %v2037 = vld [vmem:[%s165 + $0x3e] sm:$0xff]
      %v2038 = vld [vmem:[%s165 + $0x46] sm:$0xff]
      %v2039 = vld [vmem:[%s165 + $0x4e] sm:$0xff]
      %v2040 = vld [vmem:[%s165 + $0x56] sm:$0xff]
      %v2041 = vld [vmem:[%s165 + $0x5e] sm:$0xff]
      %v2042 = vld [vmem:[%s165 + $0x66] sm:$0xff]
      %v2043 = vld [vmem:[%s165 + $0x6e] sm:$0xff]
      %v2044 = vld [vmem:[%s165 + $0x76] sm:$0xff]
      %v2045 = vld [vmem:[%s165 + $0x7e] sm:$0xff]
      %v2046 = vld [vmem:[%s165 + $0x86] sm:$0xff]
      %v2047 = vld [vmem:[%s165 + $0x8e] sm:$0xff]
      %v2048 = vld [vmem:[%s165 + $0x96] sm:$0xff]
      %v2049 = vld [vmem:[%s165 + $0x9e] sm:$0xff]
      %v2050 = vld [vmem:[%s165 + $0xa6] sm:$0xff]
      %v2051 = vld [vmem:[%s165 + $0xae] sm:$0xff]
      %v2052 = vld [vmem:[%s165 + $0xb6] sm:$0xff]
      %v2053 = vld [vmem:[%s165 + $0xbe] sm:$0xff]
      %v2054 = vpack.c.bf16 %v2034, %v2033
      %v2055 = vpack.c.bf16 %v2036, %v2035
      %v2056 = vpack.c.bf16 %v2038, %v2037
      %v2057 = vpack.c.bf16 %v2040, %v2039
      %v2058 = vpack.c.bf16 %v2042, %v2041
      %v2059 = vpack.c.bf16 %v2044, %v2043
      %v2060 = vpack.c.bf16 %v2046, %v2045
      %v2061 = vpack.c.bf16 %v2048, %v2047
      %v2062 = vpack.c.bf16 %v2050, %v2049
      %v2063 = vpack.c.bf16 %v2052, %v2051
      %v2064 = vpack.c.bf16 %v2053, %v2053
      %s2065 = scalar_lea.vmem %s1, 512
      %v2066 = vld [vmem:[%s2065] sm:$0xf]
      %v2067 = vld [vmem:[%s2065 + $0x4] sm:$0xf]
      %v2068 = vld [vmem:[%s2065 + $0x8] sm:$0xf]
      %v2069 = vld [vmem:[%s2065 + $0xc] sm:$0xf]
      %v2070 = vld [vmem:[%s2065 + $0x10] sm:$0xf]
      %v2071 = vld [vmem:[%s2065 + $0x14] sm:$0xf]
      %v2072 = vld [vmem:[%s2065 + $0x18] sm:$0xf]
      %v2073 = vld [vmem:[%s2065 + $0x1c] sm:$0xf]
      %v2074 = vld [vmem:[%s2065 + $0x20] sm:$0xf]
      %v2075 = vld [vmem:[%s2065 + $0x24] sm:$0xf]
      %v2076 = vld [vmem:[%s2065 + $0x28] sm:$0xf]
      %v2077 = vld [vmem:[%s2065 + $0x2c] sm:$0xf]
      %v2078 = vld [vmem:[%s2065 + $0x30] sm:$0xf]
      %v2079 = vld [vmem:[%s2065 + $0x34] sm:$0xf]
      %v2080 = vld [vmem:[%s2065 + $0x38] sm:$0xf]
      %v2081 = vld [vmem:[%s2065 + $0x3c] sm:$0xf]
      %v2098 = vunpack.c.l.b16 %v2066
      %v2099 = vunpack.c.l.b16 %v2067
      %v2100 = vunpack.c.l.b16 %v2068
      %v2101 = vunpack.c.l.b16 %v2069
      %v2102 = vunpack.c.l.b16 %v2070
      %v2103 = vunpack.c.l.b16 %v2071
      %v2104 = vunpack.c.l.b16 %v2072
      %v2105 = vunpack.c.l.b16 %v2073
      %v2106 = vunpack.c.l.b16 %v2074
      %v2107 = vunpack.c.l.b16 %v2075
      %v2108 = vunpack.c.l.b16 %v2076
      %v2109 = vunpack.c.l.b16 %v2077
      %v2110 = vunpack.c.l.b16 %v2078
      %v2111 = vunpack.c.l.b16 %v2079
      %v2112 = vunpack.c.l.b16 %v2080
      %v2113 = vunpack.c.l.b16 %v2081
      %v2114 = vpack.c.b16 %v2099, %v2098
      %v2115 = vpack.c.b16 %v2101, %v2100
      %v2116 = vpack.c.b16 %v2103, %v2102
      %v2117 = vpack.c.b16 %v2105, %v2104
      %v2118 = vpack.c.b16 %v2107, %v2106
      %v2119 = vpack.c.b16 %v2109, %v2108
      %v2120 = vpack.c.b16 %v2111, %v2110
      %v2121 = vpack.c.b16 %v2113, %v2112
      %2130 = vmatprep.subr.bf16.mxu0 0
      %2131 = vmatpush1.bf16.msra.mxu0 %v2114
      %2132 = vmatprep.subr.bf16.mxu0 0
      %2133 = vmatpush1.bf16.msra.mxu0 %v2115
      %2134 = vmatprep.subr.bf16.mxu0 0
      %2135 = vmatpush1.bf16.msra.mxu0 %v2116
      %2136 = vmatprep.subr.bf16.mxu0 0
      %2137 = vmatpush1.bf16.msra.mxu0 %v2117
      %2138 = vmatprep.subr.bf16.mxu0 0
      %2139 = vmatpush1.bf16.msra.mxu0 %v2118
      %2140 = vmatprep.subr.bf16.mxu0 0
      %2141 = vmatpush1.bf16.msra.mxu0 %v2119
      %2142 = vmatprep.subr.bf16.mxu0 0
      %2143 = vmatpush1.bf16.msra.mxu0 %v2120
      %2144 = vmatprep.subr.bf16.mxu0 0
      %2145 = vmatpush1.bf16.msra.mxu0 %v2121
      %2146 = vmatprep.subr.bf16.mxu0 0
      %2147 = vmatpush1.bf16.msra.mxu0 0
      %2148 = vmatprep.subr.bf16.mxu0 0
      %2149 = vmatpush1.bf16.msra.mxu0 0
      %2150 = vmatprep.subr.bf16.mxu0 0
      %2151 = vmatpush1.bf16.msra.mxu0 0
      %2152 = vmatprep.subr.bf16.mxu0 0
      %2153 = vmatpush1.bf16.msra.mxu0 0
      %2154 = vmatprep.subr.bf16.mxu0 0
      %2155 = vmatpush1.bf16.msra.mxu0 0
      %2156 = vmatprep.subr.bf16.mxu0 0
      %2157 = vmatpush1.bf16.msra.mxu0 0
      %2158 = vmatprep.subr.bf16.mxu0 0
      %2159 = vmatpush1.bf16.msra.mxu0 0
      %2160 = vmatprep.subr.bf16.mxu0 0
      %2161 = vmatpush1.bf16.msra.mxu0 0
      %2162 = vmatprep.mubr.bf16.mxu0 0
      %2163 = vmatmul.mubr.bf16.gmra.mrb[0].mxu0 %v2054
      %v2164 = vpop.f32.mrb[0].mxu0
      %v2165 = vadd.f32 0.0, %v2164
      %v2166 = vpop.f32.mrb[0].mxu0
      %v2167 = vpop.f32.mrb[0].mxu0
      %v2168 = vadd.f32 0.0, %v2167
      %v2169 = vpop.f32.mrb[0].mxu0
      %2170 = vmatprep.mubr.bf16.mxu0 0
      %2171 = vmatmul.mubr.bf16.gmra.mrb[0].mxu0 %v2055
      %v2172 = vpop.f32.mrb[0].mxu0
      %v2173 = vadd.f32 0.0, %v2172
      %v2174 = vpop.f32.mrb[0].mxu0
      %v2175 = vpop.f32.mrb[0].mxu0
      %v2176 = vadd.f32 0.0, %v2175
      %v2177 = vpop.f32.mrb[0].mxu0
      %2178 = vmatprep.mubr.bf16.mxu0 0
      %2179 = vmatmul.mubr.bf16.gmra.mrb[0].mxu0 %v2056
      %v2180 = vpop.f32.mrb[0].mxu0
      %v2181 = vadd.f32 0.0, %v2180
      %v2182 = vpop.f32.mrb[0].mxu0
      %v2183 = vpop.f32.mrb[0].mxu0
      %v2184 = vadd.f32 0.0, %v2183
      %v2185 = vpop.f32.mrb[0].mxu0
      %2186 = vmatprep.mubr.bf16.mxu0 0
      %2187 = vmatmul.mubr.bf16.gmra.mrb[0].mxu0 %v2057
      %v2188 = vpop.f32.mrb[0].mxu0
      %v2189 = vadd.f32 0.0, %v2188
      %v2190 = vpop.f32.mrb[0].mxu0
      %v2191 = vpop.f32.mrb[0].mxu0
      %v2192 = vadd.f32 0.0, %v2191
      %v2193 = vpop.f32.mrb[0].mxu0
      %2194 = vmatprep.mubr.bf16.mxu0 0
      %2195 = vmatmul.mubr.bf16.gmra.mrb[0].mxu0 %v2058
      %v2196 = vpop.f32.mrb[0].mxu0
      %v2197 = vadd.f32 0.0, %v2196
      %v2198 = vpop.f32.mrb[0].mxu0
      %v2199 = vpop.f32.mrb[0].mxu0
      %v2200 = vadd.f32 0.0, %v2199
      %v2201 = vpop.f32.mrb[0].mxu0
      %2202 = vmatprep.mubr.bf16.mxu0 0
      %2203 = vmatmul.mubr.bf16.gmra.mrb[0].mxu0 %v2059
      %v2204 = vpop.f32.mrb[0].mxu0
      %v2205 = vadd.f32 0.0, %v2204
      %v2206 = vpop.f32.mrb[0].mxu0
      %v2207 = vpop.f32.mrb[0].mxu0
      %v2208 = vadd.f32 0.0, %v2207
      %v2209 = vpop.f32.mrb[0].mxu0
      %2210 = vmatprep.mubr.bf16.mxu0 0
      %2211 = vmatmul.mubr.bf16.gmra.mrb[0].mxu0 %v2060
      %v2212 = vpop.f32.mrb[0].mxu0
      %v2213 = vadd.f32 0.0, %v2212
      %v2214 = vpop.f32.mrb[0].mxu0
      %v2215 = vpop.f32.mrb[0].mxu0
      %v2216 = vadd.f32 0.0, %v2215
      %v2217 = vpop.f32.mrb[0].mxu0
      %2218 = vmatprep.mubr.bf16.mxu0 0
      %2219 = vmatmul.mubr.bf16.gmra.mrb[0].mxu0 %v2061
      %v2220 = vpop.f32.mrb[0].mxu0
      %v2221 = vadd.f32 0.0, %v2220
      %v2222 = vpop.f32.mrb[0].mxu0
      %v2223 = vpop.f32.mrb[0].mxu0
      %v2224 = vadd.f32 0.0, %v2223
      %v2225 = vpop.f32.mrb[0].mxu0
      %2226 = vmatprep.mubr.bf16.mxu0 0
      %2227 = vmatmul.mubr.bf16.gmra.mrb[0].mxu0 %v2062
      %v2228 = vpop.f32.mrb[0].mxu0
      %v2229 = vadd.f32 0.0, %v2228
      %v2230 = vpop.f32.mrb[0].mxu0
      %v2231 = vpop.f32.mrb[0].mxu0
      %v2232 = vadd.f32 0.0, %v2231
      %v2233 = vpop.f32.mrb[0].mxu0
      %2234 = vmatprep.mubr.bf16.mxu0 0
      %2235 = vmatmul.mubr.bf16.gmra.mrb[0].mxu0 %v2063
      %v2236 = vpop.f32.mrb[0].mxu0
      %v2237 = vadd.f32 0.0, %v2236
      %v2238 = vpop.f32.mrb[0].mxu0
      %v2239 = vpop.f32.mrb[0].mxu0
      %v2240 = vadd.f32 0.0, %v2239
      %v2241 = vpop.f32.mrb[0].mxu0
      %2242 = vmatprep.mubr.bf16.mxu0 0
      %2243 = vmatmul.mubr.bf16.gmra.mrb[0].mxu0 %v2064
      %v2244 = vpop.f32.mrb[0].mxu0
      %v2245 = vadd.f32 0.0, %v2244
      %v2246 = vpop.f32.mrb[0].mxu0
      %v2247 = vpop.f32.mrb[0].mxu0
      %v2248 = vpop.f32.mrb[0].mxu0
      %2249 = vdwg.mxu0
      %v2250 = vadd.f32 %v2012, %v2165
      %v2251 = vadd.f32 %v2013, %v2168
      %v2252 = vadd.f32 %v2014, %v2173
      %v2253 = vadd.f32 %v2015, %v2176
      %v2254 = vadd.f32 %v2016, %v2181
      %v2255 = vadd.f32 %v2017, %v2184
      %v2256 = vadd.f32 %v2018, %v2189
      %v2257 = vadd.f32 %v2019, %v2192
      %v2258 = vadd.f32 %v2020, %v2197
      %v2259 = vadd.f32 %v2021, %v2200
      %v2260 = vadd.f32 %v2022, %v2205
      %v2261 = vadd.f32 %v2023, %v2208
      %v2262 = vadd.f32 %v2024, %v2213
      %v2263 = vadd.f32 %v2025, %v2216
      %v2264 = vadd.f32 %v2026, %v2221
      %v2265 = vadd.f32 %v2027, %v2224
      %v2266 = vadd.f32 %v2028, %v2229
      %v2267 = vadd.f32 %v2029, %v2232
      %v2268 = vadd.f32 %v2030, %v2237
      %v2269 = vadd.f32 %v2031, %v2240
      %v2270 = vadd.f32 %v2032, %v2245
      %v2271 = vld [vmem:[%s2] sm:$0x1]
      %v2273 = vlaneseq
      %v2274 = vshrl.u32 %v2273, 7
      %v2275 = vsub.s32 0, %v2274
      %v2276 = vrot.slane %v2271, %v2275
      %v2278 = vadd.f32 %v2250, %v2276
      %v2279 = vadd.f32 %v2251, %v2276
      %v2280 = vadd.f32 %v2252, %v2276
      %v2281 = vadd.f32 %v2253, %v2276
      %v2282 = vadd.f32 %v2254, %v2276
      %v2283 = vadd.f32 %v2255, %v2276
      %v2284 = vadd.f32 %v2256, %v2276
      %v2285 = vadd.f32 %v2257, %v2276
      %v2286 = vadd.f32 %v2258, %v2276
      %v2287 = vadd.f32 %v2259, %v2276
      %v2288 = vadd.f32 %v2260, %v2276
      %v2289 = vadd.f32 %v2261, %v2276
      %v2290 = vadd.f32 %v2262, %v2276
      %v2291 = vadd.f32 %v2263, %v2276
      %v2292 = vadd.f32 %v2264, %v2276
      %v2293 = vadd.f32 %v2265, %v2276
      %v2294 = vadd.f32 %v2266, %v2276
      %v2295 = vadd.f32 %v2267, %v2276
      %v2296 = vadd.f32 %v2268, %v2276
      %v2297 = vadd.f32 %v2269, %v2276
      %v2298 = vadd.f32 %v2270, %v2276
      %v2299 = vmax.f32 %v2278, 0.0
      %v2300 = vmax.f32 %v2279, 0.0
      %v2301 = vmax.f32 %v2280, 0.0
      %v2302 = vmax.f32 %v2281, 0.0
      %v2303 = vmax.f32 %v2282, 0.0
      %v2304 = vmax.f32 %v2283, 0.0
      %v2305 = vmax.f32 %v2284, 0.0
      %v2306 = vmax.f32 %v2285, 0.0
      %v2307 = vmax.f32 %v2286, 0.0
      %v2308 = vmax.f32 %v2287, 0.0
      %v2309 = vmax.f32 %v2288, 0.0
      %v2310 = vmax.f32 %v2289, 0.0
      %v2311 = vmax.f32 %v2290, 0.0
      %v2312 = vmax.f32 %v2291, 0.0
      %v2313 = vmax.f32 %v2292, 0.0
      %v2314 = vmax.f32 %v2293, 0.0
      %v2315 = vmax.f32 %v2294, 0.0
      %v2316 = vmax.f32 %v2295, 0.0
      %v2317 = vmax.f32 %v2296, 0.0
      %v2318 = vmax.f32 %v2297, 0.0
      %v2319 = vmax.f32 %v2298, 0.0
      %2320 = vst [vmem:[%s170] sm:$0xff] %v2299
      %2321 = vst [vmem:[%s170 + $0x8] sm:$0xff] %v2300
      %2322 = vst [vmem:[%s170 + $0x10] sm:$0xff] %v2301
      %2323 = vst [vmem:[%s170 + $0x18] sm:$0xff] %v2302
      %2324 = vst [vmem:[%s170 + $0x20] sm:$0xff] %v2303
      %2325 = vst [vmem:[%s170 + $0x28] sm:$0xff] %v2304
      %2326 = vst [vmem:[%s170 + $0x30] sm:$0xff] %v2305
      %2327 = vst [vmem:[%s170 + $0x38] sm:$0xff] %v2306
      %2328 = vst [vmem:[%s170 + $0x40] sm:$0xff] %v2307
      %2329 = vst [vmem:[%s170 + $0x48] sm:$0xff] %v2308
      %2330 = vst [vmem:[%s170 + $0x50] sm:$0xff] %v2309
      %2331 = vst [vmem:[%s170 + $0x58] sm:$0xff] %v2310
      %2332 = vst [vmem:[%s170 + $0x60] sm:$0xff] %v2311
      %2333 = vst [vmem:[%s170 + $0x68] sm:$0xff] %v2312
      %2334 = vst [vmem:[%s170 + $0x70] sm:$0xff] %v2313
      %2335 = vst [vmem:[%s170 + $0x78] sm:$0xff] %v2314
      %2336 = vst [vmem:[%s170 + $0x80] sm:$0xff] %v2315
      %2337 = vst [vmem:[%s170 + $0x88] sm:$0xff] %v2316
      %2338 = vst [vmem:[%s170 + $0x90] sm:$0xff] %v2317
      %2339 = vst [vmem:[%s170 + $0x98] sm:$0xff] %v2318
      %2340 = vst [vmem:[%s170 + $0xa0] sm:$0xff] %v2319
      %p2341 = scmp.lt.s32.totalorder %s14, 1
      %s2342 = scalar_select %p2341, %s14, 1
      %s2343 = smul.addr %s2342, 21
      %s2344 = smul.addr %s2343, 8
      %s2345 = scalar_lea.vmem %s3, %s2344
      // Predicated region
      $region33: #{_lambda_.4} parent=31 // pred_check
        %p2346 = pneg %p100
      $region34: #{_lambda_.4} parent=31 // pred_check_branch
        %2348 = sbr.rel (%p2346) target = $region36
      $region35: #{_lambda_.4} parent=31 // pred_region
        _
      $region36: #{_lambda_.4} parent=31 // pred_fallthru
        _
    $region32: #{_lambda_.4} parent=5 // pred_fallthru
      _
    %p2349 = scmp.le.s32.totalorder 2, %s9
    // Predicated region
    $region37: #{_lambda_.4} parent=5 // pred_check
      %p2350 = pneg %p2349
    $region38: #{_lambda_.4} parent=5 // pred_check_branch
      %2352 = sbr.rel (%p2350) target = $region40
    $region39: #{_lambda_.4} parent=5 // pred_region
      %s2353 = ssub.s32 %s9, 2
      // Predicated region
      $region41: #{_lambda_.4} parent=39 // pred_check
        %p2354 = pneg %p106
      $region42: #{_lambda_.4} parent=39 // pred_check_branch
        %2356 = sbr.rel (%p2354) target = $region44
      $region43: #{_lambda_.4} parent=39 // pred_region
        %p2357 = scmp.lt.s32.totalorder %s15, 1
        %s2358 = scalar_select %p2357, %s15, 1
        %s2359 = smul.addr %s2358, 21
        %s2360 = smul.addr %s2359, 8
        %s2361 = scalar_lea.vmem %s3, %s2360
      $region44: #{_lambda_.4} parent=39 // pred_fallthru
        _
    $region40: #{_lambda_.4} parent=5 // pred_fallthru
      _
  $region6: #{_lambda_.4} parent=0 // loop_footer
    %s13 = sadd.s32 1, %s9
  $region7: #{_lambda_.4} parent=0 // loop_footer_branch
    %8 = sbr.rel target = $region3
  $region8: #{_lambda_.4} parent=0 // loop_exit
    _

</llo_original>
